<compile_context>
chip_gen: v7x
topology: tpu7x:2x2x1
jax: 0.10.0
libtpu: 0.0.40
codegen_flags: <defaults>
</compile_context>

<pallas_src>
import functools

import jax
import jax.numpy as jnp
from jax.experimental import pallas as pl
from jax.experimental.pallas import tpu as pltpu


NEG_SLOPE = 0.01                      # F.leaky_relu default negative_slope
LAYER_DIMS = [(4, 32), (32, 32), (32, 32), (32, 32), (32, 3)]
HID = 32                              # uniform hidden width for the fused kernel
OUT_PAD = 128                         # final Cout=3 padded to a full lane group
FUSE_MAX_N = 2048                     # int8 A + activations comfortably fit VMEM
VMEM_LIMIT = 48 << 20                 # safe on v7x (64 MiB) and v5e/v6e (128 MiB)


def _round_up(x, m):
    return (x + m - 1) // m * m


# ----------------------------------------------------------------------------
# Fused kernel: all 5 SAGE layers, A resident in VMEM, one pallas_call
# ----------------------------------------------------------------------------
def fused_sage_kernel(a_ref, dinv_ref, x0_ref, w14_ref, b14_ref, w5_ref, b5_ref,
                      o_ref, *, n_hidden):
    # int8 edge counts -> bf16 once (exact); the bf16 copy feeds all 5
    # aggregation matmuls natively on the MXU (no per-layer f32 promotion).
    a = a_ref[...].astype(jnp.bfloat16)                       # (N, N)
    dinv = dinv_ref[...]                                      # (N, 1)   f32
    x = x0_ref[...]                                           # (N, HID) f32

    def sage(x, w, b):
        ws, wn = w[:HID, :], w[HID:, :]
        agg = jnp.dot(a, x.astype(jnp.bfloat16),
                      preferred_element_type=jnp.float32)     # neighbor sum
        h_neigh = agg * dinv                                  # mean (0 if deg_in=0)
        # Two small dots instead of a concat -> no lane relayout before the MXU.
        return (jnp.dot(x, ws, preferred_element_type=jnp.float32)
                + jnp.dot(h_neigh, wn, preferred_element_type=jnp.float32)
                + b)

    for i in range(n_hidden):                                 # layers 1..4
        out = sage(x, w14_ref[i], b14_ref[i])
        x = jnp.where(out >= 0, out, NEG_SLOPE * out)         # leaky_relu

    o_ref[...] = sage(x, w5_ref[...], b5_ref[...])            # layer 5, no act


def sage_net_fused(a_i8, deg_inv, x0, w14, b14, w5, b5):
    n_pad = a_i8.shape[0]
    n_hidden = len(LAYER_DIMS) - 1
    kernel = functools.partial(fused_sage_kernel, n_hidden=n_hidden)
    return pl.pallas_call(
        kernel,
        out_shape=jax.ShapeDtypeStruct((n_pad, OUT_PAD), jnp.float32),
        grid_spec=pltpu.PrefetchScalarGridSpec(
            num_scalar_prefetch=0,
            grid=(1,),
            in_specs=[
                pl.BlockSpec((n_pad, n_pad), lambda i: (0, 0)),              # A (int8)
                pl.BlockSpec((n_pad, 1), lambda i: (0, 0)),                  # 1/deg_in
                pl.BlockSpec((n_pad, HID), lambda i: (0, 0)),                # X0
                pl.BlockSpec((n_hidden, 2 * HID, HID), lambda i: (0, 0, 0)),  # [Ws;Wn] 1..4
                pl.BlockSpec((n_hidden, 1, HID), lambda i: (0, 0, 0)),        # b 1..4
                pl.BlockSpec((2 * HID, OUT_PAD), lambda i: (0, 0)),          # [Ws;Wn] 5
                pl.BlockSpec((1, OUT_PAD), lambda i: (0, 0)),                # b 5
            ],
            out_specs=pl.BlockSpec((n_pad, OUT_PAD), lambda i: (0, 0)),
        ),
        compiler_params=pltpu.CompilerParams(
            dimension_semantics=("arbitrary",),
            vmem_limit_bytes=VMEM_LIMIT,
        ),
    )(a_i8, deg_inv, x0, w14, b14, w5, b5)


# ----------------------------------------------------------------------------
# Tiled per-layer kernel (large graphs): grid = (row tiles, K tiles)
# ----------------------------------------------------------------------------
def sage_layer_kernel(a_ref, xs_ref, xd_ref, dinv_ref, w_ref, b_ref,
                      o_ref, acc_ref, *, apply_act, cin):
    k = pl.program_id(1)

    # int8 A -> bf16 on the VPU, bf16 X: native bf16 MXU, f32 accumulation.
    partial = jnp.dot(a_ref[...].astype(jnp.bfloat16), xs_ref[...],
                      preferred_element_type=jnp.float32)      # (TM, Cin)

    @pl.when(k == 0)
    def _():
        acc_ref[...] = partial            # assign: no explicit zero-fill + add

    @pl.when(k > 0)
    def _():
        acc_ref[...] += partial

    @pl.when(k == pl.num_programs(1) - 1)
    def _():
        h_neigh = acc_ref[...] * dinv_ref[...]                 # mean (f32)
        w = w_ref[...]
        out = (jnp.dot(xd_ref[...].astype(jnp.float32), w[:cin, :],
                       preferred_element_type=jnp.float32)
               + jnp.dot(h_neigh, w[cin:, :],
                         preferred_element_type=jnp.float32)
               + b_ref[...])
        if apply_act:
            out = jnp.where(out >= 0, out, NEG_SLOPE * out)    # leaky_relu
        o_ref[...] = out.astype(o_ref.dtype)


def sage_layer(a_i8, deg_inv, x, w_cat, bias, *, apply_act, tm, tk, out_dtype):
    n_pad, cin = x.shape
    cout = w_cat.shape[1]
    assert n_pad % tm == 0 and n_pad % tk == 0
    grid = (n_pad // tm, n_pad // tk)
    kernel = functools.partial(sage_layer_kernel, apply_act=apply_act, cin=cin)
    return pl.pallas_call(
        kernel,
        out_shape=jax.ShapeDtypeStruct((n_pad, cout), out_dtype),
        grid_spec=pltpu.PrefetchScalarGridSpec(
            num_scalar_prefetch=0,
            grid=grid,
            in_specs=[
                pl.BlockSpec((tm, tk), lambda i, k: (i, k)),         # A (int8)
                pl.BlockSpec((tk, cin), lambda i, k: (k, 0)),        # X src (bf16)
                pl.BlockSpec((tm, cin), lambda i, k: (i, 0)),        # X self (bf16)
                pl.BlockSpec((tm, 1), lambda i, k: (i, 0)),          # 1/deg_in (f32)
                pl.BlockSpec((2 * cin, cout), lambda i, k: (0, 0)),  # [Ws; Wn] (f32)
                pl.BlockSpec((1, cout), lambda i, k: (0, 0)),        # bias (f32)
            ],
            out_specs=pl.BlockSpec((tm, cout), lambda i, k: (i, 0)),
            scratch_shapes=[pltpu.VMEM((tm, cin), jnp.float32)],
        ),
        compiler_params=pltpu.CompilerParams(
            dimension_semantics=("parallel", "arbitrary"),
            vmem_limit_bytes=VMEM_LIMIT,
        ),
    )(a_i8, x, x, deg_inv, w_cat, bias)


def sage_net_tiled(a_i8, deg_inv, x0, prepared, *, tm, tk):
    x = x0.astype(jnp.bfloat16)           # bf16 activation stream between layers
    n_layers = len(prepared)
    for i, (w_cat, b) in enumerate(prepared):
        last = i == n_layers - 1
        x = sage_layer(a_i8, deg_inv, x, w_cat, b, apply_act=not last,
                       tm=tm, tk=tk,
                       out_dtype=jnp.float32 if last else jnp.bfloat16)
    return x


def choose_tiling(n):
    """(n_pad, tm, tk) for the tiled per-layer path."""
    if n <= 1024:
        n_pad = max(512, _round_up(n, 512))
        return n_pad, n_pad // 2, n_pad          # >= 2 row tiles (v7x megacore)
    n_pad = _round_up(n, 2048)                   # fat tiles: amortize step cost
    tk = 4096 if n_pad % 4096 == 0 else 2048
    return n_pad, 1024, tk


# ----------------------------------------------------------------------------
# Graph / parameter preparation (plain-JAX glue)
# ----------------------------------------------------------------------------
def build_graph_inputs(src, dst, num_nodes, n_pad):
    """Dense edge-count adjacency (int8 in HBM, exact <=127) + f32 1/deg_in."""
    a = jnp.zeros((num_nodes, num_nodes), jnp.float32).at[dst, src].add(1.0)
    deg = a.sum(axis=1, keepdims=True)
    deg_inv = jnp.where(deg > 0, 1.0 / jnp.maximum(deg, 1.0), 0.0)
    a_pad = jnp.zeros((n_pad, n_pad), jnp.float32).at[:num_nodes, :num_nodes].set(a)
    deg_inv_pad = jnp.zeros((n_pad, 1), jnp.float32).at[:num_nodes].set(deg_inv)
    return a_pad.astype(jnp.int8), deg_inv_pad


def init_params(key):
    params = []
    for cin, cout in LAYER_DIMS:
        k1, k2, k3, key = jax.random.split(key, 4)
        scale = 1.0 / jnp.sqrt(jnp.float32(cin))
        w_self = jax.random.uniform(k1, (cin, cout), jnp.float32, -scale, scale)
        w_neigh = jax.random.uniform(k2, (cin, cout), jnp.float32, -scale, scale)
        b = jax.random.uniform(k3, (1, cout), jnp.float32, -scale, scale)
        params.append((w_self, w_neigh, b))
    return params


def prepare_params_fused(params):
    """Uniform (2*HID, HID) stacked weights for layers 1..4; padded layer 5."""
    w14, b14 = [], []
    for w_self, w_neigh, b in params[:-1]:
        cin = w_self.shape[0]
        ws = jnp.zeros((HID, HID), jnp.float32).at[:cin].set(w_self)
        wn = jnp.zeros((HID, HID), jnp.float32).at[:cin].set(w_neigh)
        w14.append(jnp.concatenate([ws, wn], axis=0))        # (64, 32)
        b14.append(b)                                         # (1, 32)
    w14 = jnp.stack(w14)                                      # (4, 64, 32)
    b14 = jnp.stack(b14)                                      # (4, 1, 32)
    w_self5, w_neigh5, b5 = params[-1]
    cout = w_self5.shape[1]
    ws5 = jnp.zeros((HID, OUT_PAD), jnp.float32).at[:, :cout].set(w_self5)
    wn5 = jnp.zeros((HID, OUT_PAD), jnp.float32).at[:, :cout].set(w_neigh5)
    w5 = jnp.concatenate([ws5, wn5], axis=0)                  # (64, 128)
    b5p = jnp.zeros((1, OUT_PAD), jnp.float32).at[:, :cout].set(b5)
    return w14, b14, w5, b5p


def prepare_params_tiled(params):
    """[W_self; W_neigh] per layer; final layer padded to OUT_PAD lanes."""
    prepared = []
    for i, (w_self, w_neigh, b) in enumerate(params):
        w_cat = jnp.concatenate([w_self, w_neigh], axis=0)
        if i == len(params) - 1:
            pad = OUT_PAD - w_cat.shape[1]
            w_cat = jnp.pad(w_cat, ((0, 0), (0, pad)))
            b = jnp.pad(b, ((0, 0), (0, pad)))
        prepared.append((w_cat, b))
    return prepared


def sage_net_reference(a_f32, deg_inv, x0, params, *, bf16_activations):
    """Pure-JAX reference mirroring the kernels' bf16 aggregation precision."""
    x = x0
    n = len(params)
    for i, (w_self, w_neigh, b) in enumerate(params):
        if bf16_activations:
            x = x.astype(jnp.bfloat16).astype(jnp.float32)
        agg = jnp.dot(a_f32.astype(jnp.bfloat16), x.astype(jnp.bfloat16),
                      preferred_element_type=jnp.float32)
        h_neigh = agg * deg_inv
        out = x @ w_self + h_neigh @ w_neigh + b
        x = out if i == n - 1 else jnp.where(out >= 0, out, NEG_SLOPE * out)
    return x


# ----------------------------------------------------------------------------
# Demo
# ----------------------------------------------------------------------------
if __name__ == "__main__":
    key = jax.random.PRNGKey(0)
    k_feat, k_param, k_edge, k_feat2 = jax.random.split(key, 4)
    params = init_params(k_param)

    # ---- Path A: fused 5-layer kernel (small graph; A resident in VMEM) ----
    num_nodes = 8
    src = jnp.array([0, 1, 2, 3, 4, 5, 6, 7, 0, 2, 4, 6], dtype=jnp.int32)
    dst = jnp.array([1, 2, 3, 4, 5, 6, 7, 0, 4, 6, 0, 2], dtype=jnp.int32)
    n_pad = max(256, _round_up(num_nodes, 256))
    a_i8, deg_inv = build_graph_inputs(src, dst, num_nodes, n_pad)

    feats = jax.random.normal(k_feat, (num_nodes, 4), jnp.float32)
    x0_fused = jnp.zeros((n_pad, HID), jnp.float32).at[:num_nodes, :4].set(feats)

    w14, b14, w5, b5 = prepare_params_fused(params)
    out_pad = jax.jit(sage_net_fused)(a_i8, deg_inv, x0_fused, w14, b14, w5, b5)
    out_pad = jax.block_until_ready(out_pad)
    out = out_pad[:num_nodes, :LAYER_DIMS[-1][1]]

    x0_ref = jnp.zeros((n_pad, 4), jnp.float32).at[:num_nodes].set(feats)
    ref = sage_net_reference(a_i8.astype(jnp.float32), deg_inv, x0_ref, params,
                             bf16_activations=False)[:num_nodes, :LAYER_DIMS[-1][1]]
    assert out.shape == (num_nodes, 3)
    assert bool(jnp.all(jnp.isfinite(out)))
    assert bool(jnp.allclose(out, ref, atol=5e-2, rtol=5e-2))

    # ---- Path B: tiled per-layer kernel (larger graph, exercises the grid) ----
    num_nodes2, num_edges2 = 600, 6000
    ks, kd = jax.random.split(k_edge)
    src2 = jax.random.randint(ks, (num_edges2,), 0, num_nodes2, dtype=jnp.int32)
    dst2 = jax.random.randint(kd, (num_edges2,), 0, num_nodes2, dtype=jnp.int32)
    n_pad2, tm, tk = choose_tiling(num_nodes2)
    a2_i8, deg_inv2 = build_graph_inputs(src2, dst2, num_nodes2, n_pad2)

    feats2 = jax.random.normal(k_feat2, (num_nodes2, 4), jnp.float32)
    x0_tiled = jnp.zeros((n_pad2, 4), jnp.float32).at[:num_nodes2].set(feats2)

    prepared = prepare_params_tiled(params)
    tiled_fn = jax.jit(functools.partial(sage_net_tiled, tm=tm, tk=tk))
    out2_pad = jax.block_until_ready(tiled_fn(a2_i8, deg_inv2, x0_tiled, prepared))
    out2 = out2_pad[:num_nodes2, :LAYER_DIMS[-1][1]]

    ref2 = sage_net_reference(a2_i8.astype(jnp.float32), deg_inv2, x0_tiled, params,
                              bf16_activations=True)[:num_nodes2, :LAYER_DIMS[-1][1]]
    assert out2.shape == (num_nodes2, 3)
    assert bool(jnp.all(jnp.isfinite(out2)))
    assert bool(jnp.allclose(out2, ref2, atol=5e-2, rtol=5e-2))

    print("KERNEL_OK")
</pallas_src>

<mosaic_0001>
module attributes {stable_mosaic.version = 11 : i64} {
  func.func @fused_sage_kernel(%arg0: i32, %arg1: memref<256x256xi8, #tpu.memory_space<vmem>>, %arg2: memref<256x1xf32, #tpu.memory_space<vmem>>, %arg3: memref<256x32xf32, #tpu.memory_space<vmem>>, %arg4: memref<4x64x32xf32, #tpu.memory_space<vmem>>, %arg5: memref<4x1x32xf32, #tpu.memory_space<vmem>>, %arg6: memref<64x128xf32, #tpu.memory_space<vmem>>, %arg7: memref<1x128xf32, #tpu.memory_space<vmem>>, %arg8: memref<256x128xf32, #tpu.memory_space<vmem>>) attributes {dimension_semantics = [#tpu.dimension_semantics<arbitrary>], iteration_bounds = array<i64: 1>, scalar_prefetch = 0 : i64, scratch_operands = 0 : i64, tpu.core_type = #tpu.core_type<tc>, window_params = [{pipeline_mode = #tpu.pipeline_mode<synchronous>, transform_indices = @transform_0, window_bounds = array<i64: 256, 256>}, {pipeline_mode = #tpu.pipeline_mode<synchronous>, transform_indices = @transform_1, window_bounds = array<i64: 256, 1>}, {pipeline_mode = #tpu.pipeline_mode<synchronous>, transform_indices = @transform_2, window_bounds = array<i64: 256, 32>}, {pipeline_mode = #tpu.pipeline_mode<synchronous>, transform_indices = @transform_3, window_bounds = array<i64: 4, 64, 32>}, {pipeline_mode = #tpu.pipeline_mode<synchronous>, transform_indices = @transform_4, window_bounds = array<i64: 4, 1, 32>}, {pipeline_mode = #tpu.pipeline_mode<synchronous>, transform_indices = @transform_5, window_bounds = array<i64: 64, 128>}, {pipeline_mode = #tpu.pipeline_mode<synchronous>, transform_indices = @transform_6, window_bounds = array<i64: 1, 128>}, {pipeline_mode = #tpu.pipeline_mode<synchronous>, transform_indices = @transform_7, window_bounds = array<i64: 256, 128>}]} {
    %c0 = arith.constant 0 : index
    %c0_0 = arith.constant 0 : index
    %0 = vector.load %arg1[%c0, %c0_0] : memref<256x256xi8, #tpu.memory_space<vmem>>, vector<256x256xi8>
    %1 = arith.sitofp %0 : vector<256x256xi8> to vector<256x256xbf16>
    %c0_1 = arith.constant 0 : index
    %c0_2 = arith.constant 0 : index
    %2 = vector.load %arg2[%c0_1, %c0_2] : memref<256x1xf32, #tpu.memory_space<vmem>>, vector<256x1xf32>
    %c0_3 = arith.constant 0 : index
    %c0_4 = arith.constant 0 : index
    %3 = vector.load %arg3[%c0_3, %c0_4] : memref<256x32xf32, #tpu.memory_space<vmem>>, vector<256x32xf32>
    %c0_5 = arith.constant 0 : index
    %c0_6 = arith.constant 0 : index
    %c0_7 = arith.constant 0 : index
    %4 = vector.load %arg4[%c0_5, %c0_6, %c0_7] : memref<4x64x32xf32, #tpu.memory_space<vmem>>, vector<1x64x32xf32>
    %5 = vector.shape_cast %4 : vector<1x64x32xf32> to vector<64x32xf32>
    %c0_8 = arith.constant 0 : index
    %c0_9 = arith.constant 0 : index
    %c0_10 = arith.constant 0 : index
    %6 = vector.load %arg5[%c0_8, %c0_9, %c0_10] : memref<4x1x32xf32, #tpu.memory_space<vmem>>, vector<1x1x32xf32>
    %7 = vector.shape_cast %6 : vector<1x1x32xf32> to vector<1x32xf32>
    %8 = vector.extract_strided_slice %5 {offsets = [0, 0], sizes = [32, 32], strides = [1, 1]} : vector<64x32xf32> to vector<32x32xf32>
    %9 = vector.extract_strided_slice %5 {offsets = [32, 0], sizes = [32, 32], strides = [1, 1]} : vector<64x32xf32> to vector<32x32xf32>
    %10 = arith.truncf %3 : vector<256x32xf32> to vector<256x32xbf16>
    %cst = arith.constant dense<0.000000e+00> : vector<256x32xf32>
    %11 = tpu.matmul %1, %10, %cst {dimension_numbers = #tpu.dot_dimension_numbers<[1], [0], [0], [1], [0, 0, 1, 1], [], []>} : vector<256x256xbf16>, vector<256x32xbf16>, vector<256x32xf32> -> vector<256x32xf32>
    %12 = vector.broadcast %2 : vector<256x1xf32> to vector<256x32xf32>
    %13 = arith.mulf %11, %12 : vector<256x32xf32>
    %cst_11 = arith.constant dense<0.000000e+00> : vector<256x32xf32>
    %14 = tpu.matmul %3, %8, %cst_11 {dimension_numbers = #tpu.dot_dimension_numbers<[1], [0], [0], [1], [0, 0, 1, 1], [], []>} : vector<256x32xf32>, vector<32x32xf32>, vector<256x32xf32> -> vector<256x32xf32>
    %cst_12 = arith.constant dense<0.000000e+00> : vector<256x32xf32>
    %15 = tpu.matmul %13, %9, %cst_12 {dimension_numbers = #tpu.dot_dimension_numbers<[1], [0], [0], [1], [0, 0, 1, 1], [], []>} : vector<256x32xf32>, vector<32x32xf32>, vector<256x32xf32> -> vector<256x32xf32>
    %16 = arith.addf %14, %15 : vector<256x32xf32>
    %17 = vector.broadcast %7 : vector<1x32xf32> to vector<256x32xf32>
    %18 = arith.addf %16, %17 : vector<256x32xf32>
    %cst_13 = arith.constant 0.000000e+00 : f32
    %19 = vector.broadcast %cst_13 : f32 to vector<256x32xf32>
    %20 = arith.cmpf oge, %18, %19 : vector<256x32xf32>
    %cst_14 = arith.constant 0.00999999977 : f32
    %21 = vector.broadcast %cst_14 : f32 to vector<256x32xf32>
    %22 = arith.mulf %21, %18 : vector<256x32xf32>
    %23 = arith.select %20, %18, %22 : vector<256x32xi1>, vector<256x32xf32>
    %c1 = arith.constant 1 : index
    %c0_15 = arith.constant 0 : index
    %c0_16 = arith.constant 0 : index
    %24 = vector.load %arg4[%c1, %c0_15, %c0_16] : memref<4x64x32xf32, #tpu.memory_space<vmem>>, vector<1x64x32xf32>
    %25 = vector.shape_cast %24 : vector<1x64x32xf32> to vector<64x32xf32>
    %c1_17 = arith.constant 1 : index
    %c0_18 = arith.constant 0 : index
    %c0_19 = arith.constant 0 : index
    %26 = vector.load %arg5[%c1_17, %c0_18, %c0_19] : memref<4x1x32xf32, #tpu.memory_space<vmem>>, vector<1x1x32xf32>
    %27 = vector.shape_cast %26 : vector<1x1x32xf32> to vector<1x32xf32>
    %28 = vector.extract_strided_slice %25 {offsets = [0, 0], sizes = [32, 32], strides = [1, 1]} : vector<64x32xf32> to vector<32x32xf32>
    %29 = vector.extract_strided_slice %25 {offsets = [32, 0], sizes = [32, 32], strides = [1, 1]} : vector<64x32xf32> to vector<32x32xf32>
    %30 = arith.truncf %23 : vector<256x32xf32> to vector<256x32xbf16>
    %cst_20 = arith.constant dense<0.000000e+00> : vector<256x32xf32>
    %31 = tpu.matmul %1, %30, %cst_20 {dimension_numbers = #tpu.dot_dimension_numbers<[1], [0], [0], [1], [0, 0, 1, 1], [], []>} : vector<256x256xbf16>, vector<256x32xbf16>, vector<256x32xf32> -> vector<256x32xf32>
    %32 = vector.broadcast %2 : vector<256x1xf32> to vector<256x32xf32>
    %33 = arith.mulf %31, %32 : vector<256x32xf32>
    %cst_21 = arith.constant dense<0.000000e+00> : vector<256x32xf32>
    %34 = tpu.matmul %23, %28, %cst_21 {dimension_numbers = #tpu.dot_dimension_numbers<[1], [0], [0], [1], [0, 0, 1, 1], [], []>} : vector<256x32xf32>, vector<32x32xf32>, vector<256x32xf32> -> vector<256x32xf32>
    %cst_22 = arith.constant dense<0.000000e+00> : vector<256x32xf32>
    %35 = tpu.matmul %33, %29, %cst_22 {dimension_numbers = #tpu.dot_dimension_numbers<[1], [0], [0], [1], [0, 0, 1, 1], [], []>} : vector<256x32xf32>, vector<32x32xf32>, vector<256x32xf32> -> vector<256x32xf32>
    %36 = arith.addf %34, %35 : vector<256x32xf32>
    %37 = vector.broadcast %27 : vector<1x32xf32> to vector<256x32xf32>
    %38 = arith.addf %36, %37 : vector<256x32xf32>
    %cst_23 = arith.constant 0.000000e+00 : f32
    %39 = vector.broadcast %cst_23 : f32 to vector<256x32xf32>
    %40 = arith.cmpf oge, %38, %39 : vector<256x32xf32>
    %cst_24 = arith.constant 0.00999999977 : f32
    %41 = vector.broadcast %cst_24 : f32 to vector<256x32xf32>
    %42 = arith.mulf %41, %38 : vector<256x32xf32>
    %43 = arith.select %40, %38, %42 : vector<256x32xi1>, vector<256x32xf32>
    %c2 = arith.constant 2 : index
    %c0_25 = arith.constant 0 : index
    %c0_26 = arith.constant 0 : index
    %44 = vector.load %arg4[%c2, %c0_25, %c0_26] : memref<4x64x32xf32, #tpu.memory_space<vmem>>, vector<1x64x32xf32>
    %45 = vector.shape_cast %44 : vector<1x64x32xf32> to vector<64x32xf32>
    %c2_27 = arith.constant 2 : index
    %c0_28 = arith.constant 0 : index
    %c0_29 = arith.constant 0 : index
    %46 = vector.load %arg5[%c2_27, %c0_28, %c0_29] : memref<4x1x32xf32, #tpu.memory_space<vmem>>, vector<1x1x32xf32>
    %47 = vector.shape_cast %46 : vector<1x1x32xf32> to vector<1x32xf32>
    %48 = vector.extract_strided_slice %45 {offsets = [0, 0], sizes = [32, 32], strides = [1, 1]} : vector<64x32xf32> to vector<32x32xf32>
    %49 = vector.extract_strided_slice %45 {offsets = [32, 0], sizes = [32, 32], strides = [1, 1]} : vector<64x32xf32> to vector<32x32xf32>
    %50 = arith.truncf %43 : vector<256x32xf32> to vector<256x32xbf16>
    %cst_30 = arith.constant dense<0.000000e+00> : vector<256x32xf32>
    %51 = tpu.matmul %1, %50, %cst_30 {dimension_numbers = #tpu.dot_dimension_numbers<[1], [0], [0], [1], [0, 0, 1, 1], [], []>} : vector<256x256xbf16>, vector<256x32xbf16>, vector<256x32xf32> -> vector<256x32xf32>
    %52 = vector.broadcast %2 : vector<256x1xf32> to vector<256x32xf32>
    %53 = arith.mulf %51, %52 : vector<256x32xf32>
    %cst_31 = arith.constant dense<0.000000e+00> : vector<256x32xf32>
    %54 = tpu.matmul %43, %48, %cst_31 {dimension_numbers = #tpu.dot_dimension_numbers<[1], [0], [0], [1], [0, 0, 1, 1], [], []>} : vector<256x32xf32>, vector<32x32xf32>, vector<256x32xf32> -> vector<256x32xf32>
    %cst_32 = arith.constant dense<0.000000e+00> : vector<256x32xf32>
    %55 = tpu.matmul %53, %49, %cst_32 {dimension_numbers = #tpu.dot_dimension_numbers<[1], [0], [0], [1], [0, 0, 1, 1], [], []>} : vector<256x32xf32>, vector<32x32xf32>, vector<256x32xf32> -> vector<256x32xf32>
    %56 = arith.addf %54, %55 : vector<256x32xf32>
    %57 = vector.broadcast %47 : vector<1x32xf32> to vector<256x32xf32>
    %58 = arith.addf %56, %57 : vector<256x32xf32>
    %cst_33 = arith.constant 0.000000e+00 : f32
    %59 = vector.broadcast %cst_33 : f32 to vector<256x32xf32>
    %60 = arith.cmpf oge, %58, %59 : vector<256x32xf32>
    %cst_34 = arith.constant 0.00999999977 : f32
    %61 = vector.broadcast %cst_34 : f32 to vector<256x32xf32>
    %62 = arith.mulf %61, %58 : vector<256x32xf32>
    %63 = arith.select %60, %58, %62 : vector<256x32xi1>, vector<256x32xf32>
    %c3 = arith.constant 3 : index
    %c0_35 = arith.constant 0 : index
    %c0_36 = arith.constant 0 : index
    %64 = vector.load %arg4[%c3, %c0_35, %c0_36] : memref<4x64x32xf32, #tpu.memory_space<vmem>>, vector<1x64x32xf32>
    %65 = vector.shape_cast %64 : vector<1x64x32xf32> to vector<64x32xf32>
    %c3_37 = arith.constant 3 : index
    %c0_38 = arith.constant 0 : index
    %c0_39 = arith.constant 0 : index
    %66 = vector.load %arg5[%c3_37, %c0_38, %c0_39] : memref<4x1x32xf32, #tpu.memory_space<vmem>>, vector<1x1x32xf32>
    %67 = vector.shape_cast %66 : vector<1x1x32xf32> to vector<1x32xf32>
    %68 = vector.extract_strided_slice %65 {offsets = [0, 0], sizes = [32, 32], strides = [1, 1]} : vector<64x32xf32> to vector<32x32xf32>
    %69 = vector.extract_strided_slice %65 {offsets = [32, 0], sizes = [32, 32], strides = [1, 1]} : vector<64x32xf32> to vector<32x32xf32>
    %70 = arith.truncf %63 : vector<256x32xf32> to vector<256x32xbf16>
    %cst_40 = arith.constant dense<0.000000e+00> : vector<256x32xf32>
    %71 = tpu.matmul %1, %70, %cst_40 {dimension_numbers = #tpu.dot_dimension_numbers<[1], [0], [0], [1], [0, 0, 1, 1], [], []>} : vector<256x256xbf16>, vector<256x32xbf16>, vector<256x32xf32> -> vector<256x32xf32>
    %72 = vector.broadcast %2 : vector<256x1xf32> to vector<256x32xf32>
    %73 = arith.mulf %71, %72 : vector<256x32xf32>
    %cst_41 = arith.constant dense<0.000000e+00> : vector<256x32xf32>
    %74 = tpu.matmul %63, %68, %cst_41 {dimension_numbers = #tpu.dot_dimension_numbers<[1], [0], [0], [1], [0, 0, 1, 1], [], []>} : vector<256x32xf32>, vector<32x32xf32>, vector<256x32xf32> -> vector<256x32xf32>
    %cst_42 = arith.constant dense<0.000000e+00> : vector<256x32xf32>
    %75 = tpu.matmul %73, %69, %cst_42 {dimension_numbers = #tpu.dot_dimension_numbers<[1], [0], [0], [1], [0, 0, 1, 1], [], []>} : vector<256x32xf32>, vector<32x32xf32>, vector<256x32xf32> -> vector<256x32xf32>
    %76 = arith.addf %74, %75 : vector<256x32xf32>
    %77 = vector.broadcast %67 : vector<1x32xf32> to vector<256x32xf32>
    %78 = arith.addf %76, %77 : vector<256x32xf32>
    %cst_43 = arith.constant 0.000000e+00 : f32
    %79 = vector.broadcast %cst_43 : f32 to vector<256x32xf32>
    %80 = arith.cmpf oge, %78, %79 : vector<256x32xf32>
    %cst_44 = arith.constant 0.00999999977 : f32
    %81 = vector.broadcast %cst_44 : f32 to vector<256x32xf32>
    %82 = arith.mulf %81, %78 : vector<256x32xf32>
    %83 = arith.select %80, %78, %82 : vector<256x32xi1>, vector<256x32xf32>
    %c0_45 = arith.constant 0 : index
    %c0_46 = arith.constant 0 : index
    %84 = vector.load %arg6[%c0_45, %c0_46] : memref<64x128xf32, #tpu.memory_space<vmem>>, vector<64x128xf32>
    %c0_47 = arith.constant 0 : index
    %c0_48 = arith.constant 0 : index
    %85 = vector.load %arg7[%c0_47, %c0_48] : memref<1x128xf32, #tpu.memory_space<vmem>>, vector<1x128xf32>
    %86 = vector.extract_strided_slice %84 {offsets = [0, 0], sizes = [32, 128], strides = [1, 1]} : vector<64x128xf32> to vector<32x128xf32>
    %87 = vector.extract_strided_slice %84 {offsets = [32, 0], sizes = [32, 128], strides = [1, 1]} : vector<64x128xf32> to vector<32x128xf32>
    %88 = arith.truncf %83 : vector<256x32xf32> to vector<256x32xbf16>
    %cst_49 = arith.constant dense<0.000000e+00> : vector<256x32xf32>
    %89 = tpu.matmul %1, %88, %cst_49 {dimension_numbers = #tpu.dot_dimension_numbers<[1], [0], [0], [1], [0, 0, 1, 1], [], []>} : vector<256x256xbf16>, vector<256x32xbf16>, vector<256x32xf32> -> vector<256x32xf32>
    %90 = vector.broadcast %2 : vector<256x1xf32> to vector<256x32xf32>
    %91 = arith.mulf %89, %90 : vector<256x32xf32>
    %cst_50 = arith.constant dense<0.000000e+00> : vector<256x128xf32>
    %92 = tpu.matmul %83, %86, %cst_50 {dimension_numbers = #tpu.dot_dimension_numbers<[1], [0], [0], [1], [0, 0, 1, 1], [], []>} : vector<256x32xf32>, vector<32x128xf32>, vector<256x128xf32> -> vector<256x128xf32>
    %cst_51 = arith.constant dense<0.000000e+00> : vector<256x128xf32>
    %93 = tpu.matmul %91, %87, %cst_51 {dimension_numbers = #tpu.dot_dimension_numbers<[1], [0], [0], [1], [0, 0, 1, 1], [], []>} : vector<256x32xf32>, vector<32x128xf32>, vector<256x128xf32> -> vector<256x128xf32>
    %94 = arith.addf %92, %93 : vector<256x128xf32>
    %95 = vector.broadcast %85 : vector<1x128xf32> to vector<256x128xf32>
    %96 = arith.addf %94, %95 : vector<256x128xf32>
    %c0_52 = arith.constant 0 : index
    %c0_53 = arith.constant 0 : index
    %97 = vector.load %arg8[%c0_52, %c0_53] : memref<256x128xf32, #tpu.memory_space<vmem>>, vector<256x128xf32>
    tpu.vector_store %arg8[%c0_52, %c0_53], %96 {strides = array<i32>} : memref<256x128xf32, #tpu.memory_space<vmem>>, vector<256x128xf32>,
    return
  }
  func.func @transform_0(%arg0: i32) -> (i32, i32) {
    %c0_i32 = arith.constant 0 : i32
    %c0_i32_0 = arith.constant 0 : i32
    %c0_i32_1 = arith.constant 0 : i32
    return %c0_i32, %c0_i32_0 : i32, i32
  }
  func.func @transform_1(%arg0: i32) -> (i32, i32) {
    %c0_i32 = arith.constant 0 : i32
    %c0_i32_0 = arith.constant 0 : i32
    %c0_i32_1 = arith.constant 0 : i32
    return %c0_i32, %c0_i32_0 : i32, i32
  }
  func.func @transform_2(%arg0: i32) -> (i32, i32) {
    %c0_i32 = arith.constant 0 : i32
    %c0_i32_0 = arith.constant 0 : i32
    %c0_i32_1 = arith.constant 0 : i32
    return %c0_i32, %c0_i32_0 : i32, i32
  }
  func.func @transform_3(%arg0: i32) -> (i32, i32, i32) {
    %c0_i32 = arith.constant 0 : i32
    %c0_i32_0 = arith.constant 0 : i32
    %c0_i32_1 = arith.constant 0 : i32
    %c0_i32_2 = arith.constant 0 : i32
    return %c0_i32, %c0_i32_0, %c0_i32_1 : i32, i32, i32
  }
  func.func @transform_4(%arg0: i32) -> (i32, i32, i32) {
    %c0_i32 = arith.constant 0 : i32
    %c0_i32_0 = arith.constant 0 : i32
    %c0_i32_1 = arith.constant 0 : i32
    %c0_i32_2 = arith.constant 0 : i32
    return %c0_i32, %c0_i32_0, %c0_i32_1 : i32, i32, i32
  }
  func.func @transform_5(%arg0: i32) -> (i32, i32) {
    %c0_i32 = arith.constant 0 : i32
    %c0_i32_0 = arith.constant 0 : i32
    %c0_i32_1 = arith.constant 0 : i32
    return %c0_i32, %c0_i32_0 : i32, i32
  }
  func.func @transform_6(%arg0: i32) -> (i32, i32) {
    %c0_i32 = arith.constant 0 : i32
    %c0_i32_0 = arith.constant 0 : i32
    %c0_i32_1 = arith.constant 0 : i32
    return %c0_i32, %c0_i32_0 : i32, i32
  }
  func.func @transform_7(%arg0: i32) -> (i32, i32) {
    %c0_i32 = arith.constant 0 : i32
    %c0_i32_0 = arith.constant 0 : i32
    %c0_i32_1 = arith.constant 0 : i32
    return %c0_i32, %c0_i32_0 : i32, i32
  }
}

</mosaic_0001>

<llo_original>
// kernel: sage_net_fused.1
$region0: #{sage_net_fused.1}
  #allocation0 [shape = 'u32[]', space=smem, size = 0x4, offset = 0x4, fixed_abs, tag = 'smem constant byte address 0x4 - core index']
  #allocation1 [shape = 'u32[144,128]{1,0:T(1,128)}', space=vmem, size = 0x12000, scoped, tag = 'internal scratch']
  %s0 = inlined_call_operand.vmem [shape: s8[256,256], index: 0, kind: input, shape index: {}]
  %s1 = inlined_call_operand.vmem [shape: f32[256,1], index: 1, kind: input, shape index: {}]
  %s2 = inlined_call_operand.vmem [shape: f32[256,32], index: 2, kind: input, shape index: {}]
  %s3 = inlined_call_operand.vmem [shape: f32[4,64,32], index: 3, kind: input, shape index: {}]
  %s4 = inlined_call_operand.vmem [shape: f32[4,1,32], index: 4, kind: input, shape index: {}]
  %s5 = inlined_call_operand.vmem [shape: f32[64,128], index: 5, kind: input, shape index: {}]
  %s6 = inlined_call_operand.vmem [shape: f32[1,128], index: 6, kind: input, shape index: {}]
  %s7 = inlined_call_operand.hbm [shape: f32[256,128], index: 7, kind: output, shape index: {}]
  %s8 = sld [smem:[#allocation0]]
  $region38: #{sage_net_fused.1} parent=0
    _
  %s10 = ssub.s32 1, %s8
  %s11 = scalar_select 0, %s10, %s8
  $region1: #{sage_net_fused.1} parent=0
    #allocation2 [shape = 'u8[131072]{0}', space=vmem, size = 0x20000, scoped, tag = 'output window, operand 0, single buffered']
    #allocation3 [shape = 's32[1]{0}', space=sflag, size = 0x4, scoped, tag = 'scoped memory for sage_net_fused.1']
    %12 = vsyncpa [#allocation3], 0
    // Predicated region
    $region2: #{sage_net_fused.1} parent=1 // pred_check
      _
    $region3: #{sage_net_fused.1} parent=1 // pred_check_branch
      %14 = sbr.rel (0) target = $region5
    $region4: #{sage_net_fused.1} parent=1 // pred_region
      _
    $region5: #{sage_net_fused.1} parent=1 // pred_fallthru
      _
    // Predicated region
    $region6: #{sage_net_fused.1} parent=1 // pred_check
      _
    $region7: #{sage_net_fused.1} parent=1 // pred_check_branch
      %16 = sbr.rel (0) target = $region9
    $region8: #{sage_net_fused.1} parent=1 // pred_region
      _
    $region9: #{sage_net_fused.1} parent=1 // pred_fallthru
      _
    // Predicated region
    $region10: #{sage_net_fused.1} parent=1 // pred_check
      _
    $region11: #{sage_net_fused.1} parent=1 // pred_check_branch
      %18 = sbr.rel (0) target = $region13
    $region12: #{sage_net_fused.1} parent=1 // pred_region
      _
    $region13: #{sage_net_fused.1} parent=1 // pred_fallthru
      _
    // Predicated region
    $region14: #{sage_net_fused.1} parent=1 // pred_check
      _
    $region15: #{sage_net_fused.1} parent=1 // pred_check_branch
      %20 = sbr.rel (0) target = $region17
    $region16: #{sage_net_fused.1} parent=1 // pred_region
      _
    $region17: #{sage_net_fused.1} parent=1 // pred_fallthru
      _
    // Predicated region
    $region18: #{sage_net_fused.1} parent=1 // pred_check
      _
    $region19: #{sage_net_fused.1} parent=1 // pred_check_branch
      %22 = sbr.rel (0) target = $region21
    $region20: #{sage_net_fused.1} parent=1 // pred_region
      _
    $region21: #{sage_net_fused.1} parent=1 // pred_fallthru
      _
    // Predicated region
    $region22: #{sage_net_fused.1} parent=1 // pred_check
      _
    $region23: #{sage_net_fused.1} parent=1 // pred_check_branch
      %24 = sbr.rel (0) target = $region25
    $region24: #{sage_net_fused.1} parent=1 // pred_region
      _
    $region25: #{sage_net_fused.1} parent=1 // pred_fallthru
      _
    // Predicated region
    $region26: #{sage_net_fused.1} parent=1 // pred_check
      _
    $region27: #{sage_net_fused.1} parent=1 // pred_check_branch
      %26 = sbr.rel (0) target = $region29
    $region28: #{sage_net_fused.1} parent=1 // pred_region
      _
    $region29: #{sage_net_fused.1} parent=1 // pred_fallthru
      _
    %v28 = vld [vmem:[%s0] sm:$0xff]
    %v29 = vld [vmem:[%s0 + $0x8] sm:$0xff]
    %v30 = vld [vmem:[%s0 + $0x10] sm:$0xff]
    %v31 = vld [vmem:[%s0 + $0x18] sm:$0xff]
    %v32 = vld [vmem:[%s0 + $0x20] sm:$0xff]
    %v33 = vld [vmem:[%s0 + $0x28] sm:$0xff]
    %v34 = vld [vmem:[%s0 + $0x30] sm:$0xff]
    %v35 = vld [vmem:[%s0 + $0x38] sm:$0xff]
    %v36 = vld [vmem:[%s0 + $0x40] sm:$0xff]
    %v37 = vld [vmem:[%s0 + $0x48] sm:$0xff]
    %v38 = vld [vmem:[%s0 + $0x50] sm:$0xff]
    %v39 = vld [vmem:[%s0 + $0x58] sm:$0xff]
    %v40 = vld [vmem:[%s0 + $0x60] sm:$0xff]
    %v41 = vld [vmem:[%s0 + $0x68] sm:$0xff]
    %v42 = vld [vmem:[%s0 + $0x70] sm:$0xff]
    %v43 = vld [vmem:[%s0 + $0x78] sm:$0xff]
    %v44 = vunpack.c.l.s8.bf16 %v28
    %v45 = vunpack.c.l.s8.bf16 %v29
    %v46 = vunpack.c.h.s8.bf16 %v28
    %v47 = vunpack.c.h.s8.bf16 %v29
    %v48 = vunpack.c.l.s8.bf16 %v30
    %v49 = vunpack.c.l.s8.bf16 %v31
    %v50 = vunpack.c.h.s8.bf16 %v30
    %v51 = vunpack.c.h.s8.bf16 %v31
    %v52 = vunpack.c.l.s8.bf16 %v32
    %v53 = vunpack.c.l.s8.bf16 %v33
    %v54 = vunpack.c.h.s8.bf16 %v32
    %v55 = vunpack.c.h.s8.bf16 %v33
    %v56 = vunpack.c.l.s8.bf16 %v34
    %v57 = vunpack.c.l.s8.bf16 %v35
    %v58 = vunpack.c.h.s8.bf16 %v34
    %v59 = vunpack.c.h.s8.bf16 %v35
    %v60 = vunpack.c.l.s8.bf16 %v36
    %v61 = vunpack.c.l.s8.bf16 %v37
    %v62 = vunpack.c.h.s8.bf16 %v36
    %v63 = vunpack.c.h.s8.bf16 %v37
    %v64 = vunpack.c.l.s8.bf16 %v38
    %v65 = vunpack.c.l.s8.bf16 %v39
    %v66 = vunpack.c.h.s8.bf16 %v38
    %v67 = vunpack.c.h.s8.bf16 %v39
    %v68 = vunpack.c.l.s8.bf16 %v40
    %v69 = vunpack.c.l.s8.bf16 %v41
    %v70 = vunpack.c.h.s8.bf16 %v40
    %v71 = vunpack.c.h.s8.bf16 %v41
    %v72 = vunpack.c.l.s8.bf16 %v42
    %v73 = vunpack.c.l.s8.bf16 %v43
    %v74 = vunpack.c.h.s8.bf16 %v42
    %v75 = vunpack.c.h.s8.bf16 %v43
    %v76 = vld [vmem:[%s1] sm:$0xff]
    %v77 = vld [vmem:[%s1 + $0x8] sm:$0xff]
    %v78 = vld [vmem:[%s1 + $0x10] sm:$0xff]
    %v79 = vld [vmem:[%s1 + $0x18] sm:$0xff]
    %v80 = vld [vmem:[%s1 + $0x20] sm:$0xff]
    %v81 = vld [vmem:[%s1 + $0x28] sm:$0xff]
    %v82 = vld [vmem:[%s1 + $0x30] sm:$0xff]
    %v83 = vld [vmem:[%s1 + $0x38] sm:$0xff]
    %v84 = vld [vmem:[%s1 + $0x40] sm:$0xff]
    %v85 = vld [vmem:[%s1 + $0x48] sm:$0xff]
    %v86 = vld [vmem:[%s1 + $0x50] sm:$0xff]
    %v87 = vld [vmem:[%s1 + $0x58] sm:$0xff]
    %v88 = vld [vmem:[%s1 + $0x60] sm:$0xff]
    %v89 = vld [vmem:[%s1 + $0x68] sm:$0xff]
    %v90 = vld [vmem:[%s1 + $0x70] sm:$0xff]
    %v91 = vld [vmem:[%s1 + $0x78] sm:$0xff]
    %v92 = vld [vmem:[%s1 + $0x80] sm:$0xff]
    %v93 = vld [vmem:[%s1 + $0x88] sm:$0xff]
    %v94 = vld [vmem:[%s1 + $0x90] sm:$0xff]
    %v95 = vld [vmem:[%s1 + $0x98] sm:$0xff]
    %v96 = vld [vmem:[%s1 + $0xa0] sm:$0xff]
    %v97 = vld [vmem:[%s1 + $0xa8] sm:$0xff]
    %v98 = vld [vmem:[%s1 + $0xb0] sm:$0xff]
    %v99 = vld [vmem:[%s1 + $0xb8] sm:$0xff]
    %v100 = vld [vmem:[%s1 + $0xc0] sm:$0xff]
    %v101 = vld [vmem:[%s1 + $0xc8] sm:$0xff]
    %v102 = vld [vmem:[%s1 + $0xd0] sm:$0xff]
    %v103 = vld [vmem:[%s1 + $0xd8] sm:$0xff]
    %v104 = vld [vmem:[%s1 + $0xe0] sm:$0xff]
    %v105 = vld [vmem:[%s1 + $0xe8] sm:$0xff]
    %v106 = vld [vmem:[%s1 + $0xf0] sm:$0xff]
    %v107 = vld [vmem:[%s1 + $0xf8] sm:$0xff]
    %v108 = vld [vmem:[%s2] sm:$0xff]
    %v109 = vld [vmem:[%s2 + $0x8] sm:$0xff]
    %v110 = vld [vmem:[%s2 + $0x10] sm:$0xff]
    %v111 = vld [vmem:[%s2 + $0x18] sm:$0xff]
    %v112 = vld [vmem:[%s2 + $0x20] sm:$0xff]
    %v113 = vld [vmem:[%s2 + $0x28] sm:$0xff]
    %v114 = vld [vmem:[%s2 + $0x30] sm:$0xff]
    %v115 = vld [vmem:[%s2 + $0x38] sm:$0xff]
    %v116 = vld [vmem:[%s2 + $0x40] sm:$0xff]
    %v117 = vld [vmem:[%s2 + $0x48] sm:$0xff]
    %v118 = vld [vmem:[%s2 + $0x50] sm:$0xff]
    %v119 = vld [vmem:[%s2 + $0x58] sm:$0xff]
    %v120 = vld [vmem:[%s2 + $0x60] sm:$0xff]
    %v121 = vld [vmem:[%s2 + $0x68] sm:$0xff]
    %v122 = vld [vmem:[%s2 + $0x70] sm:$0xff]
    %v123 = vld [vmem:[%s2 + $0x78] sm:$0xff]
    %v124 = vld [vmem:[%s2 + $0x80] sm:$0xff]
    %v125 = vld [vmem:[%s2 + $0x88] sm:$0xff]
    %v126 = vld [vmem:[%s2 + $0x90] sm:$0xff]
    %v127 = vld [vmem:[%s2 + $0x98] sm:$0xff]
    %v128 = vld [vmem:[%s2 + $0xa0] sm:$0xff]
    %v129 = vld [vmem:[%s2 + $0xa8] sm:$0xff]
    %v130 = vld [vmem:[%s2 + $0xb0] sm:$0xff]
    %v131 = vld [vmem:[%s2 + $0xb8] sm:$0xff]
    %v132 = vld [vmem:[%s2 + $0xc0] sm:$0xff]
    %v133 = vld [vmem:[%s2 + $0xc8] sm:$0xff]
    %v134 = vld [vmem:[%s2 + $0xd0] sm:$0xff]
    %v135 = vld [vmem:[%s2 + $0xd8] sm:$0xff]
    %v136 = vld [vmem:[%s2 + $0xe0] sm:$0xff]
    %v137 = vld [vmem:[%s2 + $0xe8] sm:$0xff]
    %v138 = vld [vmem:[%s2 + $0xf0] sm:$0xff]
    %v139 = vld [vmem:[%s2 + $0xf8] sm:$0xff]
    %v140 = vld [vmem:[%s3] sm:$0xff]
    %v141 = vld [vmem:[%s3 + $0x8] sm:$0xff]
    %v142 = vld [vmem:[%s3 + $0x10] sm:$0xff]
    %v143 = vld [vmem:[%s3 + $0x18] sm:$0xff]
    %v144 = vld [vmem:[%s3 + $0x20] sm:$0xff]
    %v145 = vld [vmem:[%s3 + $0x28] sm:$0xff]
    %v146 = vld [vmem:[%s3 + $0x30] sm:$0xff]
    %v147 = vld [vmem:[%s3 + $0x38] sm:$0xff]
    %v148 = vld [vmem:[%s4] sm:$0x1]
    %v149 = vpack.c.bf16 %v109, %v108
    %v150 = vpack.c.bf16 %v111, %v110
    %v151 = vpack.c.bf16 %v113, %v112
    %v152 = vpack.c.bf16 %v115, %v114
    %v153 = vpack.c.bf16 %v117, %v116
    %v154 = vpack.c.bf16 %v119, %v118
    %v155 = vpack.c.bf16 %v121, %v120
    %v156 = vpack.c.bf16 %v123, %v122
    %v157 = vpack.c.bf16 %v125, %v124
    %v158 = vpack.c.bf16 %v127, %v126
    %v159 = vpack.c.bf16 %v129, %v128
    %v160 = vpack.c.bf16 %v131, %v130
    %v161 = vpack.c.bf16 %v133, %v132
    %v162 = vpack.c.bf16 %v135, %v134
    %v163 = vpack.c.bf16 %v137, %v136
    %v164 = vpack.c.bf16 %v139, %v138
    %165 = vmatprep.subr.bf16.mxu0 0
    %166 = vmatpush1.bf16.msra.mxu0 %v149
    %167 = vmatprep.subr.bf16.mxu0 0
    %168 = vmatpush1.bf16.msra.mxu0 %v150
    %169 = vmatprep.subr.bf16.mxu0 0
    %170 = vmatpush1.bf16.msra.mxu0 %v151
    %171 = vmatprep.subr.bf16.mxu0 0
    %172 = vmatpush1.bf16.msra.mxu0 %v152
    %173 = vmatprep.subr.bf16.mxu0 0
    %174 = vmatpush1.bf16.msra.mxu0 %v153
    %175 = vmatprep.subr.bf16.mxu0 0
    %176 = vmatpush1.bf16.msra.mxu0 %v154
    %177 = vmatprep.subr.bf16.mxu0 0
    %178 = vmatpush1.bf16.msra.mxu0 %v155
    %179 = vmatprep.subr.bf16.mxu0 0
    %180 = vmatpush1.bf16.msra.mxu0 %v156
    %181 = vmatprep.subr.bf16.mxu0 0
    %182 = vmatpush1.bf16.msra.mxu0 %v157
    %183 = vmatprep.subr.bf16.mxu0 0
    %184 = vmatpush1.bf16.msra.mxu0 %v158
    %185 = vmatprep.subr.bf16.mxu0 0
    %186 = vmatpush1.bf16.msra.mxu0 %v159
    %187 = vmatprep.subr.bf16.mxu0 0
    %188 = vmatpush1.bf16.msra.mxu0 %v160
    %189 = vmatprep.subr.bf16.mxu0 0
    %190 = vmatpush1.bf16.msra.mxu0 %v161
    %191 = vmatprep.subr.bf16.mxu0 0
    %192 = vmatpush1.bf16.msra.mxu0 %v162
    %193 = vmatprep.subr.bf16.mxu0 0
    %194 = vmatpush1.bf16.msra.mxu0 %v163
    %195 = vmatprep.subr.bf16.mxu0 0
    %196 = vmatpush1.bf16.msra.mxu0 %v164
    %197 = vmatprep.mubr.bf16.mxu0 %v45
    %198 = vmatmul.mubr.bf16.gmra.mrb[0].mxu0 %v44
    %v199 = vpop.f32.mrb[0].mxu0
    %v200 = vadd.f32 0.0, %v199
    %v201 = vpop.f32.mrb[0].mxu0
    %v202 = vpop.f32.mrb[0].mxu0
    %v203 = vadd.f32 0.0, %v202
    %v204 = vpop.f32.mrb[0].mxu0
    %205 = vmatprep.mubr.bf16.mxu0 %v47
    %206 = vmatmul.mubr.bf16.gmra.mrb[0].mxu0 %v46
    %v207 = vpop.f32.mrb[0].mxu0
    %v208 = vadd.f32 0.0, %v207
    %v209 = vpop.f32.mrb[0].mxu0
    %v210 = vpop.f32.mrb[0].mxu0
    %v211 = vadd.f32 0.0, %v210
    %v212 = vpop.f32.mrb[0].mxu0
    %213 = vmatprep.mubr.bf16.mxu0 %v49
    %214 = vmatmul.mubr.bf16.gmra.mrb[0].mxu0 %v48
    %v215 = vpop.f32.mrb[0].mxu0
    %v216 = vadd.f32 0.0, %v215
    %v217 = vpop.f32.mrb[0].mxu0
    %v218 = vpop.f32.mrb[0].mxu0
    %v219 = vadd.f32 0.0, %v218
    %v220 = vpop.f32.mrb[0].mxu0
    %221 = vmatprep.mubr.bf16.mxu0 %v51
    %222 = vmatmul.mubr.bf16.gmra.mrb[0].mxu0 %v50
    %v223 = vpop.f32.mrb[0].mxu0
    %v224 = vadd.f32 0.0, %v223
    %v225 = vpop.f32.mrb[0].mxu0
    %v226 = vpop.f32.mrb[0].mxu0
    %v227 = vadd.f32 0.0, %v226
    %v228 = vpop.f32.mrb[0].mxu0
    %229 = vmatprep.mubr.bf16.mxu0 %v53
    %230 = vmatmul.mubr.bf16.gmra.mrb[0].mxu0 %v52
    %v231 = vpop.f32.mrb[0].mxu0
    %v232 = vadd.f32 0.0, %v231
    %v233 = vpop.f32.mrb[0].mxu0
    %v234 = vpop.f32.mrb[0].mxu0
    %v235 = vadd.f32 0.0, %v234
    %v236 = vpop.f32.mrb[0].mxu0
    %237 = vmatprep.mubr.bf16.mxu0 %v55
    %238 = vmatmul.mubr.bf16.gmra.mrb[0].mxu0 %v54
    %v239 = vpop.f32.mrb[0].mxu0
    %v240 = vadd.f32 0.0, %v239
    %v241 = vpop.f32.mrb[0].mxu0
    %v242 = vpop.f32.mrb[0].mxu0
    %v243 = vadd.f32 0.0, %v242
    %v244 = vpop.f32.mrb[0].mxu0
    %245 = vmatprep.mubr.bf16.mxu0 %v57
    %246 = vmatmul.mubr.bf16.gmra.mrb[0].mxu0 %v56
    %v247 = vpop.f32.mrb[0].mxu0
    %v248 = vadd.f32 0.0, %v247
    %v249 = vpop.f32.mrb[0].mxu0
    %v250 = vpop.f32.mrb[0].mxu0
    %v251 = vadd.f32 0.0, %v250
    %v252 = vpop.f32.mrb[0].mxu0
    %253 = vmatprep.mubr.bf16.mxu0 %v59
    %254 = vmatmul.mubr.bf16.gmra.mrb[0].mxu0 %v58
    %v255 = vpop.f32.mrb[0].mxu0
    %v256 = vadd.f32 0.0, %v255
    %v257 = vpop.f32.mrb[0].mxu0
    %v258 = vpop.f32.mrb[0].mxu0
    %v259 = vadd.f32 0.0, %v258
    %v260 = vpop.f32.mrb[0].mxu0
    %261 = vmatprep.mubr.bf16.mxu0 %v61
    %262 = vmatmul.mubr.bf16.gmra.mrb[0].mxu0 %v60
    %v263 = vpop.f32.mrb[0].mxu0
    %v264 = vadd.f32 0.0, %v263
    %v265 = vpop.f32.mrb[0].mxu0
    %v266 = vpop.f32.mrb[0].mxu0
    %v267 = vadd.f32 0.0, %v266
    %v268 = vpop.f32.mrb[0].mxu0
    %269 = vmatprep.mubr.bf16.mxu0 %v63
    %270 = vmatmul.mubr.bf16.gmra.mrb[0].mxu0 %v62
    %v271 = vpop.f32.mrb[0].mxu0
    %v272 = vadd.f32 0.0, %v271
    %v273 = vpop.f32.mrb[0].mxu0
    %v274 = vpop.f32.mrb[0].mxu0
    %v275 = vadd.f32 0.0, %v274
    %v276 = vpop.f32.mrb[0].mxu0
    %277 = vmatprep.mubr.bf16.mxu0 %v65
    %278 = vmatmul.mubr.bf16.gmra.mrb[0].mxu0 %v64
    %v279 = vpop.f32.mrb[0].mxu0
    %v280 = vadd.f32 0.0, %v279
    %v281 = vpop.f32.mrb[0].mxu0
    %v282 = vpop.f32.mrb[0].mxu0
    %v283 = vadd.f32 0.0, %v282
    %v284 = vpop.f32.mrb[0].mxu0
    %285 = vmatprep.mubr.bf16.mxu0 %v67
    %286 = vmatmul.mubr.bf16.gmra.mrb[0].mxu0 %v66
    %v287 = vpop.f32.mrb[0].mxu0
    %v288 = vadd.f32 0.0, %v287
    %v289 = vpop.f32.mrb[0].mxu0
    %v290 = vpop.f32.mrb[0].mxu0
    %v291 = vadd.f32 0.0, %v290
    %v292 = vpop.f32.mrb[0].mxu0
    %293 = vmatprep.mubr.bf16.mxu0 %v69
    %294 = vmatmul.mubr.bf16.gmra.mrb[0].mxu0 %v68
    %v295 = vpop.f32.mrb[0].mxu0
    %v296 = vadd.f32 0.0, %v295
    %v297 = vpop.f32.mrb[0].mxu0
    %v298 = vpop.f32.mrb[0].mxu0
    %v299 = vadd.f32 0.0, %v298
    %v300 = vpop.f32.mrb[0].mxu0
    %301 = vmatprep.mubr.bf16.mxu0 %v71
    %302 = vmatmul.mubr.bf16.gmra.mrb[0].mxu0 %v70
    %v303 = vpop.f32.mrb[0].mxu0
    %v304 = vadd.f32 0.0, %v303
    %v305 = vpop.f32.mrb[0].mxu0
    %v306 = vpop.f32.mrb[0].mxu0
    %v307 = vadd.f32 0.0, %v306
    %v308 = vpop.f32.mrb[0].mxu0
    %309 = vmatprep.mubr.bf16.mxu0 %v73
    %310 = vmatmul.mubr.bf16.gmra.mrb[0].mxu0 %v72
    %v311 = vpop.f32.mrb[0].mxu0
    %v312 = vadd.f32 0.0, %v311
    %v313 = vpop.f32.mrb[0].mxu0
    %v314 = vpop.f32.mrb[0].mxu0
    %v315 = vadd.f32 0.0, %v314
    %v316 = vpop.f32.mrb[0].mxu0
    %317 = vmatprep.mubr.bf16.mxu0 %v75
    %318 = vmatmul.mubr.bf16.gmra.mrb[0].mxu0 %v74
    %v319 = vpop.f32.mrb[0].mxu0
    %v320 = vadd.f32 0.0, %v319
    %v321 = vpop.f32.mrb[0].mxu0
    %v322 = vpop.f32.mrb[0].mxu0
    %v323 = vadd.f32 0.0, %v322
    %v324 = vpop.f32.mrb[0].mxu0
    %325 = vdwg.mxu0
    %327 = vset.pattern.permute.xlu0 0
    %328 = vperm.xlu0 %327, %v76
    %v329 = vpop.permute.xlu0 %328
    %332 = vset.pattern.permute.xlu0 0
    %333 = vperm.xlu0 %332, %v77
    %v334 = vpop.permute.xlu0 %333
    %337 = vset.pattern.permute.xlu0 0
    %338 = vperm.xlu0 %337, %v78
    %v339 = vpop.permute.xlu0 %338
    %342 = vset.pattern.permute.xlu0 0
    %343 = vperm.xlu0 %342, %v79
    %v344 = vpop.permute.xlu0 %343
    %347 = vset.pattern.permute.xlu0 0
    %348 = vperm.xlu0 %347, %v80
    %v349 = vpop.permute.xlu0 %348
    %352 = vset.pattern.permute.xlu0 0
    %353 = vperm.xlu0 %352, %v81
    %v354 = vpop.permute.xlu0 %353
    %357 = vset.pattern.permute.xlu0 0
    %358 = vperm.xlu0 %357, %v82
    %v359 = vpop.permute.xlu0 %358
    %362 = vset.pattern.permute.xlu0 0
    %363 = vperm.xlu0 %362, %v83
    %v364 = vpop.permute.xlu0 %363
    %367 = vset.pattern.permute.xlu0 0
    %368 = vperm.xlu0 %367, %v84
    %v369 = vpop.permute.xlu0 %368
    %372 = vset.pattern.permute.xlu0 0
    %373 = vperm.xlu0 %372, %v85
    %v374 = vpop.permute.xlu0 %373
    %377 = vset.pattern.permute.xlu0 0
    %378 = vperm.xlu0 %377, %v86
    %v379 = vpop.permute.xlu0 %378
    %382 = vset.pattern.permute.xlu0 0
    %383 = vperm.xlu0 %382, %v87
    %v384 = vpop.permute.xlu0 %383
    %387 = vset.pattern.permute.xlu0 0
    %388 = vperm.xlu0 %387, %v88
    %v389 = vpop.permute.xlu0 %388
    %392 = vset.pattern.permute.xlu0 0
    %393 = vperm.xlu0 %392, %v89
    %v394 = vpop.permute.xlu0 %393
    %397 = vset.pattern.permute.xlu0 0
    %398 = vperm.xlu0 %397, %v90
    %v399 = vpop.permute.xlu0 %398
    %402 = vset.pattern.permute.xlu0 0
    %403 = vperm.xlu0 %402, %v91
    %v404 = vpop.permute.xlu0 %403
    %407 = vset.pattern.permute.xlu0 0
    %408 = vperm.xlu0 %407, %v92
    %v409 = vpop.permute.xlu0 %408
    %412 = vset.pattern.permute.xlu0 0
    %413 = vperm.xlu0 %412, %v93
    %v414 = vpop.permute.xlu0 %413
    %417 = vset.pattern.permute.xlu0 0
    %418 = vperm.xlu0 %417, %v94
    %v419 = vpop.permute.xlu0 %418
    %422 = vset.pattern.permute.xlu0 0
    %423 = vperm.xlu0 %422, %v95
    %v424 = vpop.permute.xlu0 %423
    %427 = vset.pattern.permute.xlu0 0
    %428 = vperm.xlu0 %427, %v96
    %v429 = vpop.permute.xlu0 %428
    %432 = vset.pattern.permute.xlu0 0
    %433 = vperm.xlu0 %432, %v97
    %v434 = vpop.permute.xlu0 %433
    %437 = vset.pattern.permute.xlu0 0
    %438 = vperm.xlu0 %437, %v98
    %v439 = vpop.permute.xlu0 %438
    %442 = vset.pattern.permute.xlu0 0
    %443 = vperm.xlu0 %442, %v99
    %v444 = vpop.permute.xlu0 %443
    %447 = vset.pattern.permute.xlu0 0
    %448 = vperm.xlu0 %447, %v100
    %v449 = vpop.permute.xlu0 %448
    %452 = vset.pattern.permute.xlu0 0
    %453 = vperm.xlu0 %452, %v101
    %v454 = vpop.permute.xlu0 %453
    %457 = vset.pattern.permute.xlu0 0
    %458 = vperm.xlu0 %457, %v102
    %v459 = vpop.permute.xlu0 %458
    %462 = vset.pattern.permute.xlu0 0
    %463 = vperm.xlu0 %462, %v103
    %v464 = vpop.permute.xlu0 %463
    %467 = vset.pattern.permute.xlu0 0
    %468 = vperm.xlu0 %467, %v104
    %v469 = vpop.permute.xlu0 %468
    %472 = vset.pattern.permute.xlu0 0
    %473 = vperm.xlu0 %472, %v105
    %v474 = vpop.permute.xlu0 %473
    %477 = vset.pattern.permute.xlu0 0
    %478 = vperm.xlu0 %477, %v106
    %v479 = vpop.permute.xlu0 %478
    %482 = vset.pattern.permute.xlu0 0
    %483 = vperm.xlu0 %482, %v107
    %v484 = vpop.permute.xlu0 %483
    %v486 = vmul.f32 %v200, %v329
    %v487 = vmul.f32 %v203, %v334
    %v488 = vmul.f32 %v208, %v339
    %v489 = vmul.f32 %v211, %v344
    %v490 = vmul.f32 %v216, %v349
    %v491 = vmul.f32 %v219, %v354
    %v492 = vmul.f32 %v224, %v359
    %v493 = vmul.f32 %v227, %v364
    %v494 = vmul.f32 %v232, %v369
    %v495 = vmul.f32 %v235, %v374
    %v496 = vmul.f32 %v240, %v379
    %v497 = vmul.f32 %v243, %v384
    %v498 = vmul.f32 %v248, %v389
    %v499 = vmul.f32 %v251, %v394
    %v500 = vmul.f32 %v256, %v399
    %v501 = vmul.f32 %v259, %v404
    %v502 = vmul.f32 %v264, %v409
    %v503 = vmul.f32 %v267, %v414
    %v504 = vmul.f32 %v272, %v419
    %v505 = vmul.f32 %v275, %v424
    %v506 = vmul.f32 %v280, %v429
    %v507 = vmul.f32 %v283, %v434
    %v508 = vmul.f32 %v288, %v439
    %v509 = vmul.f32 %v291, %v444
    %v510 = vmul.f32 %v296, %v449
    %v511 = vmul.f32 %v299, %v454
    %v512 = vmul.f32 %v304, %v459
    %v513 = vmul.f32 %v307, %v464
    %v514 = vmul.f32 %v312, %v469
    %v515 = vmul.f32 %v315, %v474
    %v516 = vmul.f32 %v320, %v479
    %v517 = vmul.f32 %v323, %v484
    %vm518 = vcmask 261120
    %v520 = vsel %vm518, %v486, 0
    %v523 = vsel %vm518, %v487, 0
    %v526 = vsel %vm518, %v488, 0
    %v529 = vsel %vm518, %v489, 0
    %v532 = vsel %vm518, %v490, 0
    %v535 = vsel %vm518, %v491, 0
    %v538 = vsel %vm518, %v492, 0
    %v541 = vsel %vm518, %v493, 0
    %v544 = vsel %vm518, %v494, 0
    %v547 = vsel %vm518, %v495, 0
    %v550 = vsel %vm518, %v496, 0
    %v553 = vsel %vm518, %v497, 0
    %v556 = vsel %vm518, %v498, 0
    %v559 = vsel %vm518, %v499, 0
    %v562 = vsel %vm518, %v500, 0
    %v565 = vsel %vm518, %v501, 0
    %v568 = vsel %vm518, %v502, 0
    %v571 = vsel %vm518, %v503, 0
    %v574 = vsel %vm518, %v504, 0
    %v577 = vsel %vm518, %v505, 0
    %v580 = vsel %vm518, %v506, 0
    %v583 = vsel %vm518, %v507, 0
    %v586 = vsel %vm518, %v508, 0
    %v589 = vsel %vm518, %v509, 0
    %v592 = vsel %vm518, %v510, 0
    %v595 = vsel %vm518, %v511, 0
    %v598 = vsel %vm518, %v512, 0
    %v601 = vsel %vm518, %v513, 0
    %v604 = vsel %vm518, %v514, 0
    %v607 = vsel %vm518, %v515, 0
    %v610 = vsel %vm518, %v516, 0
    %v613 = vsel %vm518, %v517, 0
    %615 = vmatprep.subr.mxu0 0.0
    %616 = vmatpush1.msra.mxu0 %v144
    %617 = vmatprep.subr.mxu0 0.0
    %618 = vmatpush1.msra.mxu0 %v145
    %619 = vmatprep.subr.mxu0 0.0
    %620 = vmatpush1.msra.mxu0 %v146
    %621 = vmatprep.subr.mxu0 0.0
    %622 = vmatpush1.msra.mxu0 %v147
    %623 = vmatprep.subr.mxu0 0.0
    %624 = vmatpush1.msra.mxu0 0.0
    %625 = vmatprep.subr.mxu0 0.0
    %626 = vmatpush1.msra.mxu0 0.0
    %627 = vmatprep.subr.mxu0 0.0
    %628 = vmatpush1.msra.mxu0 0.0
    %629 = vmatprep.subr.mxu0 0.0
    %630 = vmatpush1.msra.mxu0 0.0
    %631 = vmatprep.subr.mxu0 0.0
    %632 = vmatpush1.msra.mxu0 0.0
    %633 = vmatprep.subr.mxu0 0.0
    %634 = vmatpush1.msra.mxu0 0.0
    %635 = vmatprep.subr.mxu0 0.0
    %636 = vmatpush1.msra.mxu0 0.0
    %637 = vmatprep.subr.mxu0 0.0
    %638 = vmatpush1.msra.mxu0 0.0
    %639 = vmatprep.subr.mxu0 0.0
    %640 = vmatpush1.msra.mxu0 0.0
    %641 = vmatprep.subr.mxu0 0.0
    %642 = vmatpush1.msra.mxu0 0.0
    %643 = vmatprep.subr.mxu0 0.0
    %644 = vmatpush1.msra.mxu0 0.0
    %645 = vmatprep.subr.mxu0 0.0
    %646 = vmatpush1.msra.mxu0 0.0
    %647 = vmatprep.subr.mxu0 0.0
    %648 = vmatpush1.msra.mxu0 0.0
    %649 = vmatprep.subr.mxu0 0.0
    %650 = vmatpush1.msra.mxu0 0.0
    %651 = vmatprep.subr.mxu0 0.0
    %652 = vmatpush1.msra.mxu0 0.0
    %653 = vmatprep.subr.mxu0 0.0
    %654 = vmatpush1.msra.mxu0 0.0
    %655 = vmatprep.subr.mxu0 0.0
    %656 = vmatpush1.msra.mxu0 0.0
    %657 = vmatprep.subr.mxu0 0.0
    %658 = vmatpush1.msra.mxu0 0.0
    %659 = vmatprep.subr.mxu0 0.0
    %660 = vmatpush1.msra.mxu0 0.0
    %661 = vmatprep.subr.mxu0 0.0
    %662 = vmatpush1.msra.mxu0 0.0
    %663 = vmatprep.subr.mxu0 0.0
    %664 = vmatpush1.msra.mxu0 0.0
    %665 = vmatprep.subr.mxu0 0.0
    %666 = vmatpush1.msra.mxu0 0.0
    %667 = vmatprep.subr.mxu0 0.0
    %668 = vmatpush1.msra.mxu0 0.0
    %669 = vmatprep.subr.mxu0 0.0
    %670 = vmatpush1.msra.mxu0 0.0
    %671 = vmatprep.subr.mxu0 0.0
    %672 = vmatpush1.msra.mxu0 0.0
    %673 = vmatprep.subr.mxu0 0.0
    %674 = vmatpush1.msra.mxu0 0.0
    %675 = vmatprep.subr.mxu0 0.0
    %676 = vmatpush1.msra.mxu0 0.0
    %677 = vmatprep.subr.mxu0 0.0
    %678 = vmatpush1.msra.mxu0 0.0
    %679 = vmatprep.mubr.f32.mxu0 0.0
    %680 = vmatmul.mubr.f32.gmra.mrb[0].mxu0 %v520
    %v681 = vpop.f32.mrb[0].mxu0
    %v682 = vadd.f32 0.0, %v681
    %v683 = vpop.f32.mrb[0].mxu0
    %684 = vmatprep.mubr.f32.mxu0 0.0
    %685 = vmatmul.mubr.f32.gmra.mrb[0].mxu0 %v523
    %v686 = vpop.f32.mrb[0].mxu0
    %v687 = vadd.f32 0.0, %v686
    %v688 = vpop.f32.mrb[0].mxu0
    %689 = vmatprep.mubr.f32.mxu0 0.0
    %690 = vmatmul.mubr.f32.gmra.mrb[0].mxu0 %v526
    %v691 = vpop.f32.mrb[0].mxu0
    %v692 = vadd.f32 0.0, %v691
    %v693 = vpop.f32.mrb[0].mxu0
    %694 = vmatprep.mubr.f32.mxu0 0.0
    %695 = vmatmul.mubr.f32.gmra.mrb[0].mxu0 %v529
    %v696 = vpop.f32.mrb[0].mxu0
    %v697 = vadd.f32 0.0, %v696
    %v698 = vpop.f32.mrb[0].mxu0
    %699 = vmatprep.mubr.f32.mxu0 0.0
    %700 = vmatmul.mubr.f32.gmra.mrb[0].mxu0 %v532
    %v701 = vpop.f32.mrb[0].mxu0
    %v702 = vadd.f32 0.0, %v701
    %v703 = vpop.f32.mrb[0].mxu0
    %704 = vmatprep.mubr.f32.mxu0 0.0
    %705 = vmatmul.mubr.f32.gmra.mrb[0].mxu0 %v535
    %v706 = vpop.f32.mrb[0].mxu0
    %v707 = vadd.f32 0.0, %v706
    %v708 = vpop.f32.mrb[0].mxu0
    %709 = vmatprep.mubr.f32.mxu0 0.0
    %710 = vmatmul.mubr.f32.gmra.mrb[0].mxu0 %v538
    %v711 = vpop.f32.mrb[0].mxu0
    %v712 = vadd.f32 0.0, %v711
    %v713 = vpop.f32.mrb[0].mxu0
    %714 = vmatprep.mubr.f32.mxu0 0.0
    %715 = vmatmul.mubr.f32.gmra.mrb[0].mxu0 %v541
    %v716 = vpop.f32.mrb[0].mxu0
    %v717 = vadd.f32 0.0, %v716
    %v718 = vpop.f32.mrb[0].mxu0
    %719 = vmatprep.mubr.f32.mxu0 0.0
    %720 = vmatmul.mubr.f32.gmra.mrb[0].mxu0 %v544
    %v721 = vpop.f32.mrb[0].mxu0
    %v722 = vadd.f32 0.0, %v721
    %v723 = vpop.f32.mrb[0].mxu0
    %724 = vmatprep.mubr.f32.mxu0 0.0
    %725 = vmatmul.mubr.f32.gmra.mrb[0].mxu0 %v547
    %v726 = vpop.f32.mrb[0].mxu0
    %v727 = vadd.f32 0.0, %v726
    %v728 = vpop.f32.mrb[0].mxu0
    %729 = vmatprep.mubr.f32.mxu0 0.0
    %730 = vmatmul.mubr.f32.gmra.mrb[0].mxu0 %v550
    %v731 = vpop.f32.mrb[0].mxu0
    %v732 = vadd.f32 0.0, %v731
    %v733 = vpop.f32.mrb[0].mxu0
    %734 = vmatprep.mubr.f32.mxu0 0.0
    %735 = vmatmul.mubr.f32.gmra.mrb[0].mxu0 %v553
    %v736 = vpop.f32.mrb[0].mxu0
    %v737 = vadd.f32 0.0, %v736
    %v738 = vpop.f32.mrb[0].mxu0
    %739 = vmatprep.mubr.f32.mxu0 0.0
    %740 = vmatmul.mubr.f32.gmra.mrb[0].mxu0 %v556
    %v741 = vpop.f32.mrb[0].mxu0
    %v742 = vadd.f32 0.0, %v741
    %v743 = vpop.f32.mrb[0].mxu0
    %744 = vmatprep.mubr.f32.mxu0 0.0
    %745 = vmatmul.mubr.f32.gmra.mrb[0].mxu0 %v559
    %v746 = vpop.f32.mrb[0].mxu0
    %v747 = vadd.f32 0.0, %v746
    %v748 = vpop.f32.mrb[0].mxu0
    %749 = vmatprep.mubr.f32.mxu0 0.0
    %750 = vmatmul.mubr.f32.gmra.mrb[0].mxu0 %v562
    %v751 = vpop.f32.mrb[0].mxu0
    %v752 = vadd.f32 0.0, %v751
    %v753 = vpop.f32.mrb[0].mxu0
    %754 = vmatprep.mubr.f32.mxu0 0.0
    %755 = vmatmul.mubr.f32.gmra.mrb[0].mxu0 %v565
    %v756 = vpop.f32.mrb[0].mxu0
    %v757 = vadd.f32 0.0, %v756
    %v758 = vpop.f32.mrb[0].mxu0
    %759 = vmatprep.mubr.f32.mxu0 0.0
    %760 = vmatmul.mubr.f32.gmra.mrb[0].mxu0 %v568
    %v761 = vpop.f32.mrb[0].mxu0
    %v762 = vadd.f32 0.0, %v761
    %v763 = vpop.f32.mrb[0].mxu0
    %764 = vmatprep.mubr.f32.mxu0 0.0
    %765 = vmatmul.mubr.f32.gmra.mrb[0].mxu0 %v571
    %v766 = vpop.f32.mrb[0].mxu0
    %v767 = vadd.f32 0.0, %v766
    %v768 = vpop.f32.mrb[0].mxu0
    %769 = vmatprep.mubr.f32.mxu0 0.0
    %770 = vmatmul.mubr.f32.gmra.mrb[0].mxu0 %v574
    %v771 = vpop.f32.mrb[0].mxu0
    %v772 = vadd.f32 0.0, %v771
    %v773 = vpop.f32.mrb[0].mxu0
    %774 = vmatprep.mubr.f32.mxu0 0.0
    %775 = vmatmul.mubr.f32.gmra.mrb[0].mxu0 %v577
    %v776 = vpop.f32.mrb[0].mxu0
    %v777 = vadd.f32 0.0, %v776
    %v778 = vpop.f32.mrb[0].mxu0
    %779 = vmatprep.mubr.f32.mxu0 0.0
    %780 = vmatmul.mubr.f32.gmra.mrb[0].mxu0 %v580
    %v781 = vpop.f32.mrb[0].mxu0
    %v782 = vadd.f32 0.0, %v781
    %v783 = vpop.f32.mrb[0].mxu0
    %784 = vmatprep.mubr.f32.mxu0 0.0
    %785 = vmatmul.mubr.f32.gmra.mrb[0].mxu0 %v583
    %v786 = vpop.f32.mrb[0].mxu0
    %v787 = vadd.f32 0.0, %v786
    %v788 = vpop.f32.mrb[0].mxu0
    %789 = vmatprep.mubr.f32.mxu0 0.0
    %790 = vmatmul.mubr.f32.gmra.mrb[0].mxu0 %v586
    %v791 = vpop.f32.mrb[0].mxu0
    %v792 = vadd.f32 0.0, %v791
    %v793 = vpop.f32.mrb[0].mxu0
    %794 = vmatprep.mubr.f32.mxu0 0.0
    %795 = vmatmul.mubr.f32.gmra.mrb[0].mxu0 %v589
    %v796 = vpop.f32.mrb[0].mxu0
    %v797 = vadd.f32 0.0, %v796
    %v798 = vpop.f32.mrb[0].mxu0
    %799 = vmatprep.mubr.f32.mxu0 0.0
    %800 = vmatmul.mubr.f32.gmra.mrb[0].mxu0 %v592
    %v801 = vpop.f32.mrb[0].mxu0
    %v802 = vadd.f32 0.0, %v801
    %v803 = vpop.f32.mrb[0].mxu0
    %804 = vmatprep.mubr.f32.mxu0 0.0
    %805 = vmatmul.mubr.f32.gmra.mrb[0].mxu0 %v595
    %v806 = vpop.f32.mrb[0].mxu0
    %v807 = vadd.f32 0.0, %v806
    %v808 = vpop.f32.mrb[0].mxu0
    %809 = vmatprep.mubr.f32.mxu0 0.0
    %810 = vmatmul.mubr.f32.gmra.mrb[0].mxu0 %v598
    %v811 = vpop.f32.mrb[0].mxu0
    %v812 = vadd.f32 0.0, %v811
    %v813 = vpop.f32.mrb[0].mxu0
    %814 = vmatprep.mubr.f32.mxu0 0.0
    %815 = vmatmul.mubr.f32.gmra.mrb[0].mxu0 %v601
    %v816 = vpop.f32.mrb[0].mxu0
    %v817 = vadd.f32 0.0, %v816
    %v818 = vpop.f32.mrb[0].mxu0
    %819 = vmatprep.mubr.f32.mxu0 0.0
    %820 = vmatmul.mubr.f32.gmra.mrb[0].mxu0 %v604
    %v821 = vpop.f32.mrb[0].mxu0
    %v822 = vadd.f32 0.0, %v821
    %v823 = vpop.f32.mrb[0].mxu0
    %824 = vmatprep.mubr.f32.mxu0 0.0
    %825 = vmatmul.mubr.f32.gmra.mrb[0].mxu0 %v607
    %v826 = vpop.f32.mrb[0].mxu0
    %v827 = vadd.f32 0.0, %v826
    %v828 = vpop.f32.mrb[0].mxu0
    %829 = vmatprep.mubr.f32.mxu0 0.0
    %830 = vmatmul.mubr.f32.gmra.mrb[0].mxu0 %v610
    %v831 = vpop.f32.mrb[0].mxu0
    %v832 = vadd.f32 0.0, %v831
    %v833 = vpop.f32.mrb[0].mxu0
    %834 = vmatprep.mubr.f32.mxu0 0.0
    %835 = vmatmul.mubr.f32.gmra.mrb[0].mxu0 %v613
    %v836 = vpop.f32.mrb[0].mxu0
    %v837 = vadd.f32 0.0, %v836
    %v838 = vpop.f32.mrb[0].mxu0
    %839 = vdwg.mxu0
    %v841 = vsel %vm518, %v108, 0
    %v844 = vsel %vm518, %v109, 0
    %v847 = vsel %vm518, %v110, 0
    %v850 = vsel %vm518, %v111, 0
    %v853 = vsel %vm518, %v112, 0
    %v856 = vsel %vm518, %v113, 0
    %v859 = vsel %vm518, %v114, 0
    %v862 = vsel %vm518, %v115, 0
    %v865 = vsel %vm518, %v116, 0
    %v868 = vsel %vm518, %v117, 0
    %v871 = vsel %vm518, %v118, 0
    %v874 = vsel %vm518, %v119, 0
    %v877 = vsel %vm518, %v120, 0
    %v880 = vsel %vm518, %v121, 0
    %v883 = vsel %vm518, %v122, 0
    %v886 = vsel %vm518, %v123, 0
    %v889 = vsel %vm518, %v124, 0
    %v892 = vsel %vm518, %v125, 0
    %v895 = vsel %vm518, %v126, 0
    %v898 = vsel %vm518, %v127, 0
    %v901 = vsel %vm518, %v128, 0
    %v904 = vsel %vm518, %v129, 0
    %v907 = vsel %vm518, %v130, 0
    %v910 = vsel %vm518, %v131, 0
    %v913 = vsel %vm518, %v132, 0
    %v916 = vsel %vm518, %v133, 0
    %v919 = vsel %vm518, %v134, 0
    %v922 = vsel %vm518, %v135, 0
    %v925 = vsel %vm518, %v136, 0
    %v928 = vsel %vm518, %v137, 0
    %v931 = vsel %vm518, %v138, 0
    %v934 = vsel %vm518, %v139, 0
    %936 = vmatprep.subr.mxu0 0.0
    %937 = vmatpush1.msra.mxu0 %v140
    %938 = vmatprep.subr.mxu0 0.0
    %939 = vmatpush1.msra.mxu0 %v141
    %940 = vmatprep.subr.mxu0 0.0
    %941 = vmatpush1.msra.mxu0 %v142
    %942 = vmatprep.subr.mxu0 0.0
    %943 = vmatpush1.msra.mxu0 %v143
    %944 = vmatprep.subr.mxu0 0.0
    %945 = vmatpush1.msra.mxu0 0.0
    %946 = vmatprep.subr.mxu0 0.0
    %947 = vmatpush1.msra.mxu0 0.0
    %948 = vmatprep.subr.mxu0 0.0
    %949 = vmatpush1.msra.mxu0 0.0
    %950 = vmatprep.subr.mxu0 0.0
    %951 = vmatpush1.msra.mxu0 0.0
    %952 = vmatprep.subr.mxu0 0.0
    %953 = vmatpush1.msra.mxu0 0.0
    %954 = vmatprep.subr.mxu0 0.0
    %955 = vmatpush1.msra.mxu0 0.0
    %956 = vmatprep.subr.mxu0 0.0
    %957 = vmatpush1.msra.mxu0 0.0
    %958 = vmatprep.subr.mxu0 0.0
    %959 = vmatpush1.msra.mxu0 0.0
    %960 = vmatprep.subr.mxu0 0.0
    %961 = vmatpush1.msra.mxu0 0.0
    %962 = vmatprep.subr.mxu0 0.0
    %963 = vmatpush1.msra.mxu0 0.0
    %964 = vmatprep.subr.mxu0 0.0
    %965 = vmatpush1.msra.mxu0 0.0
    %966 = vmatprep.subr.mxu0 0.0
    %967 = vmatpush1.msra.mxu0 0.0
    %968 = vmatprep.subr.mxu0 0.0
    %969 = vmatpush1.msra.mxu0 0.0
    %970 = vmatprep.subr.mxu0 0.0
    %971 = vmatpush1.msra.mxu0 0.0
    %972 = vmatprep.subr.mxu0 0.0
    %973 = vmatpush1.msra.mxu0 0.0
    %974 = vmatprep.subr.mxu0 0.0
    %975 = vmatpush1.msra.mxu0 0.0
    %976 = vmatprep.subr.mxu0 0.0
    %977 = vmatpush1.msra.mxu0 0.0
    %978 = vmatprep.subr.mxu0 0.0
    %979 = vmatpush1.msra.mxu0 0.0
    %980 = vmatprep.subr.mxu0 0.0
    %981 = vmatpush1.msra.mxu0 0.0
    %982 = vmatprep.subr.mxu0 0.0
    %983 = vmatpush1.msra.mxu0 0.0
    %984 = vmatprep.subr.mxu0 0.0
    %985 = vmatpush1.msra.mxu0 0.0
    %986 = vmatprep.subr.mxu0 0.0
    %987 = vmatpush1.msra.mxu0 0.0
    %988 = vmatprep.subr.mxu0 0.0
    %989 = vmatpush1.msra.mxu0 0.0
    %990 = vmatprep.subr.mxu0 0.0
    %991 = vmatpush1.msra.mxu0 0.0
    %992 = vmatprep.subr.mxu0 0.0
    %993 = vmatpush1.msra.mxu0 0.0
    %994 = vmatprep.subr.mxu0 0.0
    %995 = vmatpush1.msra.mxu0 0.0
    %996 = vmatprep.subr.mxu0 0.0
    %997 = vmatpush1.msra.mxu0 0.0
    %998 = vmatprep.subr.mxu0 0.0
    %999 = vmatpush1.msra.mxu0 0.0
    %1000 = vmatprep.mubr.f32.mxu0 0.0
    %1001 = vmatmul.mubr.f32.gmra.mrb[0].mxu0 %v841
    %v1002 = vpop.f32.mrb[0].mxu0
    %v1003 = vadd.f32 %v682, %v1002
    %v1004 = vpop.f32.mrb[0].mxu0
    %1005 = vmatprep.mubr.f32.mxu0 0.0
    %1006 = vmatmul.mubr.f32.gmra.mrb[0].mxu0 %v844
    %v1007 = vpop.f32.mrb[0].mxu0
    %v1008 = vadd.f32 %v687, %v1007
    %v1009 = vpop.f32.mrb[0].mxu0
    %1010 = vmatprep.mubr.f32.mxu0 0.0
    %1011 = vmatmul.mubr.f32.gmra.mrb[0].mxu0 %v847
    %v1012 = vpop.f32.mrb[0].mxu0
    %v1013 = vadd.f32 %v692, %v1012
    %v1014 = vpop.f32.mrb[0].mxu0
    %1015 = vmatprep.mubr.f32.mxu0 0.0
    %1016 = vmatmul.mubr.f32.gmra.mrb[0].mxu0 %v850
    %v1017 = vpop.f32.mrb[0].mxu0
    %v1018 = vadd.f32 %v697, %v1017
    %v1019 = vpop.f32.mrb[0].mxu0
    %1020 = vmatprep.mubr.f32.mxu0 0.0
    %1021 = vmatmul.mubr.f32.gmra.mrb[0].mxu0 %v853
    %v1022 = vpop.f32.mrb[0].mxu0
    %v1023 = vadd.f32 %v702, %v1022
    %v1024 = vpop.f32.mrb[0].mxu0
    %1025 = vmatprep.mubr.f32.mxu0 0.0
    %1026 = vmatmul.mubr.f32.gmra.mrb[0].mxu0 %v856
    %v1027 = vpop.f32.mrb[0].mxu0
    %v1028 = vadd.f32 %v707, %v1027
    %v1029 = vpop.f32.mrb[0].mxu0
    %1030 = vmatprep.mubr.f32.mxu0 0.0
    %1031 = vmatmul.mubr.f32.gmra.mrb[0].mxu0 %v859
    %v1032 = vpop.f32.mrb[0].mxu0
    %v1033 = vadd.f32 %v712, %v1032
    %v1034 = vpop.f32.mrb[0].mxu0
    %1035 = vmatprep.mubr.f32.mxu0 0.0
    %1036 = vmatmul.mubr.f32.gmra.mrb[0].mxu0 %v862
    %v1037 = vpop.f32.mrb[0].mxu0
    %v1038 = vadd.f32 %v717, %v1037
    %v1039 = vpop.f32.mrb[0].mxu0
    %1040 = vmatprep.mubr.f32.mxu0 0.0
    %1041 = vmatmul.mubr.f32.gmra.mrb[0].mxu0 %v865
    %v1042 = vpop.f32.mrb[0].mxu0
    %v1043 = vadd.f32 %v722, %v1042
    %v1044 = vpop.f32.mrb[0].mxu0
    %1045 = vmatprep.mubr.f32.mxu0 0.0
    %1046 = vmatmul.mubr.f32.gmra.mrb[0].mxu0 %v868
    %v1047 = vpop.f32.mrb[0].mxu0
    %v1048 = vadd.f32 %v727, %v1047
    %v1049 = vpop.f32.mrb[0].mxu0
    %1050 = vmatprep.mubr.f32.mxu0 0.0
    %1051 = vmatmul.mubr.f32.gmra.mrb[0].mxu0 %v871
    %v1052 = vpop.f32.mrb[0].mxu0
    %v1053 = vadd.f32 %v732, %v1052
    %v1054 = vpop.f32.mrb[0].mxu0
    %1055 = vmatprep.mubr.f32.mxu0 0.0
    %1056 = vmatmul.mubr.f32.gmra.mrb[0].mxu0 %v874
    %v1057 = vpop.f32.mrb[0].mxu0
    %v1058 = vadd.f32 %v737, %v1057
    %v1059 = vpop.f32.mrb[0].mxu0
    %1060 = vmatprep.mubr.f32.mxu0 0.0
    %1061 = vmatmul.mubr.f32.gmra.mrb[0].mxu0 %v877
    %v1062 = vpop.f32.mrb[0].mxu0
    %v1063 = vadd.f32 %v742, %v1062
    %v1064 = vpop.f32.mrb[0].mxu0
    %1065 = vmatprep.mubr.f32.mxu0 0.0
    %1066 = vmatmul.mubr.f32.gmra.mrb[0].mxu0 %v880
    %v1067 = vpop.f32.mrb[0].mxu0
    %v1068 = vadd.f32 %v747, %v1067
    %v1069 = vpop.f32.mrb[0].mxu0
    %1070 = vmatprep.mubr.f32.mxu0 0.0
    %1071 = vmatmul.mubr.f32.gmra.mrb[0].mxu0 %v883
    %v1072 = vpop.f32.mrb[0].mxu0
    %v1073 = vadd.f32 %v752, %v1072
    %v1074 = vpop.f32.mrb[0].mxu0
    %1075 = vmatprep.mubr.f32.mxu0 0.0
    %1076 = vmatmul.mubr.f32.gmra.mrb[0].mxu0 %v886
    %v1077 = vpop.f32.mrb[0].mxu0
    %v1078 = vadd.f32 %v757, %v1077
    %v1079 = vpop.f32.mrb[0].mxu0
    %1080 = vmatprep.mubr.f32.mxu0 0.0
    %1081 = vmatmul.mubr.f32.gmra.mrb[0].mxu0 %v889
    %v1082 = vpop.f32.mrb[0].mxu0
    %v1083 = vadd.f32 %v762, %v1082
    %v1084 = vpop.f32.mrb[0].mxu0
    %1085 = vmatprep.mubr.f32.mxu0 0.0
    %1086 = vmatmul.mubr.f32.gmra.mrb[0].mxu0 %v892
    %v1087 = vpop.f32.mrb[0].mxu0
    %v1088 = vadd.f32 %v767, %v1087
    %v1089 = vpop.f32.mrb[0].mxu0
    %1090 = vmatprep.mubr.f32.mxu0 0.0
    %1091 = vmatmul.mubr.f32.gmra.mrb[0].mxu0 %v895
    %v1092 = vpop.f32.mrb[0].mxu0
    %v1093 = vadd.f32 %v772, %v1092
    %v1094 = vpop.f32.mrb[0].mxu0
    %1095 = vmatprep.mubr.f32.mxu0 0.0
    %1096 = vmatmul.mubr.f32.gmra.mrb[0].mxu0 %v898
    %v1097 = vpop.f32.mrb[0].mxu0
    %v1098 = vadd.f32 %v777, %v1097
    %v1099 = vpop.f32.mrb[0].mxu0
    %1100 = vmatprep.mubr.f32.mxu0 0.0
    %1101 = vmatmul.mubr.f32.gmra.mrb[0].mxu0 %v901
    %v1102 = vpop.f32.mrb[0].mxu0
    %v1103 = vadd.f32 %v782, %v1102
    %v1104 = vpop.f32.mrb[0].mxu0
    %1105 = vmatprep.mubr.f32.mxu0 0.0
    %1106 = vmatmul.mubr.f32.gmra.mrb[0].mxu0 %v904
    %v1107 = vpop.f32.mrb[0].mxu0
    %v1108 = vadd.f32 %v787, %v1107
    %v1109 = vpop.f32.mrb[0].mxu0
    %1110 = vmatprep.mubr.f32.mxu0 0.0
    %1111 = vmatmul.mubr.f32.gmra.mrb[0].mxu0 %v907
    %v1112 = vpop.f32.mrb[0].mxu0
    %v1113 = vadd.f32 %v792, %v1112
    %v1114 = vpop.f32.mrb[0].mxu0
    %1115 = vmatprep.mubr.f32.mxu0 0.0
    %1116 = vmatmul.mubr.f32.gmra.mrb[0].mxu0 %v910
    %v1117 = vpop.f32.mrb[0].mxu0
    %v1118 = vadd.f32 %v797, %v1117
    %v1119 = vpop.f32.mrb[0].mxu0
    %1120 = vmatprep.mubr.f32.mxu0 0.0
    %1121 = vmatmul.mubr.f32.gmra.mrb[0].mxu0 %v913
    %v1122 = vpop.f32.mrb[0].mxu0
    %v1123 = vadd.f32 %v802, %v1122
    %v1124 = vpop.f32.mrb[0].mxu0
    %1125 = vmatprep.mubr.f32.mxu0 0.0
    %1126 = vmatmul.mubr.f32.gmra.mrb[0].mxu0 %v916
    %v1127 = vpop.f32.mrb[0].mxu0
    %v1128 = vadd.f32 %v807, %v1127
    %v1129 = vpop.f32.mrb[0].mxu0
    %1130 = vmatprep.mubr.f32.mxu0 0.0
    %1131 = vmatmul.mubr.f32.gmra.mrb[0].mxu0 %v919
    %v1132 = vpop.f32.mrb[0].mxu0
    %v1133 = vadd.f32 %v812, %v1132
    %v1134 = vpop.f32.mrb[0].mxu0
    %1135 = vmatprep.mubr.f32.mxu0 0.0
    %1136 = vmatmul.mubr.f32.gmra.mrb[0].mxu0 %v922
    %v1137 = vpop.f32.mrb[0].mxu0
    %v1138 = vadd.f32 %v817, %v1137
    %v1139 = vpop.f32.mrb[0].mxu0
    %1140 = vmatprep.mubr.f32.mxu0 0.0
    %1141 = vmatmul.mubr.f32.gmra.mrb[0].mxu0 %v925
    %v1142 = vpop.f32.mrb[0].mxu0
    %v1143 = vadd.f32 %v822, %v1142
    %v1144 = vpop.f32.mrb[0].mxu0
    %1145 = vmatprep.mubr.f32.mxu0 0.0
    %1146 = vmatmul.mubr.f32.gmra.mrb[0].mxu0 %v928
    %v1147 = vpop.f32.mrb[0].mxu0
    %v1148 = vadd.f32 %v827, %v1147
    %v1149 = vpop.f32.mrb[0].mxu0
    %1150 = vmatprep.mubr.f32.mxu0 0.0
    %1151 = vmatmul.mubr.f32.gmra.mrb[0].mxu0 %v931
    %v1152 = vpop.f32.mrb[0].mxu0
    %v1153 = vadd.f32 %v832, %v1152
    %v1154 = vpop.f32.mrb[0].mxu0
    %1155 = vmatprep.mubr.f32.mxu0 0.0
    %1156 = vmatmul.mubr.f32.gmra.mrb[0].mxu0 %v934
    %v1157 = vpop.f32.mrb[0].mxu0
    %v1158 = vadd.f32 %v837, %v1157
    %v1159 = vpop.f32.mrb[0].mxu0
    %1160 = vdwg.mxu0
    %v1162 = vlaneseq
    %v1163 = vshrl.u32 %v1162, 7
    %v1164 = vsub.s32 0, %v1163
    %v1165 = vrot.slane %v148, %v1164
    %v1167 = vadd.f32 %v1003, %v1165
    %v1168 = vadd.f32 %v1008, %v1165
    %v1169 = vadd.f32 %v1013, %v1165
    %v1170 = vadd.f32 %v1018, %v1165
    %v1171 = vadd.f32 %v1023, %v1165
    %v1172 = vadd.f32 %v1028, %v1165
    %v1173 = vadd.f32 %v1033, %v1165
    %v1174 = vadd.f32 %v1038, %v1165
    %v1175 = vadd.f32 %v1043, %v1165
    %v1176 = vadd.f32 %v1048, %v1165
    %v1177 = vadd.f32 %v1053, %v1165
    %v1178 = vadd.f32 %v1058, %v1165
    %v1179 = vadd.f32 %v1063, %v1165
    %v1180 = vadd.f32 %v1068, %v1165
    %v1181 = vadd.f32 %v1073, %v1165
    %v1182 = vadd.f32 %v1078, %v1165
    %v1183 = vadd.f32 %v1083, %v1165
    %v1184 = vadd.f32 %v1088, %v1165
    %v1185 = vadd.f32 %v1093, %v1165
    %v1186 = vadd.f32 %v1098, %v1165
    %v1187 = vadd.f32 %v1103, %v1165
    %v1188 = vadd.f32 %v1108, %v1165
    %v1189 = vadd.f32 %v1113, %v1165
    %v1190 = vadd.f32 %v1118, %v1165
    %v1191 = vadd.f32 %v1123, %v1165
    %v1192 = vadd.f32 %v1128, %v1165
    %v1193 = vadd.f32 %v1133, %v1165
    %v1194 = vadd.f32 %v1138, %v1165
    %v1195 = vadd.f32 %v1143, %v1165
    %v1196 = vadd.f32 %v1148, %v1165
    %v1197 = vadd.f32 %v1153, %v1165
    %v1198 = vadd.f32 %v1158, %v1165
    %vm1199 = vcmp.ge.f32.partialorder %v1167, 0.0
    %vm1200 = vcmp.ge.f32.partialorder %v1168, 0.0
    %vm1201 = vcmp.ge.f32.partialorder %v1169, 0.0
    %vm1202 = vcmp.ge.f32.partialorder %v1170, 0.0
    %vm1203 = vcmp.ge.f32.partialorder %v1171, 0.0
    %vm1204 = vcmp.ge.f32.partialorder %v1172, 0.0
    %vm1205 = vcmp.ge.f32.partialorder %v1173, 0.0
    %vm1206 = vcmp.ge.f32.partialorder %v1174, 0.0
    %vm1207 = vcmp.ge.f32.partialorder %v1175, 0.0
    %vm1208 = vcmp.ge.f32.partialorder %v1176, 0.0
    %vm1209 = vcmp.ge.f32.partialorder %v1177, 0.0
    %vm1210 = vcmp.ge.f32.partialorder %v1178, 0.0
    %vm1211 = vcmp.ge.f32.partialorder %v1179, 0.0
    %vm1212 = vcmp.ge.f32.partialorder %v1180, 0.0
    %vm1213 = vcmp.ge.f32.partialorder %v1181, 0.0
    %vm1214 = vcmp.ge.f32.partialorder %v1182, 0.0
    %vm1215 = vcmp.ge.f32.partialorder %v1183, 0.0
    %vm1216 = vcmp.ge.f32.partialorder %v1184, 0.0
    %vm1217 = vcmp.ge.f32.partialorder %v1185, 0.0
    %vm1218 = vcmp.ge.f32.partialorder %v1186, 0.0
    %vm1219 = vcmp.ge.f32.partialorder %v1187, 0.0
    %vm1220 = vcmp.ge.f32.partialorder %v1188, 0.0
    %vm1221 = vcmp.ge.f32.partialorder %v1189, 0.0
    %vm1222 = vcmp.ge.f32.partialorder %v1190, 0.0
    %vm1223 = vcmp.ge.f32.partialorder %v1191, 0.0
    %vm1224 = vcmp.ge.f32.partialorder %v1192, 0.0
    %vm1225 = vcmp.ge.f32.partialorder %v1193, 0.0
    %vm1226 = vcmp.ge.f32.partialorder %v1194, 0.0
    %vm1227 = vcmp.ge.f32.partialorder %v1195, 0.0
    %vm1228 = vcmp.ge.f32.partialorder %v1196, 0.0
    %vm1229 = vcmp.ge.f32.partialorder %v1197, 0.0
    %vm1230 = vcmp.ge.f32.partialorder %v1198, 0.0
    %v1231 = vmul.f32 %v1167, 0.01
    %v1232 = vmul.f32 %v1168, 0.01
    %v1233 = vmul.f32 %v1169, 0.01
    %v1234 = vmul.f32 %v1170, 0.01
    %v1235 = vmul.f32 %v1171, 0.01
    %v1236 = vmul.f32 %v1172, 0.01
    %v1237 = vmul.f32 %v1173, 0.01
    %v1238 = vmul.f32 %v1174, 0.01
    %v1239 = vmul.f32 %v1175, 0.01
    %v1240 = vmul.f32 %v1176, 0.01
    %v1241 = vmul.f32 %v1177, 0.01
    %v1242 = vmul.f32 %v1178, 0.01
    %v1243 = vmul.f32 %v1179, 0.01
    %v1244 = vmul.f32 %v1180, 0.01
    %v1245 = vmul.f32 %v1181, 0.01
    %v1246 = vmul.f32 %v1182, 0.01
    %v1247 = vmul.f32 %v1183, 0.01
    %v1248 = vmul.f32 %v1184, 0.01
    %v1249 = vmul.f32 %v1185, 0.01
    %v1250 = vmul.f32 %v1186, 0.01
    %v1251 = vmul.f32 %v1187, 0.01
    %v1252 = vmul.f32 %v1188, 0.01
    %v1253 = vmul.f32 %v1189, 0.01
    %v1254 = vmul.f32 %v1190, 0.01
    %v1255 = vmul.f32 %v1191, 0.01
    %v1256 = vmul.f32 %v1192, 0.01
    %v1257 = vmul.f32 %v1193, 0.01
    %v1258 = vmul.f32 %v1194, 0.01
    %v1259 = vmul.f32 %v1195, 0.01
    %v1260 = vmul.f32 %v1196, 0.01
    %v1261 = vmul.f32 %v1197, 0.01
    %v1262 = vmul.f32 %v1198, 0.01
    %v1263 = vsel %vm1199, %v1167, %v1231
    %v1264 = vsel %vm1200, %v1168, %v1232
    %v1265 = vsel %vm1201, %v1169, %v1233
    %v1266 = vsel %vm1202, %v1170, %v1234
    %v1267 = vsel %vm1203, %v1171, %v1235
    %v1268 = vsel %vm1204, %v1172, %v1236
    %v1269 = vsel %vm1205, %v1173, %v1237
    %v1270 = vsel %vm1206, %v1174, %v1238
    %v1271 = vsel %vm1207, %v1175, %v1239
    %v1272 = vsel %vm1208, %v1176, %v1240
    %v1273 = vsel %vm1209, %v1177, %v1241
    %v1274 = vsel %vm1210, %v1178, %v1242
    %v1275 = vsel %vm1211, %v1179, %v1243
    %v1276 = vsel %vm1212, %v1180, %v1244
    %v1277 = vsel %vm1213, %v1181, %v1245
    %v1278 = vsel %vm1214, %v1182, %v1246
    %v1279 = vsel %vm1215, %v1183, %v1247
    %v1280 = vsel %vm1216, %v1184, %v1248
    %v1281 = vsel %vm1217, %v1185, %v1249
    %v1282 = vsel %vm1218, %v1186, %v1250
    %v1283 = vsel %vm1219, %v1187, %v1251
    %v1284 = vsel %vm1220, %v1188, %v1252
    %v1285 = vsel %vm1221, %v1189, %v1253
    %v1286 = vsel %vm1222, %v1190, %v1254
    %v1287 = vsel %vm1223, %v1191, %v1255
    %v1288 = vsel %vm1224, %v1192, %v1256
    %v1289 = vsel %vm1225, %v1193, %v1257
    %v1290 = vsel %vm1226, %v1194, %v1258
    %v1291 = vsel %vm1227, %v1195, %v1259
    %v1292 = vsel %vm1228, %v1196, %v1260
    %v1293 = vsel %vm1229, %v1197, %v1261
    %v1294 = vsel %vm1230, %v1198, %v1262
    %s1295 = scalar_lea.vmem %s3, 64
    %v1296 = vld [vmem:[%s1295] sm:$0xff]
    %v1297 = vld [vmem:[%s1295 + $0x8] sm:$0xff]
    %v1298 = vld [vmem:[%s1295 + $0x10] sm:$0xff]
    %v1299 = vld [vmem:[%s1295 + $0x18] sm:$0xff]
    %v1300 = vld [vmem:[%s1295 + $0x20] sm:$0xff]
    %v1301 = vld [vmem:[%s1295 + $0x28] sm:$0xff]
    %v1302 = vld [vmem:[%s1295 + $0x30] sm:$0xff]
    %v1303 = vld [vmem:[%s1295 + $0x38] sm:$0xff]
    %s1304 = scalar_lea.vmem %s4, 1
    %v1305 = vld [vmem:[%s1304] sm:$0x1]
    %v1306 = vpack.c.bf16 %v1264, %v1263
    %v1307 = vpack.c.bf16 %v1266, %v1265
    %v1308 = vpack.c.bf16 %v1268, %v1267
    %v1309 = vpack.c.bf16 %v1270, %v1269
    %v1310 = vpack.c.bf16 %v1272, %v1271
    %v1311 = vpack.c.bf16 %v1274, %v1273
    %v1312 = vpack.c.bf16 %v1276, %v1275
    %v1313 = vpack.c.bf16 %v1278, %v1277
    %v1314 = vpack.c.bf16 %v1280, %v1279
    %v1315 = vpack.c.bf16 %v1282, %v1281
    %v1316 = vpack.c.bf16 %v1284, %v1283
    %v1317 = vpack.c.bf16 %v1286, %v1285
    %v1318 = vpack.c.bf16 %v1288, %v1287
    %v1319 = vpack.c.bf16 %v1290, %v1289
    %v1320 = vpack.c.bf16 %v1292, %v1291
    %v1321 = vpack.c.bf16 %v1294, %v1293
    %1322 = vmatprep.subr.bf16.mxu0 0
    %1323 = vmatpush1.bf16.msra.mxu0 %v1306
    %1324 = vmatprep.subr.bf16.mxu0 0
    %1325 = vmatpush1.bf16.msra.mxu0 %v1307
    %1326 = vmatprep.subr.bf16.mxu0 0
    %1327 = vmatpush1.bf16.msra.mxu0 %v1308
    %1328 = vmatprep.subr.bf16.mxu0 0
    %1329 = vmatpush1.bf16.msra.mxu0 %v1309
    %1330 = vmatprep.subr.bf16.mxu0 0
    %1331 = vmatpush1.bf16.msra.mxu0 %v1310
    %1332 = vmatprep.subr.bf16.mxu0 0
    %1333 = vmatpush1.bf16.msra.mxu0 %v1311
    %1334 = vmatprep.subr.bf16.mxu0 0
    %1335 = vmatpush1.bf16.msra.mxu0 %v1312
    %1336 = vmatprep.subr.bf16.mxu0 0
    %1337 = vmatpush1.bf16.msra.mxu0 %v1313
    %1338 = vmatprep.subr.bf16.mxu0 0
    %1339 = vmatpush1.bf16.msra.mxu0 %v1314
    %1340 = vmatprep.subr.bf16.mxu0 0
    %1341 = vmatpush1.bf16.msra.mxu0 %v1315
    %1342 = vmatprep.subr.bf16.mxu0 0
    %1343 = vmatpush1.bf16.msra.mxu0 %v1316
    %1344 = vmatprep.subr.bf16.mxu0 0
    %1345 = vmatpush1.bf16.msra.mxu0 %v1317
    %1346 = vmatprep.subr.bf16.mxu0 0
    %1347 = vmatpush1.bf16.msra.mxu0 %v1318
    %1348 = vmatprep.subr.bf16.mxu0 0
    %1349 = vmatpush1.bf16.msra.mxu0 %v1319
    %1350 = vmatprep.subr.bf16.mxu0 0
    %1351 = vmatpush1.bf16.msra.mxu0 %v1320
    %1352 = vmatprep.subr.bf16.mxu0 0
    %1353 = vmatpush1.bf16.msra.mxu0 %v1321
    %1354 = vmatprep.mubr.bf16.mxu0 %v45
    %1355 = vmatmul.mubr.bf16.gmra.mrb[0].mxu0 %v44
    %v1356 = vpop.f32.mrb[0].mxu0
    %v1357 = vadd.f32 0.0, %v1356
    %v1358 = vpop.f32.mrb[0].mxu0
    %v1359 = vpop.f32.mrb[0].mxu0
    %v1360 = vadd.f32 0.0, %v1359
    %v1361 = vpop.f32.mrb[0].mxu0
    %1362 = vmatprep.mubr.bf16.mxu0 %v47
    %1363 = vmatmul.mubr.bf16.gmra.mrb[0].mxu0 %v46
    %v1364 = vpop.f32.mrb[0].mxu0
    %v1365 = vadd.f32 0.0, %v1364
    %v1366 = vpop.f32.mrb[0].mxu0
    %v1367 = vpop.f32.mrb[0].mxu0
    %v1368 = vadd.f32 0.0, %v1367
    %v1369 = vpop.f32.mrb[0].mxu0
    %1370 = vmatprep.mubr.bf16.mxu0 %v49
    %1371 = vmatmul.mubr.bf16.gmra.mrb[0].mxu0 %v48
    %v1372 = vpop.f32.mrb[0].mxu0
    %v1373 = vadd.f32 0.0, %v1372
    %v1374 = vpop.f32.mrb[0].mxu0
    %v1375 = vpop.f32.mrb[0].mxu0
    %v1376 = vadd.f32 0.0, %v1375
    %v1377 = vpop.f32.mrb[0].mxu0
    %1378 = vmatprep.mubr.bf16.mxu0 %v51
    %1379 = vmatmul.mubr.bf16.gmra.mrb[0].mxu0 %v50
    %v1380 = vpop.f32.mrb[0].mxu0
    %v1381 = vadd.f32 0.0, %v1380
    %v1382 = vpop.f32.mrb[0].mxu0
    %v1383 = vpop.f32.mrb[0].mxu0
    %v1384 = vadd.f32 0.0, %v1383
    %v1385 = vpop.f32.mrb[0].mxu0
    %1386 = vmatprep.mubr.bf16.mxu0 %v53
    %1387 = vmatmul.mubr.bf16.gmra.mrb[0].mxu0 %v52
    %v1388 = vpop.f32.mrb[0].mxu0
    %v1389 = vadd.f32 0.0, %v1388
    %v1390 = vpop.f32.mrb[0].mxu0
    %v1391 = vpop.f32.mrb[0].mxu0
    %v1392 = vadd.f32 0.0, %v1391
    %v1393 = vpop.f32.mrb[0].mxu0
    %1394 = vmatprep.mubr.bf16.mxu0 %v55
    %1395 = vmatmul.mubr.bf16.gmra.mrb[0].mxu0 %v54
    %v1396 = vpop.f32.mrb[0].mxu0
    %v1397 = vadd.f32 0.0, %v1396
    %v1398 = vpop.f32.mrb[0].mxu0
    %v1399 = vpop.f32.mrb[0].mxu0
    %v1400 = vadd.f32 0.0, %v1399
    %v1401 = vpop.f32.mrb[0].mxu0
    %1402 = vmatprep.mubr.bf16.mxu0 %v57
    %1403 = vmatmul.mubr.bf16.gmra.mrb[0].mxu0 %v56
    %v1404 = vpop.f32.mrb[0].mxu0
    %v1405 = vadd.f32 0.0, %v1404
    %v1406 = vpop.f32.mrb[0].mxu0
    %v1407 = vpop.f32.mrb[0].mxu0
    %v1408 = vadd.f32 0.0, %v1407
    %v1409 = vpop.f32.mrb[0].mxu0
    %1410 = vmatprep.mubr.bf16.mxu0 %v59
    %1411 = vmatmul.mubr.bf16.gmra.mrb[0].mxu0 %v58
    %v1412 = vpop.f32.mrb[0].mxu0
    %v1413 = vadd.f32 0.0, %v1412
    %v1414 = vpop.f32.mrb[0].mxu0
    %v1415 = vpop.f32.mrb[0].mxu0
    %v1416 = vadd.f32 0.0, %v1415
    %v1417 = vpop.f32.mrb[0].mxu0
    %1418 = vmatprep.mubr.bf16.mxu0 %v61
    %1419 = vmatmul.mubr.bf16.gmra.mrb[0].mxu0 %v60
    %v1420 = vpop.f32.mrb[0].mxu0
    %v1421 = vadd.f32 0.0, %v1420
    %v1422 = vpop.f32.mrb[0].mxu0
    %v1423 = vpop.f32.mrb[0].mxu0
    %v1424 = vadd.f32 0.0, %v1423
    %v1425 = vpop.f32.mrb[0].mxu0
    %1426 = vmatprep.mubr.bf16.mxu0 %v63
    %1427 = vmatmul.mubr.bf16.gmra.mrb[0].mxu0 %v62
    %v1428 = vpop.f32.mrb[0].mxu0
    %v1429 = vadd.f32 0.0, %v1428
    %v1430 = vpop.f32.mrb[0].mxu0
    %v1431 = vpop.f32.mrb[0].mxu0
    %v1432 = vadd.f32 0.0, %v1431
    %v1433 = vpop.f32.mrb[0].mxu0
    %1434 = vmatprep.mubr.bf16.mxu0 %v65
    %1435 = vmatmul.mubr.bf16.gmra.mrb[0].mxu0 %v64
    %v1436 = vpop.f32.mrb[0].mxu0
    %v1437 = vadd.f32 0.0, %v1436
    %v1438 = vpop.f32.mrb[0].mxu0
    %v1439 = vpop.f32.mrb[0].mxu0
    %v1440 = vadd.f32 0.0, %v1439
    %v1441 = vpop.f32.mrb[0].mxu0
    %1442 = vmatprep.mubr.bf16.mxu0 %v67
    %1443 = vmatmul.mubr.bf16.gmra.mrb[0].mxu0 %v66
    %v1444 = vpop.f32.mrb[0].mxu0
    %v1445 = vadd.f32 0.0, %v1444
    %v1446 = vpop.f32.mrb[0].mxu0
    %v1447 = vpop.f32.mrb[0].mxu0
    %v1448 = vadd.f32 0.0, %v1447
    %v1449 = vpop.f32.mrb[0].mxu0
    %1450 = vmatprep.mubr.bf16.mxu0 %v69
    %1451 = vmatmul.mubr.bf16.gmra.mrb[0].mxu0 %v68
    %v1452 = vpop.f32.mrb[0].mxu0
    %v1453 = vadd.f32 0.0, %v1452
    %v1454 = vpop.f32.mrb[0].mxu0
    %v1455 = vpop.f32.mrb[0].mxu0
    %v1456 = vadd.f32 0.0, %v1455
    %v1457 = vpop.f32.mrb[0].mxu0
    %1458 = vmatprep.mubr.bf16.mxu0 %v71
    %1459 = vmatmul.mubr.bf16.gmra.mrb[0].mxu0 %v70
    %v1460 = vpop.f32.mrb[0].mxu0
    %v1461 = vadd.f32 0.0, %v1460
    %v1462 = vpop.f32.mrb[0].mxu0
    %v1463 = vpop.f32.mrb[0].mxu0
    %v1464 = vadd.f32 0.0, %v1463
    %v1465 = vpop.f32.mrb[0].mxu0
    %1466 = vmatprep.mubr.bf16.mxu0 %v73
    %1467 = vmatmul.mubr.bf16.gmra.mrb[0].mxu0 %v72
    %v1468 = vpop.f32.mrb[0].mxu0
    %v1469 = vadd.f32 0.0, %v1468
    %v1470 = vpop.f32.mrb[0].mxu0
    %v1471 = vpop.f32.mrb[0].mxu0
    %v1472 = vadd.f32 0.0, %v1471
    %v1473 = vpop.f32.mrb[0].mxu0
    %1474 = vmatprep.mubr.bf16.mxu0 %v75
    %1475 = vmatmul.mubr.bf16.gmra.mrb[0].mxu0 %v74
    %v1476 = vpop.f32.mrb[0].mxu0
    %v1477 = vadd.f32 0.0, %v1476
    %v1478 = vpop.f32.mrb[0].mxu0
    %v1479 = vpop.f32.mrb[0].mxu0
    %v1480 = vadd.f32 0.0, %v1479
    %v1481 = vpop.f32.mrb[0].mxu0
    %1482 = vdwg.mxu0
    %v1483 = vmul.f32 %v1357, %v329
    %v1484 = vmul.f32 %v1360, %v334
    %v1485 = vmul.f32 %v1365, %v339
    %v1486 = vmul.f32 %v1368, %v344
    %v1487 = vmul.f32 %v1373, %v349
    %v1488 = vmul.f32 %v1376, %v354
    %v1489 = vmul.f32 %v1381, %v359
    %v1490 = vmul.f32 %v1384, %v364
    %v1491 = vmul.f32 %v1389, %v369
    %v1492 = vmul.f32 %v1392, %v374
    %v1493 = vmul.f32 %v1397, %v379
    %v1494 = vmul.f32 %v1400, %v384
    %v1495 = vmul.f32 %v1405, %v389
    %v1496 = vmul.f32 %v1408, %v394
    %v1497 = vmul.f32 %v1413, %v399
    %v1498 = vmul.f32 %v1416, %v404
    %v1499 = vmul.f32 %v1421, %v409
    %v1500 = vmul.f32 %v1424, %v414
    %v1501 = vmul.f32 %v1429, %v419
    %v1502 = vmul.f32 %v1432, %v424
    %v1503 = vmul.f32 %v1437, %v429
    %v1504 = vmul.f32 %v1440, %v434
    %v1505 = vmul.f32 %v1445, %v439
    %v1506 = vmul.f32 %v1448, %v444
    %v1507 = vmul.f32 %v1453, %v449
    %v1508 = vmul.f32 %v1456, %v454
    %v1509 = vmul.f32 %v1461, %v459
    %v1510 = vmul.f32 %v1464, %v464
    %v1511 = vmul.f32 %v1469, %v469
    %v1512 = vmul.f32 %v1472, %v474
    %v1513 = vmul.f32 %v1477, %v479
    %v1514 = vmul.f32 %v1480, %v484
    %v1516 = vsel %vm518, %v1483, 0
    %v1519 = vsel %vm518, %v1484, 0
    %v1522 = vsel %vm518, %v1485, 0
    %v1525 = vsel %vm518, %v1486, 0
    %v1528 = vsel %vm518, %v1487, 0
    %v1531 = vsel %vm518, %v1488, 0
    %v1534 = vsel %vm518, %v1489, 0
    %v1537 = vsel %vm518, %v1490, 0
    %v1540 = vsel %vm518, %v1491, 0
    %v1543 = vsel %vm518, %v1492, 0
    %v1546 = vsel %vm518, %v1493, 0
    %v1549 = vsel %vm518, %v1494, 0
    %v1552 = vsel %vm518, %v1495, 0
    %v1555 = vsel %vm518, %v1496, 0
    %v1558 = vsel %vm518, %v1497, 0
    %v1561 = vsel %vm518, %v1498, 0
    %v1564 = vsel %vm518, %v1499, 0
    %v1567 = vsel %vm518, %v1500, 0
    %v1570 = vsel %vm518, %v1501, 0
    %v1573 = vsel %vm518, %v1502, 0
    %v1576 = vsel %vm518, %v1503, 0
    %v1579 = vsel %vm518, %v1504, 0
    %v1582 = vsel %vm518, %v1505, 0
    %v1585 = vsel %vm518, %v1506, 0
    %v1588 = vsel %vm518, %v1507, 0
    %v1591 = vsel %vm518, %v1508, 0
    %v1594 = vsel %vm518, %v1509, 0
    %v1597 = vsel %vm518, %v1510, 0
    %v1600 = vsel %vm518, %v1511, 0
    %v1603 = vsel %vm518, %v1512, 0
    %v1606 = vsel %vm518, %v1513, 0
    %v1609 = vsel %vm518, %v1514, 0
    %1611 = vmatprep.subr.mxu0 0.0
    %1612 = vmatpush1.msra.mxu0 %v1300
    %1613 = vmatprep.subr.mxu0 0.0
    %1614 = vmatpush1.msra.mxu0 %v1301
    %1615 = vmatprep.subr.mxu0 0.0
    %1616 = vmatpush1.msra.mxu0 %v1302
    %1617 = vmatprep.subr.mxu0 0.0
    %1618 = vmatpush1.msra.mxu0 %v1303
    %1619 = vmatprep.subr.mxu0 0.0
    %1620 = vmatpush1.msra.mxu0 0.0
    %1621 = vmatprep.subr.mxu0 0.0
    %1622 = vmatpush1.msra.mxu0 0.0
    %1623 = vmatprep.subr.mxu0 0.0
    %1624 = vmatpush1.msra.mxu0 0.0
    %1625 = vmatprep.subr.mxu0 0.0
    %1626 = vmatpush1.msra.mxu0 0.0
    %1627 = vmatprep.subr.mxu0 0.0
    %1628 = vmatpush1.msra.mxu0 0.0
    %1629 = vmatprep.subr.mxu0 0.0
    %1630 = vmatpush1.msra.mxu0 0.0
    %1631 = vmatprep.subr.mxu0 0.0
    %1632 = vmatpush1.msra.mxu0 0.0
    %1633 = vmatprep.subr.mxu0 0.0
    %1634 = vmatpush1.msra.mxu0 0.0
    %1635 = vmatprep.subr.mxu0 0.0
    %1636 = vmatpush1.msra.mxu0 0.0
    %1637 = vmatprep.subr.mxu0 0.0
    %1638 = vmatpush1.msra.mxu0 0.0
    %1639 = vmatprep.subr.mxu0 0.0
    %1640 = vmatpush1.msra.mxu0 0.0
    %1641 = vmatprep.subr.mxu0 0.0
    %1642 = vmatpush1.msra.mxu0 0.0
    %1643 = vmatprep.subr.mxu0 0.0
    %1644 = vmatpush1.msra.mxu0 0.0
    %1645 = vmatprep.subr.mxu0 0.0
    %1646 = vmatpush1.msra.mxu0 0.0
    %1647 = vmatprep.subr.mxu0 0.0
    %1648 = vmatpush1.msra.mxu0 0.0
    %1649 = vmatprep.subr.mxu0 0.0
    %1650 = vmatpush1.msra.mxu0 0.0
    %1651 = vmatprep.subr.mxu0 0.0
    %1652 = vmatpush1.msra.mxu0 0.0
    %1653 = vmatprep.subr.mxu0 0.0
    %1654 = vmatpush1.msra.mxu0 0.0
    %1655 = vmatprep.subr.mxu0 0.0
    %1656 = vmatpush1.msra.mxu0 0.0
    %1657 = vmatprep.subr.mxu0 0.0
    %1658 = vmatpush1.msra.mxu0 0.0
    %1659 = vmatprep.subr.mxu0 0.0
    %1660 = vmatpush1.msra.mxu0 0.0
    %1661 = vmatprep.subr.mxu0 0.0
    %1662 = vmatpush1.msra.mxu0 0.0
    %1663 = vmatprep.subr.mxu0 0.0
    %1664 = vmatpush1.msra.mxu0 0.0
    %1665 = vmatprep.subr.mxu0 0.0
    %1666 = vmatpush1.msra.mxu0 0.0
    %1667 = vmatprep.subr.mxu0 0.0
    %1668 = vmatpush1.msra.mxu0 0.0
    %1669 = vmatprep.subr.mxu0 0.0
    %1670 = vmatpush1.msra.mxu0 0.0
    %1671 = vmatprep.subr.mxu0 0.0
    %1672 = vmatpush1.msra.mxu0 0.0
    %1673 = vmatprep.subr.mxu0 0.0
    %1674 = vmatpush1.msra.mxu0 0.0
    %1675 = vmatprep.mubr.f32.mxu0 0.0
    %1676 = vmatmul.mubr.f32.gmra.mrb[0].mxu0 %v1516
    %v1677 = vpop.f32.mrb[0].mxu0
    %v1678 = vadd.f32 0.0, %v1677
    %v1679 = vpop.f32.mrb[0].mxu0
    %1680 = vmatprep.mubr.f32.mxu0 0.0
    %1681 = vmatmul.mubr.f32.gmra.mrb[0].mxu0 %v1519
    %v1682 = vpop.f32.mrb[0].mxu0
    %v1683 = vadd.f32 0.0, %v1682
    %v1684 = vpop.f32.mrb[0].mxu0
    %1685 = vmatprep.mubr.f32.mxu0 0.0
    %1686 = vmatmul.mubr.f32.gmra.mrb[0].mxu0 %v1522
    %v1687 = vpop.f32.mrb[0].mxu0
    %v1688 = vadd.f32 0.0, %v1687
    %v1689 = vpop.f32.mrb[0].mxu0
    %1690 = vmatprep.mubr.f32.mxu0 0.0
    %1691 = vmatmul.mubr.f32.gmra.mrb[0].mxu0 %v1525
    %v1692 = vpop.f32.mrb[0].mxu0
    %v1693 = vadd.f32 0.0, %v1692
    %v1694 = vpop.f32.mrb[0].mxu0
    %1695 = vmatprep.mubr.f32.mxu0 0.0
    %1696 = vmatmul.mubr.f32.gmra.mrb[0].mxu0 %v1528
    %v1697 = vpop.f32.mrb[0].mxu0
    %v1698 = vadd.f32 0.0, %v1697
    %v1699 = vpop.f32.mrb[0].mxu0
    %1700 = vmatprep.mubr.f32.mxu0 0.0
    %1701 = vmatmul.mubr.f32.gmra.mrb[0].mxu0 %v1531
    %v1702 = vpop.f32.mrb[0].mxu0
    %v1703 = vadd.f32 0.0, %v1702
    %v1704 = vpop.f32.mrb[0].mxu0
    %1705 = vmatprep.mubr.f32.mxu0 0.0
    %1706 = vmatmul.mubr.f32.gmra.mrb[0].mxu0 %v1534
    %v1707 = vpop.f32.mrb[0].mxu0
    %v1708 = vadd.f32 0.0, %v1707
    %v1709 = vpop.f32.mrb[0].mxu0
    %1710 = vmatprep.mubr.f32.mxu0 0.0
    %1711 = vmatmul.mubr.f32.gmra.mrb[0].mxu0 %v1537
    %v1712 = vpop.f32.mrb[0].mxu0
    %v1713 = vadd.f32 0.0, %v1712
    %v1714 = vpop.f32.mrb[0].mxu0
    %1715 = vmatprep.mubr.f32.mxu0 0.0
    %1716 = vmatmul.mubr.f32.gmra.mrb[0].mxu0 %v1540
    %v1717 = vpop.f32.mrb[0].mxu0
    %v1718 = vadd.f32 0.0, %v1717
    %v1719 = vpop.f32.mrb[0].mxu0
    %1720 = vmatprep.mubr.f32.mxu0 0.0
    %1721 = vmatmul.mubr.f32.gmra.mrb[0].mxu0 %v1543
    %v1722 = vpop.f32.mrb[0].mxu0
    %v1723 = vadd.f32 0.0, %v1722
    %v1724 = vpop.f32.mrb[0].mxu0
    %1725 = vmatprep.mubr.f32.mxu0 0.0
    %1726 = vmatmul.mubr.f32.gmra.mrb[0].mxu0 %v1546
    %v1727 = vpop.f32.mrb[0].mxu0
    %v1728 = vadd.f32 0.0, %v1727
    %v1729 = vpop.f32.mrb[0].mxu0
    %1730 = vmatprep.mubr.f32.mxu0 0.0
    %1731 = vmatmul.mubr.f32.gmra.mrb[0].mxu0 %v1549
    %v1732 = vpop.f32.mrb[0].mxu0
    %v1733 = vadd.f32 0.0, %v1732
    %v1734 = vpop.f32.mrb[0].mxu0
    %1735 = vmatprep.mubr.f32.mxu0 0.0
    %1736 = vmatmul.mubr.f32.gmra.mrb[0].mxu0 %v1552
    %v1737 = vpop.f32.mrb[0].mxu0
    %v1738 = vadd.f32 0.0, %v1737
    %v1739 = vpop.f32.mrb[0].mxu0
    %1740 = vmatprep.mubr.f32.mxu0 0.0
    %1741 = vmatmul.mubr.f32.gmra.mrb[0].mxu0 %v1555
    %v1742 = vpop.f32.mrb[0].mxu0
    %v1743 = vadd.f32 0.0, %v1742
    %v1744 = vpop.f32.mrb[0].mxu0
    %1745 = vmatprep.mubr.f32.mxu0 0.0
    %1746 = vmatmul.mubr.f32.gmra.mrb[0].mxu0 %v1558
    %v1747 = vpop.f32.mrb[0].mxu0
    %v1748 = vadd.f32 0.0, %v1747
    %v1749 = vpop.f32.mrb[0].mxu0
    %1750 = vmatprep.mubr.f32.mxu0 0.0
    %1751 = vmatmul.mubr.f32.gmra.mrb[0].mxu0 %v1561
    %v1752 = vpop.f32.mrb[0].mxu0
    %v1753 = vadd.f32 0.0, %v1752
    %v1754 = vpop.f32.mrb[0].mxu0
    %1755 = vmatprep.mubr.f32.mxu0 0.0
    %1756 = vmatmul.mubr.f32.gmra.mrb[0].mxu0 %v1564
    %v1757 = vpop.f32.mrb[0].mxu0
    %v1758 = vadd.f32 0.0, %v1757
    %v1759 = vpop.f32.mrb[0].mxu0
    %1760 = vmatprep.mubr.f32.mxu0 0.0
    %1761 = vmatmul.mubr.f32.gmra.mrb[0].mxu0 %v1567
    %v1762 = vpop.f32.mrb[0].mxu0
    %v1763 = vadd.f32 0.0, %v1762
    %v1764 = vpop.f32.mrb[0].mxu0
    %1765 = vmatprep.mubr.f32.mxu0 0.0
    %1766 = vmatmul.mubr.f32.gmra.mrb[0].mxu0 %v1570
    %v1767 = vpop.f32.mrb[0].mxu0
    %v1768 = vadd.f32 0.0, %v1767
    %v1769 = vpop.f32.mrb[0].mxu0
    %1770 = vmatprep.mubr.f32.mxu0 0.0
    %1771 = vmatmul.mubr.f32.gmra.mrb[0].mxu0 %v1573
    %v1772 = vpop.f32.mrb[0].mxu0
    %v1773 = vadd.f32 0.0, %v1772
    %v1774 = vpop.f32.mrb[0].mxu0
    %1775 = vmatprep.mubr.f32.mxu0 0.0
    %1776 = vmatmul.mubr.f32.gmra.mrb[0].mxu0 %v1576
    %v1777 = vpop.f32.mrb[0].mxu0
    %v1778 = vadd.f32 0.0, %v1777
    %v1779 = vpop.f32.mrb[0].mxu0
    %1780 = vmatprep.mubr.f32.mxu0 0.0
    %1781 = vmatmul.mubr.f32.gmra.mrb[0].mxu0 %v1579
    %v1782 = vpop.f32.mrb[0].mxu0
    %v1783 = vadd.f32 0.0, %v1782
    %v1784 = vpop.f32.mrb[0].mxu0
    %1785 = vmatprep.mubr.f32.mxu0 0.0
    %1786 = vmatmul.mubr.f32.gmra.mrb[0].mxu0 %v1582
    %v1787 = vpop.f32.mrb[0].mxu0
    %v1788 = vadd.f32 0.0, %v1787
    %v1789 = vpop.f32.mrb[0].mxu0
    %1790 = vmatprep.mubr.f32.mxu0 0.0
    %1791 = vmatmul.mubr.f32.gmra.mrb[0].mxu0 %v1585
    %v1792 = vpop.f32.mrb[0].mxu0
    %v1793 = vadd.f32 0.0, %v1792
    %v1794 = vpop.f32.mrb[0].mxu0
    %1795 = vmatprep.mubr.f32.mxu0 0.0
    %1796 = vmatmul.mubr.f32.gmra.mrb[0].mxu0 %v1588
    %v1797 = vpop.f32.mrb[0].mxu0
    %v1798 = vadd.f32 0.0, %v1797
    %v1799 = vpop.f32.mrb[0].mxu0
    %1800 = vmatprep.mubr.f32.mxu0 0.0
    %1801 = vmatmul.mubr.f32.gmra.mrb[0].mxu0 %v1591
    %v1802 = vpop.f32.mrb[0].mxu0
    %v1803 = vadd.f32 0.0, %v1802
    %v1804 = vpop.f32.mrb[0].mxu0
    %1805 = vmatprep.mubr.f32.mxu0 0.0
    %1806 = vmatmul.mubr.f32.gmra.mrb[0].mxu0 %v1594
    %v1807 = vpop.f32.mrb[0].mxu0
    %v1808 = vadd.f32 0.0, %v1807
    %v1809 = vpop.f32.mrb[0].mxu0
    %1810 = vmatprep.mubr.f32.mxu0 0.0
    %1811 = vmatmul.mubr.f32.gmra.mrb[0].mxu0 %v1597
    %v1812 = vpop.f32.mrb[0].mxu0
    %v1813 = vadd.f32 0.0, %v1812
    %v1814 = vpop.f32.mrb[0].mxu0
    %1815 = vmatprep.mubr.f32.mxu0 0.0
    %1816 = vmatmul.mubr.f32.gmra.mrb[0].mxu0 %v1600
    %v1817 = vpop.f32.mrb[0].mxu0
    %v1818 = vadd.f32 0.0, %v1817
    %v1819 = vpop.f32.mrb[0].mxu0
    %1820 = vmatprep.mubr.f32.mxu0 0.0
    %1821 = vmatmul.mubr.f32.gmra.mrb[0].mxu0 %v1603
    %v1822 = vpop.f32.mrb[0].mxu0
    %v1823 = vadd.f32 0.0, %v1822
    %v1824 = vpop.f32.mrb[0].mxu0
    %1825 = vmatprep.mubr.f32.mxu0 0.0
    %1826 = vmatmul.mubr.f32.gmra.mrb[0].mxu0 %v1606
    %v1827 = vpop.f32.mrb[0].mxu0
    %v1828 = vadd.f32 0.0, %v1827
    %v1829 = vpop.f32.mrb[0].mxu0
    %1830 = vmatprep.mubr.f32.mxu0 0.0
    %1831 = vmatmul.mubr.f32.gmra.mrb[0].mxu0 %v1609
    %v1832 = vpop.f32.mrb[0].mxu0
    %v1833 = vadd.f32 0.0, %v1832
    %v1834 = vpop.f32.mrb[0].mxu0
    %1835 = vdwg.mxu0
    %v1837 = vsel %vm518, %v1263, 0
    %v1840 = vsel %vm518, %v1264, 0
    %v1843 = vsel %vm518, %v1265, 0
    %v1846 = vsel %vm518, %v1266, 0
    %v1849 = vsel %vm518, %v1267, 0
    %v1852 = vsel %vm518, %v1268, 0
    %v1855 = vsel %vm518, %v1269, 0
    %v1858 = vsel %vm518, %v1270, 0
    %v1861 = vsel %vm518, %v1271, 0
    %v1864 = vsel %vm518, %v1272, 0
    %v1867 = vsel %vm518, %v1273, 0
    %v1870 = vsel %vm518, %v1274, 0
    %v1873 = vsel %vm518, %v1275, 0
    %v1876 = vsel %vm518, %v1276, 0
    %v1879 = vsel %vm518, %v1277, 0
    %v1882 = vsel %vm518, %v1278, 0
    %v1885 = vsel %vm518, %v1279, 0
    %v1888 = vsel %vm518, %v1280, 0
    %v1891 = vsel %vm518, %v1281, 0
    %v1894 = vsel %vm518, %v1282, 0
    %v1897 = vsel %vm518, %v1283, 0
    %v1900 = vsel %vm518, %v1284, 0
    %v1903 = vsel %vm518, %v1285, 0
    %v1906 = vsel %vm518, %v1286, 0
    %v1909 = vsel %vm518, %v1287, 0
    %v1912 = vsel %vm518, %v1288, 0
    %v1915 = vsel %vm518, %v1289, 0
    %v1918 = vsel %vm518, %v1290, 0
    %v1921 = vsel %vm518, %v1291, 0
    %v1924 = vsel %vm518, %v1292, 0
    %v1927 = vsel %vm518, %v1293, 0
    %v1930 = vsel %vm518, %v1294, 0
    %1932 = vmatprep.subr.mxu0 0.0
    %1933 = vmatpush1.msra.mxu0 %v1296
    %1934 = vmatprep.subr.mxu0 0.0
    %1935 = vmatpush1.msra.mxu0 %v1297
    %1936 = vmatprep.subr.mxu0 0.0
    %1937 = vmatpush1.msra.mxu0 %v1298
    %1938 = vmatprep.subr.mxu0 0.0
    %1939 = vmatpush1.msra.mxu0 %v1299
    %1940 = vmatprep.subr.mxu0 0.0
    %1941 = vmatpush1.msra.mxu0 0.0
    %1942 = vmatprep.subr.mxu0 0.0
    %1943 = vmatpush1.msra.mxu0 0.0
    %1944 = vmatprep.subr.mxu0 0.0
    %1945 = vmatpush1.msra.mxu0 0.0
    %1946 = vmatprep.subr.mxu0 0.0
    %1947 = vmatpush1.msra.mxu0 0.0
    %1948 = vmatprep.subr.mxu0 0.0
    %1949 = vmatpush1.msra.mxu0 0.0
    %1950 = vmatprep.subr.mxu0 0.0
    %1951 = vmatpush1.msra.mxu0 0.0
    %1952 = vmatprep.subr.mxu0 0.0
    %1953 = vmatpush1.msra.mxu0 0.0
    %1954 = vmatprep.subr.mxu0 0.0
    %1955 = vmatpush1.msra.mxu0 0.0
    %1956 = vmatprep.subr.mxu0 0.0
    %1957 = vmatpush1.msra.mxu0 0.0
    %1958 = vmatprep.subr.mxu0 0.0
    %1959 = vmatpush1.msra.mxu0 0.0
    %1960 = vmatprep.subr.mxu0 0.0
    %1961 = vmatpush1.msra.mxu0 0.0
    %1962 = vmatprep.subr.mxu0 0.0
    %1963 = vmatpush1.msra.mxu0 0.0
    %1964 = vmatprep.subr.mxu0 0.0
    %1965 = vmatpush1.msra.mxu0 0.0
    %1966 = vmatprep.subr.mxu0 0.0
    %1967 = vmatpush1.msra.mxu0 0.0
    %1968 = vmatprep.subr.mxu0 0.0
    %1969 = vmatpush1.msra.mxu0 0.0
    %1970 = vmatprep.subr.mxu0 0.0
    %1971 = vmatpush1.msra.mxu0 0.0
    %1972 = vmatprep.subr.mxu0 0.0
    %1973 = vmatpush1.msra.mxu0 0.0
    %1974 = vmatprep.subr.mxu0 0.0
    %1975 = vmatpush1.msra.mxu0 0.0
    %1976 = vmatprep.subr.mxu0 0.0
    %1977 = vmatpush1.msra.mxu0 0.0
    %1978 = vmatprep.subr.mxu0 0.0
    %1979 = vmatpush1.msra.mxu0 0.0
    %1980 = vmatprep.subr.mxu0 0.0
    %1981 = vmatpush1.msra.mxu0 0.0
    %1982 = vmatprep.subr.mxu0 0.0
    %1983 = vmatpush1.msra.mxu0 0.0
    %1984 = vmatprep.subr.mxu0 0.0
    %1985 = vmatpush1.msra.mxu0 0.0
    %1986 = vmatprep.subr.mxu0 0.0
    %1987 = vmatpush1.msra.mxu0 0.0
    %1988 = vmatprep.subr.mxu0 0.0
    %1989 = vmatpush1.msra.mxu0 0.0
    %1990 = vmatprep.subr.mxu0 0.0
    %1991 = vmatpush1.msra.mxu0 0.0
    %1992 = vmatprep.subr.mxu0 0.0
    %1993 = vmatpush1.msra.mxu0 0.0
    %1994 = vmatprep.subr.mxu0 0.0
    %1995 = vmatpush1.msra.mxu0 0.0
    %1996 = vmatprep.mubr.f32.mxu0 0.0
    %1997 = vmatmul.mubr.f32.gmra.mrb[0].mxu0 %v1837
    %v1998 = vpop.f32.mrb[0].mxu0
    %v1999 = vadd.f32 %v1678, %v1998
    %v2000 = vpop.f32.mrb[0].mxu0
    %2001 = vmatprep.mubr.f32.mxu0 0.0
    %2002 = vmatmul.mubr.f32.gmra.mrb[0].mxu0 %v1840
    %v2003 = vpop.f32.mrb[0].mxu0
    %v2004 = vadd.f32 %v1683, %v2003
    %v2005 = vpop.f32.mrb[0].mxu0
    %2006 = vmatprep.mubr.f32.mxu0 0.0
    %2007 = vmatmul.mubr.f32.gmra.mrb[0].mxu0 %v1843
    %v2008 = vpop.f32.mrb[0].mxu0
    %v2009 = vadd.f32 %v1688, %v2008
    %v2010 = vpop.f32.mrb[0].mxu0
    %2011 = vmatprep.mubr.f32.mxu0 0.0
    %2012 = vmatmul.mubr.f32.gmra.mrb[0].mxu0 %v1846
    %v2013 = vpop.f32.mrb[0].mxu0
    %v2014 = vadd.f32 %v1693, %v2013
    %v2015 = vpop.f32.mrb[0].mxu0
    %2016 = vmatprep.mubr.f32.mxu0 0.0
    %2017 = vmatmul.mubr.f32.gmra.mrb[0].mxu0 %v1849
    %v2018 = vpop.f32.mrb[0].mxu0
    %v2019 = vadd.f32 %v1698, %v2018
    %v2020 = vpop.f32.mrb[0].mxu0
    %2021 = vmatprep.mubr.f32.mxu0 0.0
    %2022 = vmatmul.mubr.f32.gmra.mrb[0].mxu0 %v1852
    %v2023 = vpop.f32.mrb[0].mxu0
    %v2024 = vadd.f32 %v1703, %v2023
    %v2025 = vpop.f32.mrb[0].mxu0
    %2026 = vmatprep.mubr.f32.mxu0 0.0
    %2027 = vmatmul.mubr.f32.gmra.mrb[0].mxu0 %v1855
    %v2028 = vpop.f32.mrb[0].mxu0
    %v2029 = vadd.f32 %v1708, %v2028
    %v2030 = vpop.f32.mrb[0].mxu0
    %2031 = vmatprep.mubr.f32.mxu0 0.0
    %2032 = vmatmul.mubr.f32.gmra.mrb[0].mxu0 %v1858
    %v2033 = vpop.f32.mrb[0].mxu0
    %v2034 = vadd.f32 %v1713, %v2033
    %v2035 = vpop.f32.mrb[0].mxu0
    %2036 = vmatprep.mubr.f32.mxu0 0.0
    %2037 = vmatmul.mubr.f32.gmra.mrb[0].mxu0 %v1861
    %v2038 = vpop.f32.mrb[0].mxu0
    %v2039 = vadd.f32 %v1718, %v2038
    %v2040 = vpop.f32.mrb[0].mxu0
    %2041 = vmatprep.mubr.f32.mxu0 0.0
    %2042 = vmatmul.mubr.f32.gmra.mrb[0].mxu0 %v1864
    %v2043 = vpop.f32.mrb[0].mxu0
    %v2044 = vadd.f32 %v1723, %v2043
    %v2045 = vpop.f32.mrb[0].mxu0
    %2046 = vmatprep.mubr.f32.mxu0 0.0
    %2047 = vmatmul.mubr.f32.gmra.mrb[0].mxu0 %v1867
    %v2048 = vpop.f32.mrb[0].mxu0
    %v2049 = vadd.f32 %v1728, %v2048
    %v2050 = vpop.f32.mrb[0].mxu0
    %2051 = vmatprep.mubr.f32.mxu0 0.0
    %2052 = vmatmul.mubr.f32.gmra.mrb[0].mxu0 %v1870
    %v2053 = vpop.f32.mrb[0].mxu0
    %v2054 = vadd.f32 %v1733, %v2053
    %v2055 = vpop.f32.mrb[0].mxu0
    %2056 = vmatprep.mubr.f32.mxu0 0.0
    %2057 = vmatmul.mubr.f32.gmra.mrb[0].mxu0 %v1873
    %v2058 = vpop.f32.mrb[0].mxu0
    %v2059 = vadd.f32 %v1738, %v2058
    %v2060 = vpop.f32.mrb[0].mxu0
    %2061 = vmatprep.mubr.f32.mxu0 0.0
    %2062 = vmatmul.mubr.f32.gmra.mrb[0].mxu0 %v1876
    %v2063 = vpop.f32.mrb[0].mxu0
    %v2064 = vadd.f32 %v1743, %v2063
    %v2065 = vpop.f32.mrb[0].mxu0
    %2066 = vmatprep.mubr.f32.mxu0 0.0
    %2067 = vmatmul.mubr.f32.gmra.mrb[0].mxu0 %v1879
    %v2068 = vpop.f32.mrb[0].mxu0
    %v2069 = vadd.f32 %v1748, %v2068
    %v2070 = vpop.f32.mrb[0].mxu0
    %2071 = vmatprep.mubr.f32.mxu0 0.0
    %2072 = vmatmul.mubr.f32.gmra.mrb[0].mxu0 %v1882
    %v2073 = vpop.f32.mrb[0].mxu0
    %v2074 = vadd.f32 %v1753, %v2073
    %v2075 = vpop.f32.mrb[0].mxu0
    %2076 = vmatprep.mubr.f32.mxu0 0.0
    %2077 = vmatmul.mubr.f32.gmra.mrb[0].mxu0 %v1885
    %v2078 = vpop.f32.mrb[0].mxu0
    %v2079 = vadd.f32 %v1758, %v2078
    %v2080 = vpop.f32.mrb[0].mxu0
    %2081 = vmatprep.mubr.f32.mxu0 0.0
    %2082 = vmatmul.mubr.f32.gmra.mrb[0].mxu0 %v1888
    %v2083 = vpop.f32.mrb[0].mxu0
    %v2084 = vadd.f32 %v1763, %v2083
    %v2085 = vpop.f32.mrb[0].mxu0
    %2086 = vmatprep.mubr.f32.mxu0 0.0
    %2087 = vmatmul.mubr.f32.gmra.mrb[0].mxu0 %v1891
    %v2088 = vpop.f32.mrb[0].mxu0
    %v2089 = vadd.f32 %v1768, %v2088
    %v2090 = vpop.f32.mrb[0].mxu0
    %2091 = vmatprep.mubr.f32.mxu0 0.0
    %2092 = vmatmul.mubr.f32.gmra.mrb[0].mxu0 %v1894
    %v2093 = vpop.f32.mrb[0].mxu0
    %v2094 = vadd.f32 %v1773, %v2093
    %v2095 = vpop.f32.mrb[0].mxu0
    %2096 = vmatprep.mubr.f32.mxu0 0.0
    %2097 = vmatmul.mubr.f32.gmra.mrb[0].mxu0 %v1897
    %v2098 = vpop.f32.mrb[0].mxu0
    %v2099 = vadd.f32 %v1778, %v2098
    %v2100 = vpop.f32.mrb[0].mxu0
    %2101 = vmatprep.mubr.f32.mxu0 0.0
    %2102 = vmatmul.mubr.f32.gmra.mrb[0].mxu0 %v1900
    %v2103 = vpop.f32.mrb[0].mxu0
    %v2104 = vadd.f32 %v1783, %v2103
    %v2105 = vpop.f32.mrb[0].mxu0
    %2106 = vmatprep.mubr.f32.mxu0 0.0
    %2107 = vmatmul.mubr.f32.gmra.mrb[0].mxu0 %v1903
    %v2108 = vpop.f32.mrb[0].mxu0
    %v2109 = vadd.f32 %v1788, %v2108
    %v2110 = vpop.f32.mrb[0].mxu0
    %2111 = vmatprep.mubr.f32.mxu0 0.0
    %2112 = vmatmul.mubr.f32.gmra.mrb[0].mxu0 %v1906
    %v2113 = vpop.f32.mrb[0].mxu0
    %v2114 = vadd.f32 %v1793, %v2113
    %v2115 = vpop.f32.mrb[0].mxu0
    %2116 = vmatprep.mubr.f32.mxu0 0.0
    %2117 = vmatmul.mubr.f32.gmra.mrb[0].mxu0 %v1909
    %v2118 = vpop.f32.mrb[0].mxu0
    %v2119 = vadd.f32 %v1798, %v2118
    %v2120 = vpop.f32.mrb[0].mxu0
    %2121 = vmatprep.mubr.f32.mxu0 0.0
    %2122 = vmatmul.mubr.f32.gmra.mrb[0].mxu0 %v1912
    %v2123 = vpop.f32.mrb[0].mxu0
    %v2124 = vadd.f32 %v1803, %v2123
    %v2125 = vpop.f32.mrb[0].mxu0
    %2126 = vmatprep.mubr.f32.mxu0 0.0
    %2127 = vmatmul.mubr.f32.gmra.mrb[0].mxu0 %v1915
    %v2128 = vpop.f32.mrb[0].mxu0
    %v2129 = vadd.f32 %v1808, %v2128
    %v2130 = vpop.f32.mrb[0].mxu0
    %2131 = vmatprep.mubr.f32.mxu0 0.0
    %2132 = vmatmul.mubr.f32.gmra.mrb[0].mxu0 %v1918
    %v2133 = vpop.f32.mrb[0].mxu0
    %v2134 = vadd.f32 %v1813, %v2133
    %v2135 = vpop.f32.mrb[0].mxu0
    %2136 = vmatprep.mubr.f32.mxu0 0.0
    %2137 = vmatmul.mubr.f32.gmra.mrb[0].mxu0 %v1921
    %v2138 = vpop.f32.mrb[0].mxu0
    %v2139 = vadd.f32 %v1818, %v2138
    %v2140 = vpop.f32.mrb[0].mxu0
    %2141 = vmatprep.mubr.f32.mxu0 0.0
    %2142 = vmatmul.mubr.f32.gmra.mrb[0].mxu0 %v1924
    %v2143 = vpop.f32.mrb[0].mxu0
    %v2144 = vadd.f32 %v1823, %v2143
    %v2145 = vpop.f32.mrb[0].mxu0
    %2146 = vmatprep.mubr.f32.mxu0 0.0
    %2147 = vmatmul.mubr.f32.gmra.mrb[0].mxu0 %v1927
    %v2148 = vpop.f32.mrb[0].mxu0
    %v2149 = vadd.f32 %v1828, %v2148
    %v2150 = vpop.f32.mrb[0].mxu0
    %2151 = vmatprep.mubr.f32.mxu0 0.0
    %2152 = vmatmul.mubr.f32.gmra.mrb[0].mxu0 %v1930
    %v2153 = vpop.f32.mrb[0].mxu0
    %v2154 = vadd.f32 %v1833, %v2153
    %v2155 = vpop.f32.mrb[0].mxu0
    %2156 = vdwg.mxu0
    %v2158 = vlaneseq
    %v2159 = vshrl.u32 %v2158, 7
    %v2160 = vsub.s32 0, %v2159
    %v2161 = vrot.slane %v1305, %v2160
    %v2163 = vadd.f32 %v1999, %v2161
    %v2164 = vadd.f32 %v2004, %v2161
    %v2165 = vadd.f32 %v2009, %v2161
    %v2166 = vadd.f32 %v2014, %v2161
    %v2167 = vadd.f32 %v2019, %v2161
    %v2168 = vadd.f32 %v2024, %v2161
    %v2169 = vadd.f32 %v2029, %v2161
    %v2170 = vadd.f32 %v2034, %v2161
    %v2171 = vadd.f32 %v2039, %v2161
    %v2172 = vadd.f32 %v2044, %v2161
    %v2173 = vadd.f32 %v2049, %v2161
    %v2174 = vadd.f32 %v2054, %v2161
    %v2175 = vadd.f32 %v2059, %v2161
    %v2176 = vadd.f32 %v2064, %v2161
    %v2177 = vadd.f32 %v2069, %v2161
    %v2178 = vadd.f32 %v2074, %v2161
    %v2179 = vadd.f32 %v2079, %v2161
    %v2180 = vadd.f32 %v2084, %v2161
    %v2181 = vadd.f32 %v2089, %v2161
    %v2182 = vadd.f32 %v2094, %v2161
    %v2183 = vadd.f32 %v2099, %v2161
    %v2184 = vadd.f32 %v2104, %v2161
    %v2185 = vadd.f32 %v2109, %v2161
    %v2186 = vadd.f32 %v2114, %v2161
    %v2187 = vadd.f32 %v2119, %v2161
    %v2188 = vadd.f32 %v2124, %v2161
    %v2189 = vadd.f32 %v2129, %v2161
    %v2190 = vadd.f32 %v2134, %v2161
    %v2191 = vadd.f32 %v2139, %v2161
    %v2192 = vadd.f32 %v2144, %v2161
    %v2193 = vadd.f32 %v2149, %v2161
    %v2194 = vadd.f32 %v2154, %v2161
    %vm2195 = vcmp.ge.f32.partialorder %v2163, 0.0
    %vm2196 = vcmp.ge.f32.partialorder %v2164, 0.0
    %vm2197 = vcmp.ge.f32.partialorder %v2165, 0.0
    %vm2198 = vcmp.ge.f32.partialorder %v2166, 0.0
    %vm2199 = vcmp.ge.f32.partialorder %v2167, 0.0
    %vm2200 = vcmp.ge.f32.partialorder %v2168, 0.0
    %vm2201 = vcmp.ge.f32.partialorder %v2169, 0.0
    %vm2202 = vcmp.ge.f32.partialorder %v2170, 0.0
    %vm2203 = vcmp.ge.f32.partialorder %v2171, 0.0
    %vm2204 = vcmp.ge.f32.partialorder %v2172, 0.0
    %vm2205 = vcmp.ge.f32.partialorder %v2173, 0.0
    %vm2206 = vcmp.ge.f32.partialorder %v2174, 0.0
    %vm2207 = vcmp.ge.f32.partialorder %v2175, 0.0
    %vm2208 = vcmp.ge.f32.partialorder %v2176, 0.0
    %vm2209 = vcmp.ge.f32.partialorder %v2177, 0.0
    %vm2210 = vcmp.ge.f32.partialorder %v2178, 0.0
    %vm2211 = vcmp.ge.f32.partialorder %v2179, 0.0
    %vm2212 = vcmp.ge.f32.partialorder %v2180, 0.0
    %vm2213 = vcmp.ge.f32.partialorder %v2181, 0.0
    %vm2214 = vcmp.ge.f32.partialorder %v2182, 0.0
    %vm2215 = vcmp.ge.f32.partialorder %v2183, 0.0
    %vm2216 = vcmp.ge.f32.partialorder %v2184, 0.0
    %vm2217 = vcmp.ge.f32.partialorder %v2185, 0.0
    %vm2218 = vcmp.ge.f32.partialorder %v2186, 0.0
    %vm2219 = vcmp.ge.f32.partialorder %v2187, 0.0
    %vm2220 = vcmp.ge.f32.partialorder %v2188, 0.0
    %vm2221 = vcmp.ge.f32.partialorder %v2189, 0.0
    %vm2222 = vcmp.ge.f32.partialorder %v2190, 0.0
    %vm2223 = vcmp.ge.f32.partialorder %v2191, 0.0
    %vm2224 = vcmp.ge.f32.partialorder %v2192, 0.0
    %vm2225 = vcmp.ge.f32.partialorder %v2193, 0.0
    %vm2226 = vcmp.ge.f32.partialorder %v2194, 0.0
    %v2227 = vmul.f32 %v2163, 0.01
    %v2228 = vmul.f32 %v2164, 0.01
    %v2229 = vmul.f32 %v2165, 0.01
    %v2230 = vmul.f32 %v2166, 0.01
    %v2231 = vmul.f32 %v2167, 0.01
    %v2232 = vmul.f32 %v2168, 0.01
    %v2233 = vmul.f32 %v2169, 0.01
    %v2234 = vmul.f32 %v2170, 0.01
    %v2235 = vmul.f32 %v2171, 0.01
    %v2236 = vmul.f32 %v2172, 0.01
    %v2237 = vmul.f32 %v2173, 0.01
    %v2238 = vmul.f32 %v2174, 0.01
    %v2239 = vmul.f32 %v2175, 0.01
    %v2240 = vmul.f32 %v2176, 0.01
    %v2241 = vmul.f32 %v2177, 0.01
    %v2242 = vmul.f32 %v2178, 0.01
    %v2243 = vmul.f32 %v2179, 0.01
    %v2244 = vmul.f32 %v2180, 0.01
    %v2245 = vmul.f32 %v2181, 0.01
    %v2246 = vmul.f32 %v2182, 0.01
    %v2247 = vmul.f32 %v2183, 0.01
    %v2248 = vmul.f32 %v2184, 0.01
    %v2249 = vmul.f32 %v2185, 0.01
    %v2250 = vmul.f32 %v2186, 0.01
    %v2251 = vmul.f32 %v2187, 0.01
    %v2252 = vmul.f32 %v2188, 0.01
    %v2253 = vmul.f32 %v2189, 0.01
    %v2254 = vmul.f32 %v2190, 0.01
    %v2255 = vmul.f32 %v2191, 0.01
    %v2256 = vmul.f32 %v2192, 0.01
    %v2257 = vmul.f32 %v2193, 0.01
    %v2258 = vmul.f32 %v2194, 0.01
    %v2259 = vsel %vm2195, %v2163, %v2227
    %v2260 = vsel %vm2196, %v2164, %v2228
    %v2261 = vsel %vm2197, %v2165, %v2229
    %v2262 = vsel %vm2198, %v2166, %v2230
    %v2263 = vsel %vm2199, %v2167, %v2231
    %v2264 = vsel %vm2200, %v2168, %v2232
    %v2265 = vsel %vm2201, %v2169, %v2233
    %v2266 = vsel %vm2202, %v2170, %v2234
    %v2267 = vsel %vm2203, %v2171, %v2235
    %v2268 = vsel %vm2204, %v2172, %v2236
    %v2269 = vsel %vm2205, %v2173, %v2237
    %v2270 = vsel %vm2206, %v2174, %v2238
    %v2271 = vsel %vm2207, %v2175, %v2239
    %v2272 = vsel %vm2208, %v2176, %v2240
    %v2273 = vsel %vm2209, %v2177, %v2241
    %v2274 = vsel %vm2210, %v2178, %v2242
    %v2275 = vsel %vm2211, %v2179, %v2243
    %v2276 = vsel %vm2212, %v2180, %v2244
    %v2277 = vsel %vm2213, %v2181, %v2245
    %v2278 = vsel %vm2214, %v2182, %v2246
    %v2279 = vsel %vm2215, %v2183, %v2247
    %v2280 = vsel %vm2216, %v2184, %v2248
    %v2281 = vsel %vm2217, %v2185, %v2249
    %v2282 = vsel %vm2218, %v2186, %v2250
    %v2283 = vsel %vm2219, %v2187, %v2251
    %v2284 = vsel %vm2220, %v2188, %v2252
    %v2285 = vsel %vm2221, %v2189, %v2253
    %v2286 = vsel %vm2222, %v2190, %v2254
    %v2287 = vsel %vm2223, %v2191, %v2255
    %v2288 = vsel %vm2224, %v2192, %v2256
    %v2289 = vsel %vm2225, %v2193, %v2257
    %v2290 = vsel %vm2226, %v2194, %v2258
    %s2291 = scalar_lea.vmem %s3, 128
    %v2292 = vld [vmem:[%s2291] sm:$0xff]
    %v2293 = vld [vmem:[%s2291 + $0x8] sm:$0xff]
    %v2294 = vld [vmem:[%s2291 + $0x10] sm:$0xff]
    %v2295 = vld [vmem:[%s2291 + $0x18] sm:$0xff]
    %v2296 = vld [vmem:[%s2291 + $0x20] sm:$0xff]
    %v2297 = vld [vmem:[%s2291 + $0x28] sm:$0xff]
    %v2298 = vld [vmem:[%s2291 + $0x30] sm:$0xff]
    %v2299 = vld [vmem:[%s2291 + $0x38] sm:$0xff]
    %s2300 = scalar_lea.vmem %s4, 2
    %v2301 = vld [vmem:[%s2300] sm:$0x1]
    %v2302 = vpack.c.bf16 %v2260, %v2259
    %v2303 = vpack.c.bf16 %v2262, %v2261
    %v2304 = vpack.c.bf16 %v2264, %v2263
    %v2305 = vpack.c.bf16 %v2266, %v2265
    %v2306 = vpack.c.bf16 %v2268, %v2267
    %v2307 = vpack.c.bf16 %v2270, %v2269
    %v2308 = vpack.c.bf16 %v2272, %v2271
    %v2309 = vpack.c.bf16 %v2274, %v2273
    %v2310 = vpack.c.bf16 %v2276, %v2275
    %v2311 = vpack.c.bf16 %v2278, %v2277
    %v2312 = vpack.c.bf16 %v2280, %v2279
    %v2313 = vpack.c.bf16 %v2282, %v2281
    %v2314 = vpack.c.bf16 %v2284, %v2283
    %v2315 = vpack.c.bf16 %v2286, %v2285
    %v2316 = vpack.c.bf16 %v2288, %v2287
    %v2317 = vpack.c.bf16 %v2290, %v2289
    %2318 = vmatprep.subr.bf16.mxu0 0
    %2319 = vmatpush1.bf16.msra.mxu0 %v2302
    %2320 = vmatprep.subr.bf16.mxu0 0
    %2321 = vmatpush1.bf16.msra.mxu0 %v2303
    %2322 = vmatprep.subr.bf16.mxu0 0
    %2323 = vmatpush1.bf16.msra.mxu0 %v2304
    %2324 = vmatprep.subr.bf16.mxu0 0
    %2325 = vmatpush1.bf16.msra.mxu0 %v2305
    %2326 = vmatprep.subr.bf16.mxu0 0
    %2327 = vmatpush1.bf16.msra.mxu0 %v2306
    %2328 = vmatprep.subr.bf16.mxu0 0
    %2329 = vmatpush1.bf16.msra.mxu0 %v2307
    %2330 = vmatprep.subr.bf16.mxu0 0
    %2331 = vmatpush1.bf16.msra.mxu0 %v2308
    %2332 = vmatprep.subr.bf16.mxu0 0
    %2333 = vmatpush1.bf16.msra.mxu0 %v2309
    %2334 = vmatprep.subr.bf16.mxu0 0
    %2335 = vmatpush1.bf16.msra.mxu0 %v2310
    %2336 = vmatprep.subr.bf16.mxu0 0
    %2337 = vmatpush1.bf16.msra.mxu0 %v2311
    %2338 = vmatprep.subr.bf16.mxu0 0
    %2339 = vmatpush1.bf16.msra.mxu0 %v2312
    %2340 = vmatprep.subr.bf16.mxu0 0
    %2341 = vmatpush1.bf16.msra.mxu0 %v2313
    %2342 = vmatprep.subr.bf16.mxu0 0
    %2343 = vmatpush1.bf16.msra.mxu0 %v2314
    %2344 = vmatprep.subr.bf16.mxu0 0
    %2345 = vmatpush1.bf16.msra.mxu0 %v2315
    %2346 = vmatprep.subr.bf16.mxu0 0
    %2347 = vmatpush1.bf16.msra.mxu0 %v2316
    %2348 = vmatprep.subr.bf16.mxu0 0
    %2349 = vmatpush1.bf16.msra.mxu0 %v2317
    %2350 = vmatprep.mubr.bf16.mxu0 %v45
    %2351 = vmatmul.mubr.bf16.gmra.mrb[0].mxu0 %v44
    %v2352 = vpop.f32.mrb[0].mxu0
    %v2353 = vadd.f32 0.0, %v2352
    %v2354 = vpop.f32.mrb[0].mxu0
    %v2355 = vpop.f32.mrb[0].mxu0
    %v2356 = vadd.f32 0.0, %v2355
    %v2357 = vpop.f32.mrb[0].mxu0
    %2358 = vmatprep.mubr.bf16.mxu0 %v47
    %2359 = vmatmul.mubr.bf16.gmra.mrb[0].mxu0 %v46
    %v2360 = vpop.f32.mrb[0].mxu0
    %v2361 = vadd.f32 0.0, %v2360
    %v2362 = vpop.f32.mrb[0].mxu0
    %v2363 = vpop.f32.mrb[0].mxu0
    %v2364 = vadd.f32 0.0, %v2363
    %v2365 = vpop.f32.mrb[0].mxu0
    %2366 = vmatprep.mubr.bf16.mxu0 %v49
    %2367 = vmatmul.mubr.bf16.gmra.mrb[0].mxu0 %v48
    %v2368 = vpop.f32.mrb[0].mxu0
    %v2369 = vadd.f32 0.0, %v2368
    %v2370 = vpop.f32.mrb[0].mxu0
    %v2371 = vpop.f32.mrb[0].mxu0
    %v2372 = vadd.f32 0.0, %v2371
    %v2373 = vpop.f32.mrb[0].mxu0
    %2374 = vmatprep.mubr.bf16.mxu0 %v51
    %2375 = vmatmul.mubr.bf16.gmra.mrb[0].mxu0 %v50
    %v2376 = vpop.f32.mrb[0].mxu0
    %v2377 = vadd.f32 0.0, %v2376
    %v2378 = vpop.f32.mrb[0].mxu0
    %v2379 = vpop.f32.mrb[0].mxu0
    %v2380 = vadd.f32 0.0, %v2379
    %v2381 = vpop.f32.mrb[0].mxu0
    %2382 = vmatprep.mubr.bf16.mxu0 %v53
    %2383 = vmatmul.mubr.bf16.gmra.mrb[0].mxu0 %v52
    %v2384 = vpop.f32.mrb[0].mxu0
    %v2385 = vadd.f32 0.0, %v2384
    %v2386 = vpop.f32.mrb[0].mxu0
    %v2387 = vpop.f32.mrb[0].mxu0
    %v2388 = vadd.f32 0.0, %v2387
    %v2389 = vpop.f32.mrb[0].mxu0
    %2390 = vmatprep.mubr.bf16.mxu0 %v55
    %2391 = vmatmul.mubr.bf16.gmra.mrb[0].mxu0 %v54
    %v2392 = vpop.f32.mrb[0].mxu0
    %v2393 = vadd.f32 0.0, %v2392
    %v2394 = vpop.f32.mrb[0].mxu0
    %v2395 = vpop.f32.mrb[0].mxu0
    %v2396 = vadd.f32 0.0, %v2395
    %v2397 = vpop.f32.mrb[0].mxu0
    %2398 = vmatprep.mubr.bf16.mxu0 %v57
    %2399 = vmatmul.mubr.bf16.gmra.mrb[0].mxu0 %v56
    %v2400 = vpop.f32.mrb[0].mxu0
    %v2401 = vadd.f32 0.0, %v2400
    %v2402 = vpop.f32.mrb[0].mxu0
    %v2403 = vpop.f32.mrb[0].mxu0
    %v2404 = vadd.f32 0.0, %v2403
    %v2405 = vpop.f32.mrb[0].mxu0
    %2406 = vmatprep.mubr.bf16.mxu0 %v59
    %2407 = vmatmul.mubr.bf16.gmra.mrb[0].mxu0 %v58
    %v2408 = vpop.f32.mrb[0].mxu0
    %v2409 = vadd.f32 0.0, %v2408
    %v2410 = vpop.f32.mrb[0].mxu0
    %v2411 = vpop.f32.mrb[0].mxu0
    %v2412 = vadd.f32 0.0, %v2411
    %v2413 = vpop.f32.mrb[0].mxu0
    %2414 = vmatprep.mubr.bf16.mxu0 %v61
    %2415 = vmatmul.mubr.bf16.gmra.mrb[0].mxu0 %v60
    %v2416 = vpop.f32.mrb[0].mxu0
    %v2417 = vadd.f32 0.0, %v2416
    %v2418 = vpop.f32.mrb[0].mxu0
    %v2419 = vpop.f32.mrb[0].mxu0
    %v2420 = vadd.f32 0.0, %v2419
    %v2421 = vpop.f32.mrb[0].mxu0
    %2422 = vmatprep.mubr.bf16.mxu0 %v63
    %2423 = vmatmul.mubr.bf16.gmra.mrb[0].mxu0 %v62
    %v2424 = vpop.f32.mrb[0].mxu0
    %v2425 = vadd.f32 0.0, %v2424
    %v2426 = vpop.f32.mrb[0].mxu0
    %v2427 = vpop.f32.mrb[0].mxu0
    %v2428 = vadd.f32 0.0, %v2427
    %v2429 = vpop.f32.mrb[0].mxu0
    %2430 = vmatprep.mubr.bf16.mxu0 %v65
    %2431 = vmatmul.mubr.bf16.gmra.mrb[0].mxu0 %v64
    %v2432 = vpop.f32.mrb[0].mxu0
    %v2433 = vadd.f32 0.0, %v2432
    %v2434 = vpop.f32.mrb[0].mxu0
    %v2435 = vpop.f32.mrb[0].mxu0
    %v2436 = vadd.f32 0.0, %v2435
    %v2437 = vpop.f32.mrb[0].mxu0
    %2438 = vmatprep.mubr.bf16.mxu0 %v67
    %2439 = vmatmul.mubr.bf16.gmra.mrb[0].mxu0 %v66
    %v2440 = vpop.f32.mrb[0].mxu0
    %v2441 = vadd.f32 0.0, %v2440
    %v2442 = vpop.f32.mrb[0].mxu0
    %v2443 = vpop.f32.mrb[0].mxu0
    %v2444 = vadd.f32 0.0, %v2443
    %v2445 = vpop.f32.mrb[0].mxu0
    %2446 = vmatprep.mubr.bf16.mxu0 %v69
    %2447 = vmatmul.mubr.bf16.gmra.mrb[0].mxu0 %v68
    %v2448 = vpop.f32.mrb[0].mxu0
    %v2449 = vadd.f32 0.0, %v2448
    %v2450 = vpop.f32.mrb[0].mxu0
    %v2451 = vpop.f32.mrb[0].mxu0
    %v2452 = vadd.f32 0.0, %v2451
    %v2453 = vpop.f32.mrb[0].mxu0
    %2454 = vmatprep.mubr.bf16.mxu0 %v71
    %2455 = vmatmul.mubr.bf16.gmra.mrb[0].mxu0 %v70
    %v2456 = vpop.f32.mrb[0].mxu0
    %v2457 = vadd.f32 0.0, %v2456
    %v2458 = vpop.f32.mrb[0].mxu0
    %v2459 = vpop.f32.mrb[0].mxu0
    %v2460 = vadd.f32 0.0, %v2459
    %v2461 = vpop.f32.mrb[0].mxu0
    %2462 = vmatprep.mubr.bf16.mxu0 %v73
    %2463 = vmatmul.mubr.bf16.gmra.mrb[0].mxu0 %v72
    %v2464 = vpop.f32.mrb[0].mxu0
    %v2465 = vadd.f32 0.0, %v2464
    %v2466 = vpop.f32.mrb[0].mxu0
    %v2467 = vpop.f32.mrb[0].mxu0
    %v2468 = vadd.f32 0.0, %v2467
    %v2469 = vpop.f32.mrb[0].mxu0
    %2470 = vmatprep.mubr.bf16.mxu0 %v75
    %2471 = vmatmul.mubr.bf16.gmra.mrb[0].mxu0 %v74
    %v2472 = vpop.f32.mrb[0].mxu0
    %v2473 = vadd.f32 0.0, %v2472
    %v2474 = vpop.f32.mrb[0].mxu0
    %v2475 = vpop.f32.mrb[0].mxu0
    %v2476 = vadd.f32 0.0, %v2475
    %v2477 = vpop.f32.mrb[0].mxu0
    %2478 = vdwg.mxu0
    %v2479 = vmul.f32 %v2353, %v329
    %v2480 = vmul.f32 %v2356, %v334
    %v2481 = vmul.f32 %v2361, %v339
    %v2482 = vmul.f32 %v2364, %v344
    %v2483 = vmul.f32 %v2369, %v349
    %v2484 = vmul.f32 %v2372, %v354
    %v2485 = vmul.f32 %v2377, %v359
    %v2486 = vmul.f32 %v2380, %v364
    %v2487 = vmul.f32 %v2385, %v369
    %v2488 = vmul.f32 %v2388, %v374
    %v2489 = vmul.f32 %v2393, %v379
    %v2490 = vmul.f32 %v2396, %v384
    %v2491 = vmul.f32 %v2401, %v389
    %v2492 = vmul.f32 %v2404, %v394
    %v2493 = vmul.f32 %v2409, %v399
    %v2494 = vmul.f32 %v2412, %v404
    %v2495 = vmul.f32 %v2417, %v409
    %v2496 = vmul.f32 %v2420, %v414
    %v2497 = vmul.f32 %v2425, %v419
    %v2498 = vmul.f32 %v2428, %v424
    %v2499 = vmul.f32 %v2433, %v429
    %v2500 = vmul.f32 %v2436, %v434
    %v2501 = vmul.f32 %v2441, %v439
    %v2502 = vmul.f32 %v2444, %v444
    %v2503 = vmul.f32 %v2449, %v449
    %v2504 = vmul.f32 %v2452, %v454
    %v2505 = vmul.f32 %v2457, %v459
    %v2506 = vmul.f32 %v2460, %v464
    %v2507 = vmul.f32 %v2465, %v469
    %v2508 = vmul.f32 %v2468, %v474
    %v2509 = vmul.f32 %v2473, %v479
    %v2510 = vmul.f32 %v2476, %v484
    %v2512 = vsel %vm518, %v2479, 0
    %v2515 = vsel %vm518, %v2480, 0
    %v2518 = vsel %vm518, %v2481, 0
    %v2521 = vsel %vm518, %v2482, 0
    %v2524 = vsel %vm518, %v2483, 0
    %v2527 = vsel %vm518, %v2484, 0
    %v2530 = vsel %vm518, %v2485, 0
    %v2533 = vsel %vm518, %v2486, 0
    %v2536 = vsel %vm518, %v2487, 0
    %v2539 = vsel %vm518, %v2488, 0
    %v2542 = vsel %vm518, %v2489, 0
    %v2545 = vsel %vm518, %v2490, 0
    %v2548 = vsel %vm518, %v2491, 0
    %v2551 = vsel %vm518, %v2492, 0
    %v2554 = vsel %vm518, %v2493, 0
    %v2557 = vsel %vm518, %v2494, 0
    %v2560 = vsel %vm518, %v2495, 0
    %v2563 = vsel %vm518, %v2496, 0
    %v2566 = vsel %vm518, %v2497, 0
    %v2569 = vsel %vm518, %v2498, 0
    %v2572 = vsel %vm518, %v2499, 0
    %v2575 = vsel %vm518, %v2500, 0
    %v2578 = vsel %vm518, %v2501, 0
    %v2581 = vsel %vm518, %v2502, 0
    %v2584 = vsel %vm518, %v2503, 0
    %v2587 = vsel %vm518, %v2504, 0
    %v2590 = vsel %vm518, %v2505, 0
    %v2593 = vsel %vm518, %v2506, 0
    %v2596 = vsel %vm518, %v2507, 0
    %v2599 = vsel %vm518, %v2508, 0
    %v2602 = vsel %vm518, %v2509, 0
    %v2605 = vsel %vm518, %v2510, 0
    %2607 = vmatprep.subr.mxu0 0.0
    %2608 = vmatpush1.msra.mxu0 %v2296
    %2609 = vmatprep.subr.mxu0 0.0
    %2610 = vmatpush1.msra.mxu0 %v2297
    %2611 = vmatprep.subr.mxu0 0.0
    %2612 = vmatpush1.msra.mxu0 %v2298
    %2613 = vmatprep.subr.mxu0 0.0
    %2614 = vmatpush1.msra.mxu0 %v2299
    %2615 = vmatprep.subr.mxu0 0.0
    %2616 = vmatpush1.msra.mxu0 0.0
    %2617 = vmatprep.subr.mxu0 0.0
    %2618 = vmatpush1.msra.mxu0 0.0
    %2619 = vmatprep.subr.mxu0 0.0
    %2620 = vmatpush1.msra.mxu0 0.0
    %2621 = vmatprep.subr.mxu0 0.0
    %2622 = vmatpush1.msra.mxu0 0.0
    %2623 = vmatprep.subr.mxu0 0.0
    %2624 = vmatpush1.msra.mxu0 0.0
    %2625 = vmatprep.subr.mxu0 0.0
    %2626 = vmatpush1.msra.mxu0 0.0
    %2627 = vmatprep.subr.mxu0 0.0
    %2628 = vmatpush1.msra.mxu0 0.0
    %2629 = vmatprep.subr.mxu0 0.0
    %2630 = vmatpush1.msra.mxu0 0.0
    %2631 = vmatprep.subr.mxu0 0.0
    %2632 = vmatpush1.msra.mxu0 0.0
    %2633 = vmatprep.subr.mxu0 0.0
    %2634 = vmatpush1.msra.mxu0 0.0
    %2635 = vmatprep.subr.mxu0 0.0
    %2636 = vmatpush1.msra.mxu0 0.0
    %2637 = vmatprep.subr.mxu0 0.0
    %2638 = vmatpush1.msra.mxu0 0.0
    %2639 = vmatprep.subr.mxu0 0.0
    %2640 = vmatpush1.msra.mxu0 0.0
    %2641 = vmatprep.subr.mxu0 0.0
    %2642 = vmatpush1.msra.mxu0 0.0
    %2643 = vmatprep.subr.mxu0 0.0
    %2644 = vmatpush1.msra.mxu0 0.0
    %2645 = vmatprep.subr.mxu0 0.0
    %2646 = vmatpush1.msra.mxu0 0.0
    %2647 = vmatprep.subr.mxu0 0.0
    %2648 = vmatpush1.msra.mxu0 0.0
    %2649 = vmatprep.subr.mxu0 0.0
    %2650 = vmatpush1.msra.mxu0 0.0
    %2651 = vmatprep.subr.mxu0 0.0
    %2652 = vmatpush1.msra.mxu0 0.0
    %2653 = vmatprep.subr.mxu0 0.0
    %2654 = vmatpush1.msra.mxu0 0.0
    %2655 = vmatprep.subr.mxu0 0.0
    %2656 = vmatpush1.msra.mxu0 0.0
    %2657 = vmatprep.subr.mxu0 0.0
    %2658 = vmatpush1.msra.mxu0 0.0
    %2659 = vmatprep.subr.mxu0 0.0
    %2660 = vmatpush1.msra.mxu0 0.0
    %2661 = vmatprep.subr.mxu0 0.0
    %2662 = vmatpush1.msra.mxu0 0.0
    %2663 = vmatprep.subr.mxu0 0.0
    %2664 = vmatpush1.msra.mxu0 0.0
    %2665 = vmatprep.subr.mxu0 0.0
    %2666 = vmatpush1.msra.mxu0 0.0
    %2667 = vmatprep.subr.mxu0 0.0
    %2668 = vmatpush1.msra.mxu0 0.0
    %2669 = vmatprep.subr.mxu0 0.0
    %2670 = vmatpush1.msra.mxu0 0.0
    %2671 = vmatprep.mubr.f32.mxu0 0.0
    %2672 = vmatmul.mubr.f32.gmra.mrb[0].mxu0 %v2512
    %v2673 = vpop.f32.mrb[0].mxu0
    %v2674 = vadd.f32 0.0, %v2673
    %v2675 = vpop.f32.mrb[0].mxu0
    %2676 = vmatprep.mubr.f32.mxu0 0.0
    %2677 = vmatmul.mubr.f32.gmra.mrb[0].mxu0 %v2515
    %v2678 = vpop.f32.mrb[0].mxu0
    %v2679 = vadd.f32 0.0, %v2678
    %v2680 = vpop.f32.mrb[0].mxu0
    %2681 = vmatprep.mubr.f32.mxu0 0.0
    %2682 = vmatmul.mubr.f32.gmra.mrb[0].mxu0 %v2518
    %v2683 = vpop.f32.mrb[0].mxu0
    %v2684 = vadd.f32 0.0, %v2683
    %v2685 = vpop.f32.mrb[0].mxu0
    %2686 = vmatprep.mubr.f32.mxu0 0.0
    %2687 = vmatmul.mubr.f32.gmra.mrb[0].mxu0 %v2521
    %v2688 = vpop.f32.mrb[0].mxu0
    %v2689 = vadd.f32 0.0, %v2688
    %v2690 = vpop.f32.mrb[0].mxu0
    %2691 = vmatprep.mubr.f32.mxu0 0.0
    %2692 = vmatmul.mubr.f32.gmra.mrb[0].mxu0 %v2524
    %v2693 = vpop.f32.mrb[0].mxu0
    %v2694 = vadd.f32 0.0, %v2693
    %v2695 = vpop.f32.mrb[0].mxu0
    %2696 = vmatprep.mubr.f32.mxu0 0.0
    %2697 = vmatmul.mubr.f32.gmra.mrb[0].mxu0 %v2527
    %v2698 = vpop.f32.mrb[0].mxu0
    %v2699 = vadd.f32 0.0, %v2698
    %v2700 = vpop.f32.mrb[0].mxu0
    %2701 = vmatprep.mubr.f32.mxu0 0.0
    %2702 = vmatmul.mubr.f32.gmra.mrb[0].mxu0 %v2530
    %v2703 = vpop.f32.mrb[0].mxu0
    %v2704 = vadd.f32 0.0, %v2703
    %v2705 = vpop.f32.mrb[0].mxu0
    %2706 = vmatprep.mubr.f32.mxu0 0.0
    %2707 = vmatmul.mubr.f32.gmra.mrb[0].mxu0 %v2533
    %v2708 = vpop.f32.mrb[0].mxu0
    %v2709 = vadd.f32 0.0, %v2708
    %v2710 = vpop.f32.mrb[0].mxu0
    %2711 = vmatprep.mubr.f32.mxu0 0.0
    %2712 = vmatmul.mubr.f32.gmra.mrb[0].mxu0 %v2536
    %v2713 = vpop.f32.mrb[0].mxu0
    %v2714 = vadd.f32 0.0, %v2713
    %v2715 = vpop.f32.mrb[0].mxu0
    %2716 = vmatprep.mubr.f32.mxu0 0.0
    %2717 = vmatmul.mubr.f32.gmra.mrb[0].mxu0 %v2539
    %v2718 = vpop.f32.mrb[0].mxu0
    %v2719 = vadd.f32 0.0, %v2718
    %v2720 = vpop.f32.mrb[0].mxu0
    %2721 = vmatprep.mubr.f32.mxu0 0.0
    %2722 = vmatmul.mubr.f32.gmra.mrb[0].mxu0 %v2542
    %v2723 = vpop.f32.mrb[0].mxu0
    %v2724 = vadd.f32 0.0, %v2723
    %v2725 = vpop.f32.mrb[0].mxu0
    %2726 = vmatprep.mubr.f32.mxu0 0.0
    %2727 = vmatmul.mubr.f32.gmra.mrb[0].mxu0 %v2545
    %v2728 = vpop.f32.mrb[0].mxu0
    %v2729 = vadd.f32 0.0, %v2728
    %v2730 = vpop.f32.mrb[0].mxu0
    %2731 = vmatprep.mubr.f32.mxu0 0.0
    %2732 = vmatmul.mubr.f32.gmra.mrb[0].mxu0 %v2548
    %v2733 = vpop.f32.mrb[0].mxu0
    %v2734 = vadd.f32 0.0, %v2733
    %v2735 = vpop.f32.mrb[0].mxu0
    %2736 = vmatprep.mubr.f32.mxu0 0.0
    %2737 = vmatmul.mubr.f32.gmra.mrb[0].mxu0 %v2551
    %v2738 = vpop.f32.mrb[0].mxu0
    %v2739 = vadd.f32 0.0, %v2738
    %v2740 = vpop.f32.mrb[0].mxu0
    %2741 = vmatprep.mubr.f32.mxu0 0.0
    %2742 = vmatmul.mubr.f32.gmra.mrb[0].mxu0 %v2554
    %v2743 = vpop.f32.mrb[0].mxu0
    %v2744 = vadd.f32 0.0, %v2743
    %v2745 = vpop.f32.mrb[0].mxu0
    %2746 = vmatprep.mubr.f32.mxu0 0.0
    %2747 = vmatmul.mubr.f32.gmra.mrb[0].mxu0 %v2557
    %v2748 = vpop.f32.mrb[0].mxu0
    %v2749 = vadd.f32 0.0, %v2748
    %v2750 = vpop.f32.mrb[0].mxu0
    %2751 = vmatprep.mubr.f32.mxu0 0.0
    %2752 = vmatmul.mubr.f32.gmra.mrb[0].mxu0 %v2560
    %v2753 = vpop.f32.mrb[0].mxu0
    %v2754 = vadd.f32 0.0, %v2753
    %v2755 = vpop.f32.mrb[0].mxu0
    %2756 = vmatprep.mubr.f32.mxu0 0.0
    %2757 = vmatmul.mubr.f32.gmra.mrb[0].mxu0 %v2563
    %v2758 = vpop.f32.mrb[0].mxu0
    %v2759 = vadd.f32 0.0, %v2758
    %v2760 = vpop.f32.mrb[0].mxu0
    %2761 = vmatprep.mubr.f32.mxu0 0.0
    %2762 = vmatmul.mubr.f32.gmra.mrb[0].mxu0 %v2566
    %v2763 = vpop.f32.mrb[0].mxu0
    %v2764 = vadd.f32 0.0, %v2763
    %v2765 = vpop.f32.mrb[0].mxu0
    %2766 = vmatprep.mubr.f32.mxu0 0.0
    %2767 = vmatmul.mubr.f32.gmra.mrb[0].mxu0 %v2569
    %v2768 = vpop.f32.mrb[0].mxu0
    %v2769 = vadd.f32 0.0, %v2768
    %v2770 = vpop.f32.mrb[0].mxu0
    %2771 = vmatprep.mubr.f32.mxu0 0.0
    %2772 = vmatmul.mubr.f32.gmra.mrb[0].mxu0 %v2572
    %v2773 = vpop.f32.mrb[0].mxu0
    %v2774 = vadd.f32 0.0, %v2773
    %v2775 = vpop.f32.mrb[0].mxu0
    %2776 = vmatprep.mubr.f32.mxu0 0.0
    %2777 = vmatmul.mubr.f32.gmra.mrb[0].mxu0 %v2575
    %v2778 = vpop.f32.mrb[0].mxu0
    %v2779 = vadd.f32 0.0, %v2778
    %v2780 = vpop.f32.mrb[0].mxu0
    %2781 = vmatprep.mubr.f32.mxu0 0.0
    %2782 = vmatmul.mubr.f32.gmra.mrb[0].mxu0 %v2578
    %v2783 = vpop.f32.mrb[0].mxu0
    %v2784 = vadd.f32 0.0, %v2783
    %v2785 = vpop.f32.mrb[0].mxu0
    %2786 = vmatprep.mubr.f32.mxu0 0.0
    %2787 = vmatmul.mubr.f32.gmra.mrb[0].mxu0 %v2581
    %v2788 = vpop.f32.mrb[0].mxu0
    %v2789 = vadd.f32 0.0, %v2788
    %v2790 = vpop.f32.mrb[0].mxu0
    %2791 = vmatprep.mubr.f32.mxu0 0.0
    %2792 = vmatmul.mubr.f32.gmra.mrb[0].mxu0 %v2584
    %v2793 = vpop.f32.mrb[0].mxu0
    %v2794 = vadd.f32 0.0, %v2793
    %v2795 = vpop.f32.mrb[0].mxu0
    %2796 = vmatprep.mubr.f32.mxu0 0.0
    %2797 = vmatmul.mubr.f32.gmra.mrb[0].mxu0 %v2587
    %v2798 = vpop.f32.mrb[0].mxu0
    %v2799 = vadd.f32 0.0, %v2798
    %v2800 = vpop.f32.mrb[0].mxu0
    %2801 = vmatprep.mubr.f32.mxu0 0.0
    %2802 = vmatmul.mubr.f32.gmra.mrb[0].mxu0 %v2590
    %v2803 = vpop.f32.mrb[0].mxu0
    %v2804 = vadd.f32 0.0, %v2803
    %v2805 = vpop.f32.mrb[0].mxu0
    %2806 = vmatprep.mubr.f32.mxu0 0.0
    %2807 = vmatmul.mubr.f32.gmra.mrb[0].mxu0 %v2593
    %v2808 = vpop.f32.mrb[0].mxu0
    %v2809 = vadd.f32 0.0, %v2808
    %v2810 = vpop.f32.mrb[0].mxu0
    %2811 = vmatprep.mubr.f32.mxu0 0.0
    %2812 = vmatmul.mubr.f32.gmra.mrb[0].mxu0 %v2596
    %v2813 = vpop.f32.mrb[0].mxu0
    %v2814 = vadd.f32 0.0, %v2813
    %v2815 = vpop.f32.mrb[0].mxu0
    %2816 = vmatprep.mubr.f32.mxu0 0.0
    %2817 = vmatmul.mubr.f32.gmra.mrb[0].mxu0 %v2599
    %v2818 = vpop.f32.mrb[0].mxu0
    %v2819 = vadd.f32 0.0, %v2818
    %v2820 = vpop.f32.mrb[0].mxu0
    %2821 = vmatprep.mubr.f32.mxu0 0.0
    %2822 = vmatmul.mubr.f32.gmra.mrb[0].mxu0 %v2602
    %v2823 = vpop.f32.mrb[0].mxu0
    %v2824 = vadd.f32 0.0, %v2823
    %v2825 = vpop.f32.mrb[0].mxu0
    %2826 = vmatprep.mubr.f32.mxu0 0.0
    %2827 = vmatmul.mubr.f32.gmra.mrb[0].mxu0 %v2605
    %v2828 = vpop.f32.mrb[0].mxu0
    %v2829 = vadd.f32 0.0, %v2828
    %v2830 = vpop.f32.mrb[0].mxu0
    %2831 = vdwg.mxu0
    %v2833 = vsel %vm518, %v2259, 0
    %v2836 = vsel %vm518, %v2260, 0
    %v2839 = vsel %vm518, %v2261, 0
    %v2842 = vsel %vm518, %v2262, 0
    %v2845 = vsel %vm518, %v2263, 0
    %v2848 = vsel %vm518, %v2264, 0
    %v2851 = vsel %vm518, %v2265, 0
    %v2854 = vsel %vm518, %v2266, 0
    %v2857 = vsel %vm518, %v2267, 0
    %v2860 = vsel %vm518, %v2268, 0
    %v2863 = vsel %vm518, %v2269, 0
    %v2866 = vsel %vm518, %v2270, 0
    %v2869 = vsel %vm518, %v2271, 0
    %v2872 = vsel %vm518, %v2272, 0
    %v2875 = vsel %vm518, %v2273, 0
    %v2878 = vsel %vm518, %v2274, 0
    %v2881 = vsel %vm518, %v2275, 0
    %v2884 = vsel %vm518, %v2276, 0
    %v2887 = vsel %vm518, %v2277, 0
    %v2890 = vsel %vm518, %v2278, 0
    %v2893 = vsel %vm518, %v2279, 0
    %v2896 = vsel %vm518, %v2280, 0
    %v2899 = vsel %vm518, %v2281, 0
    %v2902 = vsel %vm518, %v2282, 0
    %v2905 = vsel %vm518, %v2283, 0
    %v2908 = vsel %vm518, %v2284, 0
    %v2911 = vsel %vm518, %v2285, 0
    %v2914 = vsel %vm518, %v2286, 0
    %v2917 = vsel %vm518, %v2287, 0
    %v2920 = vsel %vm518, %v2288, 0
    %v2923 = vsel %vm518, %v2289, 0
    %v2926 = vsel %vm518, %v2290, 0
    %2928 = vmatprep.subr.mxu0 0.0
    %2929 = vmatpush1.msra.mxu0 %v2292
    %2930 = vmatprep.subr.mxu0 0.0
    %2931 = vmatpush1.msra.mxu0 %v2293
    %2932 = vmatprep.subr.mxu0 0.0
    %2933 = vmatpush1.msra.mxu0 %v2294
    %2934 = vmatprep.subr.mxu0 0.0
    %2935 = vmatpush1.msra.mxu0 %v2295
    %2936 = vmatprep.subr.mxu0 0.0
    %2937 = vmatpush1.msra.mxu0 0.0
    %2938 = vmatprep.subr.mxu0 0.0
    %2939 = vmatpush1.msra.mxu0 0.0
    %2940 = vmatprep.subr.mxu0 0.0
    %2941 = vmatpush1.msra.mxu0 0.0
    %2942 = vmatprep.subr.mxu0 0.0
    %2943 = vmatpush1.msra.mxu0 0.0
    %2944 = vmatprep.subr.mxu0 0.0
    %2945 = vmatpush1.msra.mxu0 0.0
    %2946 = vmatprep.subr.mxu0 0.0
    %2947 = vmatpush1.msra.mxu0 0.0
    %2948 = vmatprep.subr.mxu0 0.0
    %2949 = vmatpush1.msra.mxu0 0.0
    %2950 = vmatprep.subr.mxu0 0.0
    %2951 = vmatpush1.msra.mxu0 0.0
    %2952 = vmatprep.subr.mxu0 0.0
    %2953 = vmatpush1.msra.mxu0 0.0
    %2954 = vmatprep.subr.mxu0 0.0
    %2955 = vmatpush1.msra.mxu0 0.0
    %2956 = vmatprep.subr.mxu0 0.0
    %2957 = vmatpush1.msra.mxu0 0.0
    %2958 = vmatprep.subr.mxu0 0.0
    %2959 = vmatpush1.msra.mxu0 0.0
    %2960 = vmatprep.subr.mxu0 0.0
    %2961 = vmatpush1.msra.mxu0 0.0
    %2962 = vmatprep.subr.mxu0 0.0
    %2963 = vmatpush1.msra.mxu0 0.0
    %2964 = vmatprep.subr.mxu0 0.0
    %2965 = vmatpush1.msra.mxu0 0.0
    %2966 = vmatprep.subr.mxu0 0.0
    %2967 = vmatpush1.msra.mxu0 0.0
    %2968 = vmatprep.subr.mxu0 0.0
    %2969 = vmatpush1.msra.mxu0 0.0
    %2970 = vmatprep.subr.mxu0 0.0
    %2971 = vmatpush1.msra.mxu0 0.0
    %2972 = vmatprep.subr.mxu0 0.0
    %2973 = vmatpush1.msra.mxu0 0.0
    %2974 = vmatprep.subr.mxu0 0.0
    %2975 = vmatpush1.msra.mxu0 0.0
    %2976 = vmatprep.subr.mxu0 0.0
    %2977 = vmatpush1.msra.mxu0 0.0
    %2978 = vmatprep.subr.mxu0 0.0
    %2979 = vmatpush1.msra.mxu0 0.0
    %2980 = vmatprep.subr.mxu0 0.0
    %2981 = vmatpush1.msra.mxu0 0.0
    %2982 = vmatprep.subr.mxu0 0.0
    %2983 = vmatpush1.msra.mxu0 0.0
    %2984 = vmatprep.subr.mxu0 0.0
    %2985 = vmatpush1.msra.mxu0 0.0
    %2986 = vmatprep.subr.mxu0 0.0
    %2987 = vmatpush1.msra.mxu0 0.0
    %2988 = vmatprep.subr.mxu0 0.0
    %2989 = vmatpush1.msra.mxu0 0.0
    %2990 = vmatprep.subr.mxu0 0.0
    %2991 = vmatpush1.msra.mxu0 0.0
    %2992 = vmatprep.mubr.f32.mxu0 0.0
    %2993 = vmatmul.mubr.f32.gmra.mrb[0].mxu0 %v2833
    %v2994 = vpop.f32.mrb[0].mxu0
    %v2995 = vadd.f32 %v2674, %v2994
    %v2996 = vpop.f32.mrb[0].mxu0
    %2997 = vmatprep.mubr.f32.mxu0 0.0
    %2998 = vmatmul.mubr.f32.gmra.mrb[0].mxu0 %v2836
    %v2999 = vpop.f32.mrb[0].mxu0
    %v3000 = vadd.f32 %v2679, %v2999
    %v3001 = vpop.f32.mrb[0].mxu0
    %3002 = vmatprep.mubr.f32.mxu0 0.0
    %3003 = vmatmul.mubr.f32.gmra.mrb[0].mxu0 %v2839
    %v3004 = vpop.f32.mrb[0].mxu0
    %v3005 = vadd.f32 %v2684, %v3004
    %v3006 = vpop.f32.mrb[0].mxu0
    %3007 = vmatprep.mubr.f32.mxu0 0.0
    %3008 = vmatmul.mubr.f32.gmra.mrb[0].mxu0 %v2842
    %v3009 = vpop.f32.mrb[0].mxu0
    %v3010 = vadd.f32 %v2689, %v3009
    %v3011 = vpop.f32.mrb[0].mxu0
    %3012 = vmatprep.mubr.f32.mxu0 0.0
    %3013 = vmatmul.mubr.f32.gmra.mrb[0].mxu0 %v2845
    %v3014 = vpop.f32.mrb[0].mxu0
    %v3015 = vadd.f32 %v2694, %v3014
    %v3016 = vpop.f32.mrb[0].mxu0
    %3017 = vmatprep.mubr.f32.mxu0 0.0
    %3018 = vmatmul.mubr.f32.gmra.mrb[0].mxu0 %v2848
    %v3019 = vpop.f32.mrb[0].mxu0
    %v3020 = vadd.f32 %v2699, %v3019
    %v3021 = vpop.f32.mrb[0].mxu0
    %3022 = vmatprep.mubr.f32.mxu0 0.0
    %3023 = vmatmul.mubr.f32.gmra.mrb[0].mxu0 %v2851
    %v3024 = vpop.f32.mrb[0].mxu0
    %v3025 = vadd.f32 %v2704, %v3024
    %v3026 = vpop.f32.mrb[0].mxu0
    %3027 = vmatprep.mubr.f32.mxu0 0.0
    %3028 = vmatmul.mubr.f32.gmra.mrb[0].mxu0 %v2854
    %v3029 = vpop.f32.mrb[0].mxu0
    %v3030 = vadd.f32 %v2709, %v3029
    %v3031 = vpop.f32.mrb[0].mxu0
    %3032 = vmatprep.mubr.f32.mxu0 0.0
    %3033 = vmatmul.mubr.f32.gmra.mrb[0].mxu0 %v2857
    %v3034 = vpop.f32.mrb[0].mxu0
    %v3035 = vadd.f32 %v2714, %v3034
    %v3036 = vpop.f32.mrb[0].mxu0
    %3037 = vmatprep.mubr.f32.mxu0 0.0
    %3038 = vmatmul.mubr.f32.gmra.mrb[0].mxu0 %v2860
    %v3039 = vpop.f32.mrb[0].mxu0
    %v3040 = vadd.f32 %v2719, %v3039
    %v3041 = vpop.f32.mrb[0].mxu0
    %3042 = vmatprep.mubr.f32.mxu0 0.0
    %3043 = vmatmul.mubr.f32.gmra.mrb[0].mxu0 %v2863
    %v3044 = vpop.f32.mrb[0].mxu0
    %v3045 = vadd.f32 %v2724, %v3044
    %v3046 = vpop.f32.mrb[0].mxu0
    %3047 = vmatprep.mubr.f32.mxu0 0.0
    %3048 = vmatmul.mubr.f32.gmra.mrb[0].mxu0 %v2866
    %v3049 = vpop.f32.mrb[0].mxu0
    %v3050 = vadd.f32 %v2729, %v3049
    %v3051 = vpop.f32.mrb[0].mxu0
    %3052 = vmatprep.mubr.f32.mxu0 0.0
    %3053 = vmatmul.mubr.f32.gmra.mrb[0].mxu0 %v2869
    %v3054 = vpop.f32.mrb[0].mxu0
    %v3055 = vadd.f32 %v2734, %v3054
    %v3056 = vpop.f32.mrb[0].mxu0
    %3057 = vmatprep.mubr.f32.mxu0 0.0
    %3058 = vmatmul.mubr.f32.gmra.mrb[0].mxu0 %v2872
    %v3059 = vpop.f32.mrb[0].mxu0
    %v3060 = vadd.f32 %v2739, %v3059
    %v3061 = vpop.f32.mrb[0].mxu0
    %3062 = vmatprep.mubr.f32.mxu0 0.0
    %3063 = vmatmul.mubr.f32.gmra.mrb[0].mxu0 %v2875
    %v3064 = vpop.f32.mrb[0].mxu0
    %v3065 = vadd.f32 %v2744, %v3064
    %v3066 = vpop.f32.mrb[0].mxu0
    %3067 = vmatprep.mubr.f32.mxu0 0.0
    %3068 = vmatmul.mubr.f32.gmra.mrb[0].mxu0 %v2878
    %v3069 = vpop.f32.mrb[0].mxu0
    %v3070 = vadd.f32 %v2749, %v3069
    %v3071 = vpop.f32.mrb[0].mxu0
    %3072 = vmatprep.mubr.f32.mxu0 0.0
    %3073 = vmatmul.mubr.f32.gmra.mrb[0].mxu0 %v2881
    %v3074 = vpop.f32.mrb[0].mxu0
    %v3075 = vadd.f32 %v2754, %v3074
    %v3076 = vpop.f32.mrb[0].mxu0
    %3077 = vmatprep.mubr.f32.mxu0 0.0
    %3078 = vmatmul.mubr.f32.gmra.mrb[0].mxu0 %v2884
    %v3079 = vpop.f32.mrb[0].mxu0
    %v3080 = vadd.f32 %v2759, %v3079
    %v3081 = vpop.f32.mrb[0].mxu0
    %3082 = vmatprep.mubr.f32.mxu0 0.0
    %3083 = vmatmul.mubr.f32.gmra.mrb[0].mxu0 %v2887
    %v3084 = vpop.f32.mrb[0].mxu0
    %v3085 = vadd.f32 %v2764, %v3084
    %v3086 = vpop.f32.mrb[0].mxu0
    %3087 = vmatprep.mubr.f32.mxu0 0.0
    %3088 = vmatmul.mubr.f32.gmra.mrb[0].mxu0 %v2890
    %v3089 = vpop.f32.mrb[0].mxu0
    %v3090 = vadd.f32 %v2769, %v3089
    %v3091 = vpop.f32.mrb[0].mxu0
    %3092 = vmatprep.mubr.f32.mxu0 0.0
    %3093 = vmatmul.mubr.f32.gmra.mrb[0].mxu0 %v2893
    %v3094 = vpop.f32.mrb[0].mxu0
    %v3095 = vadd.f32 %v2774, %v3094
    %v3096 = vpop.f32.mrb[0].mxu0
    %3097 = vmatprep.mubr.f32.mxu0 0.0
    %3098 = vmatmul.mubr.f32.gmra.mrb[0].mxu0 %v2896
    %v3099 = vpop.f32.mrb[0].mxu0
    %v3100 = vadd.f32 %v2779, %v3099
    %v3101 = vpop.f32.mrb[0].mxu0
    %3102 = vmatprep.mubr.f32.mxu0 0.0
    %3103 = vmatmul.mubr.f32.gmra.mrb[0].mxu0 %v2899
    %v3104 = vpop.f32.mrb[0].mxu0
    %v3105 = vadd.f32 %v2784, %v3104
    %v3106 = vpop.f32.mrb[0].mxu0
    %3107 = vmatprep.mubr.f32.mxu0 0.0
    %3108 = vmatmul.mubr.f32.gmra.mrb[0].mxu0 %v2902
    %v3109 = vpop.f32.mrb[0].mxu0
    %v3110 = vadd.f32 %v2789, %v3109
    %v3111 = vpop.f32.mrb[0].mxu0
    %3112 = vmatprep.mubr.f32.mxu0 0.0
    %3113 = vmatmul.mubr.f32.gmra.mrb[0].mxu0 %v2905
    %v3114 = vpop.f32.mrb[0].mxu0
    %v3115 = vadd.f32 %v2794, %v3114
    %v3116 = vpop.f32.mrb[0].mxu0
    %3117 = vmatprep.mubr.f32.mxu0 0.0
    %3118 = vmatmul.mubr.f32.gmra.mrb[0].mxu0 %v2908
    %v3119 = vpop.f32.mrb[0].mxu0
    %v3120 = vadd.f32 %v2799, %v3119
    %v3121 = vpop.f32.mrb[0].mxu0
    %3122 = vmatprep.mubr.f32.mxu0 0.0
    %3123 = vmatmul.mubr.f32.gmra.mrb[0].mxu0 %v2911
    %v3124 = vpop.f32.mrb[0].mxu0
    %v3125 = vadd.f32 %v2804, %v3124
    %v3126 = vpop.f32.mrb[0].mxu0
    %3127 = vmatprep.mubr.f32.mxu0 0.0
    %3128 = vmatmul.mubr.f32.gmra.mrb[0].mxu0 %v2914
    %v3129 = vpop.f32.mrb[0].mxu0
    %v3130 = vadd.f32 %v2809, %v3129
    %v3131 = vpop.f32.mrb[0].mxu0
    %3132 = vmatprep.mubr.f32.mxu0 0.0
    %3133 = vmatmul.mubr.f32.gmra.mrb[0].mxu0 %v2917
    %v3134 = vpop.f32.mrb[0].mxu0
    %v3135 = vadd.f32 %v2814, %v3134
    %v3136 = vpop.f32.mrb[0].mxu0
    %3137 = vmatprep.mubr.f32.mxu0 0.0
    %3138 = vmatmul.mubr.f32.gmra.mrb[0].mxu0 %v2920
    %v3139 = vpop.f32.mrb[0].mxu0
    %v3140 = vadd.f32 %v2819, %v3139
    %v3141 = vpop.f32.mrb[0].mxu0
    %3142 = vmatprep.mubr.f32.mxu0 0.0
    %3143 = vmatmul.mubr.f32.gmra.mrb[0].mxu0 %v2923
    %v3144 = vpop.f32.mrb[0].mxu0
    %v3145 = vadd.f32 %v2824, %v3144
    %v3146 = vpop.f32.mrb[0].mxu0
    %3147 = vmatprep.mubr.f32.mxu0 0.0
    %3148 = vmatmul.mubr.f32.gmra.mrb[0].mxu0 %v2926
    %v3149 = vpop.f32.mrb[0].mxu0
    %v3150 = vadd.f32 %v2829, %v3149
    %v3151 = vpop.f32.mrb[0].mxu0
    %3152 = vdwg.mxu0
    %v3154 = vlaneseq
    %v3155 = vshrl.u32 %v3154, 7
    %v3156 = vsub.s32 0, %v3155
    %v3157 = vrot.slane %v2301, %v3156
    %v3159 = vadd.f32 %v2995, %v3157
    %v3160 = vadd.f32 %v3000, %v3157
    %v3161 = vadd.f32 %v3005, %v3157
    %v3162 = vadd.f32 %v3010, %v3157
    %v3163 = vadd.f32 %v3015, %v3157
    %v3164 = vadd.f32 %v3020, %v3157
    %v3165 = vadd.f32 %v3025, %v3157
    %v3166 = vadd.f32 %v3030, %v3157
    %v3167 = vadd.f32 %v3035, %v3157
    %v3168 = vadd.f32 %v3040, %v3157
    %v3169 = vadd.f32 %v3045, %v3157
    %v3170 = vadd.f32 %v3050, %v3157
    %v3171 = vadd.f32 %v3055, %v3157
    %v3172 = vadd.f32 %v3060, %v3157
    %v3173 = vadd.f32 %v3065, %v3157
    %v3174 = vadd.f32 %v3070, %v3157
    %v3175 = vadd.f32 %v3075, %v3157
    %v3176 = vadd.f32 %v3080, %v3157
    %v3177 = vadd.f32 %v3085, %v3157
    %v3178 = vadd.f32 %v3090, %v3157
    %v3179 = vadd.f32 %v3095, %v3157
    %v3180 = vadd.f32 %v3100, %v3157
    %v3181 = vadd.f32 %v3105, %v3157
    %v3182 = vadd.f32 %v3110, %v3157
    %v3183 = vadd.f32 %v3115, %v3157
    %v3184 = vadd.f32 %v3120, %v3157
    %v3185 = vadd.f32 %v3125, %v3157
    %v3186 = vadd.f32 %v3130, %v3157
    %v3187 = vadd.f32 %v3135, %v3157
    %v3188 = vadd.f32 %v3140, %v3157
    %v3189 = vadd.f32 %v3145, %v3157
    %v3190 = vadd.f32 %v3150, %v3157
    %vm3191 = vcmp.ge.f32.partialorder %v3159, 0.0
    %vm3192 = vcmp.ge.f32.partialorder %v3160, 0.0
    %vm3193 = vcmp.ge.f32.partialorder %v3161, 0.0
    %vm3194 = vcmp.ge.f32.partialorder %v3162, 0.0
    %vm3195 = vcmp.ge.f32.partialorder %v3163, 0.0
    %vm3196 = vcmp.ge.f32.partialorder %v3164, 0.0
    %vm3197 = vcmp.ge.f32.partialorder %v3165, 0.0
    %vm3198 = vcmp.ge.f32.partialorder %v3166, 0.0
    %vm3199 = vcmp.ge.f32.partialorder %v3167, 0.0
    %vm3200 = vcmp.ge.f32.partialorder %v3168, 0.0
    %vm3201 = vcmp.ge.f32.partialorder %v3169, 0.0
    %vm3202 = vcmp.ge.f32.partialorder %v3170, 0.0
    %vm3203 = vcmp.ge.f32.partialorder %v3171, 0.0
    %vm3204 = vcmp.ge.f32.partialorder %v3172, 0.0
    %vm3205 = vcmp.ge.f32.partialorder %v3173, 0.0
    %vm3206 = vcmp.ge.f32.partialorder %v3174, 0.0
    %vm3207 = vcmp.ge.f32.partialorder %v3175, 0.0
    %vm3208 = vcmp.ge.f32.partialorder %v3176, 0.0
    %vm3209 = vcmp.ge.f32.partialorder %v3177, 0.0
    %vm3210 = vcmp.ge.f32.partialorder %v3178, 0.0
    %vm3211 = vcmp.ge.f32.partialorder %v3179, 0.0
    %vm3212 = vcmp.ge.f32.partialorder %v3180, 0.0
    %vm3213 = vcmp.ge.f32.partialorder %v3181, 0.0
    %vm3214 = vcmp.ge.f32.partialorder %v3182, 0.0
    %vm3215 = vcmp.ge.f32.partialorder %v3183, 0.0
    %vm3216 = vcmp.ge.f32.partialorder %v3184, 0.0
    %vm3217 = vcmp.ge.f32.partialorder %v3185, 0.0
    %vm3218 = vcmp.ge.f32.partialorder %v3186, 0.0
    %vm3219 = vcmp.ge.f32.partialorder %v3187, 0.0
    %vm3220 = vcmp.ge.f32.partialorder %v3188, 0.0
    %vm3221 = vcmp.ge.f32.partialorder %v3189, 0.0
    %vm3222 = vcmp.ge.f32.partialorder %v3190, 0.0
    %v3223 = vmul.f32 %v3159, 0.01
    %v3224 = vmul.f32 %v3160, 0.01
    %v3225 = vmul.f32 %v3161, 0.01
    %v3226 = vmul.f32 %v3162, 0.01
    %v3227 = vmul.f32 %v3163, 0.01
    %v3228 = vmul.f32 %v3164, 0.01
    %v3229 = vmul.f32 %v3165, 0.01
    %v3230 = vmul.f32 %v3166, 0.01
    %v3231 = vmul.f32 %v3167, 0.01
    %v3232 = vmul.f32 %v3168, 0.01
    %v3233 = vmul.f32 %v3169, 0.01
    %v3234 = vmul.f32 %v3170, 0.01
    %v3235 = vmul.f32 %v3171, 0.01
    %v3236 = vmul.f32 %v3172, 0.01
    %v3237 = vmul.f32 %v3173, 0.01
    %v3238 = vmul.f32 %v3174, 0.01
    %v3239 = vmul.f32 %v3175, 0.01
    %v3240 = vmul.f32 %v3176, 0.01
    %v3241 = vmul.f32 %v3177, 0.01
    %v3242 = vmul.f32 %v3178, 0.01
    %v3243 = vmul.f32 %v3179, 0.01
    %v3244 = vmul.f32 %v3180, 0.01
    %v3245 = vmul.f32 %v3181, 0.01
    %v3246 = vmul.f32 %v3182, 0.01
    %v3247 = vmul.f32 %v3183, 0.01
    %v3248 = vmul.f32 %v3184, 0.01
    %v3249 = vmul.f32 %v3185, 0.01
    %v3250 = vmul.f32 %v3186, 0.01
    %v3251 = vmul.f32 %v3187, 0.01
    %v3252 = vmul.f32 %v3188, 0.01
    %v3253 = vmul.f32 %v3189, 0.01
    %v3254 = vmul.f32 %v3190, 0.01
    %v3255 = vsel %vm3191, %v3159, %v3223
    %v3256 = vsel %vm3192, %v3160, %v3224
    %v3257 = vsel %vm3193, %v3161, %v3225
    %v3258 = vsel %vm3194, %v3162, %v3226
    %v3259 = vsel %vm3195, %v3163, %v3227
    %v3260 = vsel %vm3196, %v3164, %v3228
    %v3261 = vsel %vm3197, %v3165, %v3229
    %v3262 = vsel %vm3198, %v3166, %v3230
    %v3263 = vsel %vm3199, %v3167, %v3231
    %v3264 = vsel %vm3200, %v3168, %v3232
    %v3265 = vsel %vm3201, %v3169, %v3233
    %v3266 = vsel %vm3202, %v3170, %v3234
    %v3267 = vsel %vm3203, %v3171, %v3235
    %v3268 = vsel %vm3204, %v3172, %v3236
    %v3269 = vsel %vm3205, %v3173, %v3237
    %v3270 = vsel %vm3206, %v3174, %v3238
    %v3271 = vsel %vm3207, %v3175, %v3239
    %v3272 = vsel %vm3208, %v3176, %v3240
    %v3273 = vsel %vm3209, %v3177, %v3241
    %v3274 = vsel %vm3210, %v3178, %v3242
    %v3275 = vsel %vm3211, %v3179, %v3243
    %v3276 = vsel %vm3212, %v3180, %v3244
    %v3277 = vsel %vm3213, %v3181, %v3245
    %v3278 = vsel %vm3214, %v3182, %v3246
    %v3279 = vsel %vm3215, %v3183, %v3247
    %v3280 = vsel %vm3216, %v3184, %v3248
    %v3281 = vsel %vm3217, %v3185, %v3249
    %v3282 = vsel %vm3218, %v3186, %v3250
    %v3283 = vsel %vm3219, %v3187, %v3251
    %v3284 = vsel %vm3220, %v3188, %v3252
    %v3285 = vsel %vm3221, %v3189, %v3253
    %v3286 = vsel %vm3222, %v3190, %v3254
    %s3287 = scalar_lea.vmem %s3, 192
    %v3288 = vld [vmem:[%s3287] sm:$0xff]
    %v3289 = vld [vmem:[%s3287 + $0x8] sm:$0xff]
    %v3290 = vld [vmem:[%s3287 + $0x10] sm:$0xff]
    %v3291 = vld [vmem:[%s3287 + $0x18] sm:$0xff]
    %v3292 = vld [vmem:[%s3287 + $0x20] sm:$0xff]
    %v3293 = vld [vmem:[%s3287 + $0x28] sm:$0xff]
    %v3294 = vld [vmem:[%s3287 + $0x30] sm:$0xff]
    %v3295 = vld [vmem:[%s3287 + $0x38] sm:$0xff]
    %s3296 = scalar_lea.vmem %s4, 3
    %v3297 = vld [vmem:[%s3296] sm:$0x1]
    %v3298 = vpack.c.bf16 %v3256, %v3255
    %v3299 = vpack.c.bf16 %v3258, %v3257
    %v3300 = vpack.c.bf16 %v3260, %v3259
    %v3301 = vpack.c.bf16 %v3262, %v3261
    %v3302 = vpack.c.bf16 %v3264, %v3263
    %v3303 = vpack.c.bf16 %v3266, %v3265
    %v3304 = vpack.c.bf16 %v3268, %v3267
    %v3305 = vpack.c.bf16 %v3270, %v3269
    %v3306 = vpack.c.bf16 %v3272, %v3271
    %v3307 = vpack.c.bf16 %v3274, %v3273
    %v3308 = vpack.c.bf16 %v3276, %v3275
    %v3309 = vpack.c.bf16 %v3278, %v3277
    %v3310 = vpack.c.bf16 %v3280, %v3279
    %v3311 = vpack.c.bf16 %v3282, %v3281
    %v3312 = vpack.c.bf16 %v3284, %v3283
    %v3313 = vpack.c.bf16 %v3286, %v3285
    %3314 = vmatprep.subr.bf16.mxu0 0
    %3315 = vmatpush1.bf16.msra.mxu0 %v3298
    %3316 = vmatprep.subr.bf16.mxu0 0
    %3317 = vmatpush1.bf16.msra.mxu0 %v3299
    %3318 = vmatprep.subr.bf16.mxu0 0
    %3319 = vmatpush1.bf16.msra.mxu0 %v3300
    %3320 = vmatprep.subr.bf16.mxu0 0
    %3321 = vmatpush1.bf16.msra.mxu0 %v3301
    %3322 = vmatprep.subr.bf16.mxu0 0
    %3323 = vmatpush1.bf16.msra.mxu0 %v3302
    %3324 = vmatprep.subr.bf16.mxu0 0
    %3325 = vmatpush1.bf16.msra.mxu0 %v3303
    %3326 = vmatprep.subr.bf16.mxu0 0
    %3327 = vmatpush1.bf16.msra.mxu0 %v3304
    %3328 = vmatprep.subr.bf16.mxu0 0
    %3329 = vmatpush1.bf16.msra.mxu0 %v3305
    %3330 = vmatprep.subr.bf16.mxu0 0
    %3331 = vmatpush1.bf16.msra.mxu0 %v3306
    %3332 = vmatprep.subr.bf16.mxu0 0
    %3333 = vmatpush1.bf16.msra.mxu0 %v3307
    %3334 = vmatprep.subr.bf16.mxu0 0
    %3335 = vmatpush1.bf16.msra.mxu0 %v3308
    %3336 = vmatprep.subr.bf16.mxu0 0
    %3337 = vmatpush1.bf16.msra.mxu0 %v3309
    %3338 = vmatprep.subr.bf16.mxu0 0
    %3339 = vmatpush1.bf16.msra.mxu0 %v3310
    %3340 = vmatprep.subr.bf16.mxu0 0
    %3341 = vmatpush1.bf16.msra.mxu0 %v3311
    %3342 = vmatprep.subr.bf16.mxu0 0
    %3343 = vmatpush1.bf16.msra.mxu0 %v3312
    %3344 = vmatprep.subr.bf16.mxu0 0
    %3345 = vmatpush1.bf16.msra.mxu0 %v3313
    %3346 = vmatprep.mubr.bf16.mxu0 %v45
    %3347 = vmatmul.mubr.bf16.gmra.mrb[0].mxu0 %v44
    %v3348 = vpop.f32.mrb[0].mxu0
    %v3349 = vadd.f32 0.0, %v3348
    %v3350 = vpop.f32.mrb[0].mxu0
    %v3351 = vpop.f32.mrb[0].mxu0
    %v3352 = vadd.f32 0.0, %v3351
    %v3353 = vpop.f32.mrb[0].mxu0
    %3354 = vmatprep.mubr.bf16.mxu0 %v47
    %3355 = vmatmul.mubr.bf16.gmra.mrb[0].mxu0 %v46
    %v3356 = vpop.f32.mrb[0].mxu0
    %v3357 = vadd.f32 0.0, %v3356
    %v3358 = vpop.f32.mrb[0].mxu0
    %v3359 = vpop.f32.mrb[0].mxu0
    %v3360 = vadd.f32 0.0, %v3359
    %v3361 = vpop.f32.mrb[0].mxu0
    %3362 = vmatprep.mubr.bf16.mxu0 %v49
    %3363 = vmatmul.mubr.bf16.gmra.mrb[0].mxu0 %v48
    %v3364 = vpop.f32.mrb[0].mxu0
    %v3365 = vadd.f32 0.0, %v3364
    %v3366 = vpop.f32.mrb[0].mxu0
    %v3367 = vpop.f32.mrb[0].mxu0
    %v3368 = vadd.f32 0.0, %v3367
    %v3369 = vpop.f32.mrb[0].mxu0
    %3370 = vmatprep.mubr.bf16.mxu0 %v51
    %3371 = vmatmul.mubr.bf16.gmra.mrb[0].mxu0 %v50
    %v3372 = vpop.f32.mrb[0].mxu0
    %v3373 = vadd.f32 0.0, %v3372
    %v3374 = vpop.f32.mrb[0].mxu0
    %v3375 = vpop.f32.mrb[0].mxu0
    %v3376 = vadd.f32 0.0, %v3375
    %v3377 = vpop.f32.mrb[0].mxu0
    %3378 = vmatprep.mubr.bf16.mxu0 %v53
    %3379 = vmatmul.mubr.bf16.gmra.mrb[0].mxu0 %v52
    %v3380 = vpop.f32.mrb[0].mxu0
    %v3381 = vadd.f32 0.0, %v3380
    %v3382 = vpop.f32.mrb[0].mxu0
    %v3383 = vpop.f32.mrb[0].mxu0
    %v3384 = vadd.f32 0.0, %v3383
    %v3385 = vpop.f32.mrb[0].mxu0
    %3386 = vmatprep.mubr.bf16.mxu0 %v55
    %3387 = vmatmul.mubr.bf16.gmra.mrb[0].mxu0 %v54
    %v3388 = vpop.f32.mrb[0].mxu0
    %v3389 = vadd.f32 0.0, %v3388
    %v3390 = vpop.f32.mrb[0].mxu0
    %v3391 = vpop.f32.mrb[0].mxu0
    %v3392 = vadd.f32 0.0, %v3391
    %v3393 = vpop.f32.mrb[0].mxu0
    %3394 = vmatprep.mubr.bf16.mxu0 %v57
    %3395 = vmatmul.mubr.bf16.gmra.mrb[0].mxu0 %v56
    %v3396 = vpop.f32.mrb[0].mxu0
    %v3397 = vadd.f32 0.0, %v3396
    %v3398 = vpop.f32.mrb[0].mxu0
    %v3399 = vpop.f32.mrb[0].mxu0
    %v3400 = vadd.f32 0.0, %v3399
    %v3401 = vpop.f32.mrb[0].mxu0
    %3402 = vmatprep.mubr.bf16.mxu0 %v59
    %3403 = vmatmul.mubr.bf16.gmra.mrb[0].mxu0 %v58
    %v3404 = vpop.f32.mrb[0].mxu0
    %v3405 = vadd.f32 0.0, %v3404
    %v3406 = vpop.f32.mrb[0].mxu0
    %v3407 = vpop.f32.mrb[0].mxu0
    %v3408 = vadd.f32 0.0, %v3407
    %v3409 = vpop.f32.mrb[0].mxu0
    %3410 = vmatprep.mubr.bf16.mxu0 %v61
    %3411 = vmatmul.mubr.bf16.gmra.mrb[0].mxu0 %v60
    %v3412 = vpop.f32.mrb[0].mxu0
    %v3413 = vadd.f32 0.0, %v3412
    %v3414 = vpop.f32.mrb[0].mxu0
    %v3415 = vpop.f32.mrb[0].mxu0
    %v3416 = vadd.f32 0.0, %v3415
    %v3417 = vpop.f32.mrb[0].mxu0
    %3418 = vmatprep.mubr.bf16.mxu0 %v63
    %3419 = vmatmul.mubr.bf16.gmra.mrb[0].mxu0 %v62
    %v3420 = vpop.f32.mrb[0].mxu0
    %v3421 = vadd.f32 0.0, %v3420
    %v3422 = vpop.f32.mrb[0].mxu0
    %v3423 = vpop.f32.mrb[0].mxu0
    %v3424 = vadd.f32 0.0, %v3423
    %v3425 = vpop.f32.mrb[0].mxu0
    %3426 = vmatprep.mubr.bf16.mxu0 %v65
    %3427 = vmatmul.mubr.bf16.gmra.mrb[0].mxu0 %v64
    %v3428 = vpop.f32.mrb[0].mxu0
    %v3429 = vadd.f32 0.0, %v3428
    %v3430 = vpop.f32.mrb[0].mxu0
    %v3431 = vpop.f32.mrb[0].mxu0
    %v3432 = vadd.f32 0.0, %v3431
    %v3433 = vpop.f32.mrb[0].mxu0
    %3434 = vmatprep.mubr.bf16.mxu0 %v67
    %3435 = vmatmul.mubr.bf16.gmra.mrb[0].mxu0 %v66
    %v3436 = vpop.f32.mrb[0].mxu0
    %v3437 = vadd.f32 0.0, %v3436
    %v3438 = vpop.f32.mrb[0].mxu0
    %v3439 = vpop.f32.mrb[0].mxu0
    %v3440 = vadd.f32 0.0, %v3439
    %v3441 = vpop.f32.mrb[0].mxu0
    %3442 = vmatprep.mubr.bf16.mxu0 %v69
    %3443 = vmatmul.mubr.bf16.gmra.mrb[0].mxu0 %v68
    %v3444 = vpop.f32.mrb[0].mxu0
    %v3445 = vadd.f32 0.0, %v3444
    %v3446 = vpop.f32.mrb[0].mxu0
    %v3447 = vpop.f32.mrb[0].mxu0
    %v3448 = vadd.f32 0.0, %v3447
    %v3449 = vpop.f32.mrb[0].mxu0
    %3450 = vmatprep.mubr.bf16.mxu0 %v71
    %3451 = vmatmul.mubr.bf16.gmra.mrb[0].mxu0 %v70
    %v3452 = vpop.f32.mrb[0].mxu0
    %v3453 = vadd.f32 0.0, %v3452
    %v3454 = vpop.f32.mrb[0].mxu0
    %v3455 = vpop.f32.mrb[0].mxu0
    %v3456 = vadd.f32 0.0, %v3455
    %v3457 = vpop.f32.mrb[0].mxu0
    %3458 = vmatprep.mubr.bf16.mxu0 %v73
    %3459 = vmatmul.mubr.bf16.gmra.mrb[0].mxu0 %v72
    %v3460 = vpop.f32.mrb[0].mxu0
    %v3461 = vadd.f32 0.0, %v3460
    %v3462 = vpop.f32.mrb[0].mxu0
    %v3463 = vpop.f32.mrb[0].mxu0
    %v3464 = vadd.f32 0.0, %v3463
    %v3465 = vpop.f32.mrb[0].mxu0
    %3466 = vmatprep.mubr.bf16.mxu0 %v75
    %3467 = vmatmul.mubr.bf16.gmra.mrb[0].mxu0 %v74
    %v3468 = vpop.f32.mrb[0].mxu0
    %v3469 = vadd.f32 0.0, %v3468
    %v3470 = vpop.f32.mrb[0].mxu0
    %v3471 = vpop.f32.mrb[0].mxu0
    %v3472 = vadd.f32 0.0, %v3471
    %v3473 = vpop.f32.mrb[0].mxu0
    %3474 = vdwg.mxu0
    %v3475 = vmul.f32 %v3349, %v329
    %v3476 = vmul.f32 %v3352, %v334
    %v3477 = vmul.f32 %v3357, %v339
    %v3478 = vmul.f32 %v3360, %v344
    %v3479 = vmul.f32 %v3365, %v349
    %v3480 = vmul.f32 %v3368, %v354
    %v3481 = vmul.f32 %v3373, %v359
    %v3482 = vmul.f32 %v3376, %v364
    %v3483 = vmul.f32 %v3381, %v369
    %v3484 = vmul.f32 %v3384, %v374
    %v3485 = vmul.f32 %v3389, %v379
    %v3486 = vmul.f32 %v3392, %v384
    %v3487 = vmul.f32 %v3397, %v389
    %v3488 = vmul.f32 %v3400, %v394
    %v3489 = vmul.f32 %v3405, %v399
    %v3490 = vmul.f32 %v3408, %v404
    %v3491 = vmul.f32 %v3413, %v409
    %v3492 = vmul.f32 %v3416, %v414
    %v3493 = vmul.f32 %v3421, %v419
    %v3494 = vmul.f32 %v3424, %v424
    %v3495 = vmul.f32 %v3429, %v429
    %v3496 = vmul.f32 %v3432, %v434
    %v3497 = vmul.f32 %v3437, %v439
    %v3498 = vmul.f32 %v3440, %v444
    %v3499 = vmul.f32 %v3445, %v449
    %v3500 = vmul.f32 %v3448, %v454
    %v3501 = vmul.f32 %v3453, %v459
    %v3502 = vmul.f32 %v3456, %v464
    %v3503 = vmul.f32 %v3461, %v469
    %v3504 = vmul.f32 %v3464, %v474
    %v3505 = vmul.f32 %v3469, %v479
    %v3506 = vmul.f32 %v3472, %v484
    %v3508 = vsel %vm518, %v3475, 0
    %v3511 = vsel %vm518, %v3476, 0
    %v3514 = vsel %vm518, %v3477, 0
    %v3517 = vsel %vm518, %v3478, 0
    %v3520 = vsel %vm518, %v3479, 0
    %v3523 = vsel %vm518, %v3480, 0
    %v3526 = vsel %vm518, %v3481, 0
    %v3529 = vsel %vm518, %v3482, 0
    %v3532 = vsel %vm518, %v3483, 0
    %v3535 = vsel %vm518, %v3484, 0
    %v3538 = vsel %vm518, %v3485, 0
    %v3541 = vsel %vm518, %v3486, 0
    %v3544 = vsel %vm518, %v3487, 0
    %v3547 = vsel %vm518, %v3488, 0
    %v3550 = vsel %vm518, %v3489, 0
    %v3553 = vsel %vm518, %v3490, 0
    %v3556 = vsel %vm518, %v3491, 0
    %v3559 = vsel %vm518, %v3492, 0
    %v3562 = vsel %vm518, %v3493, 0
    %v3565 = vsel %vm518, %v3494, 0
    %v3568 = vsel %vm518, %v3495, 0
    %v3571 = vsel %vm518, %v3496, 0
    %v3574 = vsel %vm518, %v3497, 0
    %v3577 = vsel %vm518, %v3498, 0
    %v3580 = vsel %vm518, %v3499, 0
    %v3583 = vsel %vm518, %v3500, 0
    %v3586 = vsel %vm518, %v3501, 0
    %v3589 = vsel %vm518, %v3502, 0
    %v3592 = vsel %vm518, %v3503, 0
    %v3595 = vsel %vm518, %v3504, 0
    %v3598 = vsel %vm518, %v3505, 0
    %v3601 = vsel %vm518, %v3506, 0
    %3603 = vmatprep.subr.mxu0 0.0
    %3604 = vmatpush1.msra.mxu0 %v3292
    %3605 = vmatprep.subr.mxu0 0.0
    %3606 = vmatpush1.msra.mxu0 %v3293
    %3607 = vmatprep.subr.mxu0 0.0
    %3608 = vmatpush1.msra.mxu0 %v3294
    %3609 = vmatprep.subr.mxu0 0.0
    %3610 = vmatpush1.msra.mxu0 %v3295
    %3611 = vmatprep.subr.mxu0 0.0
    %3612 = vmatpush1.msra.mxu0 0.0
    %3613 = vmatprep.subr.mxu0 0.0
    %3614 = vmatpush1.msra.mxu0 0.0
    %3615 = vmatprep.subr.mxu0 0.0
    %3616 = vmatpush1.msra.mxu0 0.0
    %3617 = vmatprep.subr.mxu0 0.0
    %3618 = vmatpush1.msra.mxu0 0.0
    %3619 = vmatprep.subr.mxu0 0.0
    %3620 = vmatpush1.msra.mxu0 0.0
    %3621 = vmatprep.subr.mxu0 0.0
    %3622 = vmatpush1.msra.mxu0 0.0
    %3623 = vmatprep.subr.mxu0 0.0
    %3624 = vmatpush1.msra.mxu0 0.0
    %3625 = vmatprep.subr.mxu0 0.0
    %3626 = vmatpush1.msra.mxu0 0.0
    %3627 = vmatprep.subr.mxu0 0.0
    %3628 = vmatpush1.msra.mxu0 0.0
    %3629 = vmatprep.subr.mxu0 0.0
    %3630 = vmatpush1.msra.mxu0 0.0
    %3631 = vmatprep.subr.mxu0 0.0
    %3632 = vmatpush1.msra.mxu0 0.0
    %3633 = vmatprep.subr.mxu0 0.0
    %3634 = vmatpush1.msra.mxu0 0.0
    %3635 = vmatprep.subr.mxu0 0.0
    %3636 = vmatpush1.msra.mxu0 0.0
    %3637 = vmatprep.subr.mxu0 0.0
    %3638 = vmatpush1.msra.mxu0 0.0
    %3639 = vmatprep.subr.mxu0 0.0
    %3640 = vmatpush1.msra.mxu0 0.0
    %3641 = vmatprep.subr.mxu0 0.0
    %3642 = vmatpush1.msra.mxu0 0.0
    %3643 = vmatprep.subr.mxu0 0.0
    %3644 = vmatpush1.msra.mxu0 0.0
    %3645 = vmatprep.subr.mxu0 0.0
    %3646 = vmatpush1.msra.mxu0 0.0
    %3647 = vmatprep.subr.mxu0 0.0
    %3648 = vmatpush1.msra.mxu0 0.0
    %3649 = vmatprep.subr.mxu0 0.0
    %3650 = vmatpush1.msra.mxu0 0.0
    %3651 = vmatprep.subr.mxu0 0.0
    %3652 = vmatpush1.msra.mxu0 0.0
    %3653 = vmatprep.subr.mxu0 0.0
    %3654 = vmatpush1.msra.mxu0 0.0
    %3655 = vmatprep.subr.mxu0 0.0
    %3656 = vmatpush1.msra.mxu0 0.0
    %3657 = vmatprep.subr.mxu0 0.0
    %3658 = vmatpush1.msra.mxu0 0.0
    %3659 = vmatprep.subr.mxu0 0.0
    %3660 = vmatpush1.msra.mxu0 0.0
    %3661 = vmatprep.subr.mxu0 0.0
    %3662 = vmatpush1.msra.mxu0 0.0
    %3663 = vmatprep.subr.mxu0 0.0
    %3664 = vmatpush1.msra.mxu0 0.0
    %3665 = vmatprep.subr.mxu0 0.0
    %3666 = vmatpush1.msra.mxu0 0.0
    %3667 = vmatprep.mubr.f32.mxu0 0.0
    %3668 = vmatmul.mubr.f32.gmra.mrb[0].mxu0 %v3508
    %v3669 = vpop.f32.mrb[0].mxu0
    %v3670 = vadd.f32 0.0, %v3669
    %v3671 = vpop.f32.mrb[0].mxu0
    %3672 = vmatprep.mubr.f32.mxu0 0.0
    %3673 = vmatmul.mubr.f32.gmra.mrb[0].mxu0 %v3511
    %v3674 = vpop.f32.mrb[0].mxu0
    %v3675 = vadd.f32 0.0, %v3674
    %v3676 = vpop.f32.mrb[0].mxu0
    %3677 = vmatprep.mubr.f32.mxu0 0.0
    %3678 = vmatmul.mubr.f32.gmra.mrb[0].mxu0 %v3514
    %v3679 = vpop.f32.mrb[0].mxu0
    %v3680 = vadd.f32 0.0, %v3679
    %v3681 = vpop.f32.mrb[0].mxu0
    %3682 = vmatprep.mubr.f32.mxu0 0.0
    %3683 = vmatmul.mubr.f32.gmra.mrb[0].mxu0 %v3517
    %v3684 = vpop.f32.mrb[0].mxu0
    %v3685 = vadd.f32 0.0, %v3684
    %v3686 = vpop.f32.mrb[0].mxu0
    %3687 = vmatprep.mubr.f32.mxu0 0.0
    %3688 = vmatmul.mubr.f32.gmra.mrb[0].mxu0 %v3520
    %v3689 = vpop.f32.mrb[0].mxu0
    %v3690 = vadd.f32 0.0, %v3689
    %v3691 = vpop.f32.mrb[0].mxu0
    %3692 = vmatprep.mubr.f32.mxu0 0.0
    %3693 = vmatmul.mubr.f32.gmra.mrb[0].mxu0 %v3523
    %v3694 = vpop.f32.mrb[0].mxu0
    %v3695 = vadd.f32 0.0, %v3694
    %v3696 = vpop.f32.mrb[0].mxu0
    %3697 = vmatprep.mubr.f32.mxu0 0.0
    %3698 = vmatmul.mubr.f32.gmra.mrb[0].mxu0 %v3526
    %v3699 = vpop.f32.mrb[0].mxu0
    %v3700 = vadd.f32 0.0, %v3699
    %v3701 = vpop.f32.mrb[0].mxu0
    %3702 = vmatprep.mubr.f32.mxu0 0.0
    %3703 = vmatmul.mubr.f32.gmra.mrb[0].mxu0 %v3529
    %v3704 = vpop.f32.mrb[0].mxu0
    %v3705 = vadd.f32 0.0, %v3704
    %v3706 = vpop.f32.mrb[0].mxu0
    %3707 = vmatprep.mubr.f32.mxu0 0.0
    %3708 = vmatmul.mubr.f32.gmra.mrb[0].mxu0 %v3532
    %v3709 = vpop.f32.mrb[0].mxu0
    %v3710 = vadd.f32 0.0, %v3709
    %v3711 = vpop.f32.mrb[0].mxu0
    %3712 = vmatprep.mubr.f32.mxu0 0.0
    %3713 = vmatmul.mubr.f32.gmra.mrb[0].mxu0 %v3535
    %v3714 = vpop.f32.mrb[0].mxu0
    %v3715 = vadd.f32 0.0, %v3714
    %v3716 = vpop.f32.mrb[0].mxu0
    %3717 = vmatprep.mubr.f32.mxu0 0.0
    %3718 = vmatmul.mubr.f32.gmra.mrb[0].mxu0 %v3538
    %v3719 = vpop.f32.mrb[0].mxu0
    %v3720 = vadd.f32 0.0, %v3719
    %v3721 = vpop.f32.mrb[0].mxu0
    %3722 = vmatprep.mubr.f32.mxu0 0.0
    %3723 = vmatmul.mubr.f32.gmra.mrb[0].mxu0 %v3541
    %v3724 = vpop.f32.mrb[0].mxu0
    %v3725 = vadd.f32 0.0, %v3724
    %v3726 = vpop.f32.mrb[0].mxu0
    %3727 = vmatprep.mubr.f32.mxu0 0.0
    %3728 = vmatmul.mubr.f32.gmra.mrb[0].mxu0 %v3544
    %v3729 = vpop.f32.mrb[0].mxu0
    %v3730 = vadd.f32 0.0, %v3729
    %v3731 = vpop.f32.mrb[0].mxu0
    %3732 = vmatprep.mubr.f32.mxu0 0.0
    %3733 = vmatmul.mubr.f32.gmra.mrb[0].mxu0 %v3547
    %v3734 = vpop.f32.mrb[0].mxu0
    %v3735 = vadd.f32 0.0, %v3734
    %v3736 = vpop.f32.mrb[0].mxu0
    %3737 = vmatprep.mubr.f32.mxu0 0.0
    %3738 = vmatmul.mubr.f32.gmra.mrb[0].mxu0 %v3550
    %v3739 = vpop.f32.mrb[0].mxu0
    %v3740 = vadd.f32 0.0, %v3739
    %v3741 = vpop.f32.mrb[0].mxu0
    %3742 = vmatprep.mubr.f32.mxu0 0.0
    %3743 = vmatmul.mubr.f32.gmra.mrb[0].mxu0 %v3553
    %v3744 = vpop.f32.mrb[0].mxu0
    %v3745 = vadd.f32 0.0, %v3744
    %v3746 = vpop.f32.mrb[0].mxu0
    %3747 = vmatprep.mubr.f32.mxu0 0.0
    %3748 = vmatmul.mubr.f32.gmra.mrb[0].mxu0 %v3556
    %v3749 = vpop.f32.mrb[0].mxu0
    %v3750 = vadd.f32 0.0, %v3749
    %v3751 = vpop.f32.mrb[0].mxu0
    %3752 = vmatprep.mubr.f32.mxu0 0.0
    %3753 = vmatmul.mubr.f32.gmra.mrb[0].mxu0 %v3559
    %v3754 = vpop.f32.mrb[0].mxu0
    %v3755 = vadd.f32 0.0, %v3754
    %v3756 = vpop.f32.mrb[0].mxu0
    %3757 = vmatprep.mubr.f32.mxu0 0.0
    %3758 = vmatmul.mubr.f32.gmra.mrb[0].mxu0 %v3562
    %v3759 = vpop.f32.mrb[0].mxu0
    %v3760 = vadd.f32 0.0, %v3759
    %v3761 = vpop.f32.mrb[0].mxu0
    %3762 = vmatprep.mubr.f32.mxu0 0.0
    %3763 = vmatmul.mubr.f32.gmra.mrb[0].mxu0 %v3565
    %v3764 = vpop.f32.mrb[0].mxu0
    %v3765 = vadd.f32 0.0, %v3764
    %v3766 = vpop.f32.mrb[0].mxu0
    %3767 = vmatprep.mubr.f32.mxu0 0.0
    %3768 = vmatmul.mubr.f32.gmra.mrb[0].mxu0 %v3568
    %v3769 = vpop.f32.mrb[0].mxu0
    %v3770 = vadd.f32 0.0, %v3769
    %v3771 = vpop.f32.mrb[0].mxu0
    %3772 = vmatprep.mubr.f32.mxu0 0.0
    %3773 = vmatmul.mubr.f32.gmra.mrb[0].mxu0 %v3571
    %v3774 = vpop.f32.mrb[0].mxu0
    %v3775 = vadd.f32 0.0, %v3774
    %v3776 = vpop.f32.mrb[0].mxu0
    %3777 = vmatprep.mubr.f32.mxu0 0.0
    %3778 = vmatmul.mubr.f32.gmra.mrb[0].mxu0 %v3574
    %v3779 = vpop.f32.mrb[0].mxu0
    %v3780 = vadd.f32 0.0, %v3779
    %v3781 = vpop.f32.mrb[0].mxu0
    %3782 = vmatprep.mubr.f32.mxu0 0.0
    %3783 = vmatmul.mubr.f32.gmra.mrb[0].mxu0 %v3577
    %v3784 = vpop.f32.mrb[0].mxu0
    %v3785 = vadd.f32 0.0, %v3784
    %v3786 = vpop.f32.mrb[0].mxu0
    %3787 = vmatprep.mubr.f32.mxu0 0.0
    %3788 = vmatmul.mubr.f32.gmra.mrb[0].mxu0 %v3580
    %v3789 = vpop.f32.mrb[0].mxu0
    %v3790 = vadd.f32 0.0, %v3789
    %v3791 = vpop.f32.mrb[0].mxu0
    %3792 = vmatprep.mubr.f32.mxu0 0.0
    %3793 = vmatmul.mubr.f32.gmra.mrb[0].mxu0 %v3583
    %v3794 = vpop.f32.mrb[0].mxu0
    %v3795 = vadd.f32 0.0, %v3794
    %v3796 = vpop.f32.mrb[0].mxu0
    %3797 = vmatprep.mubr.f32.mxu0 0.0
    %3798 = vmatmul.mubr.f32.gmra.mrb[0].mxu0 %v3586
    %v3799 = vpop.f32.mrb[0].mxu0
    %v3800 = vadd.f32 0.0, %v3799
    %v3801 = vpop.f32.mrb[0].mxu0
    %3802 = vmatprep.mubr.f32.mxu0 0.0
    %3803 = vmatmul.mubr.f32.gmra.mrb[0].mxu0 %v3589
    %v3804 = vpop.f32.mrb[0].mxu0
    %v3805 = vadd.f32 0.0, %v3804
    %v3806 = vpop.f32.mrb[0].mxu0
    %3807 = vmatprep.mubr.f32.mxu0 0.0
    %3808 = vmatmul.mubr.f32.gmra.mrb[0].mxu0 %v3592
    %v3809 = vpop.f32.mrb[0].mxu0
    %v3810 = vadd.f32 0.0, %v3809
    %v3811 = vpop.f32.mrb[0].mxu0
    %3812 = vmatprep.mubr.f32.mxu0 0.0
    %3813 = vmatmul.mubr.f32.gmra.mrb[0].mxu0 %v3595
    %v3814 = vpop.f32.mrb[0].mxu0
    %v3815 = vadd.f32 0.0, %v3814
    %v3816 = vpop.f32.mrb[0].mxu0
    %3817 = vmatprep.mubr.f32.mxu0 0.0
    %3818 = vmatmul.mubr.f32.gmra.mrb[0].mxu0 %v3598
    %v3819 = vpop.f32.mrb[0].mxu0
    %v3820 = vadd.f32 0.0, %v3819
    %v3821 = vpop.f32.mrb[0].mxu0
    %3822 = vmatprep.mubr.f32.mxu0 0.0
    %3823 = vmatmul.mubr.f32.gmra.mrb[0].mxu0 %v3601
    %v3824 = vpop.f32.mrb[0].mxu0
    %v3825 = vadd.f32 0.0, %v3824
    %v3826 = vpop.f32.mrb[0].mxu0
    %3827 = vdwg.mxu0
    %v3829 = vsel %vm518, %v3255, 0
    %v3832 = vsel %vm518, %v3256, 0
    %v3835 = vsel %vm518, %v3257, 0
    %v3838 = vsel %vm518, %v3258, 0
    %v3841 = vsel %vm518, %v3259, 0
    %v3844 = vsel %vm518, %v3260, 0
    %v3847 = vsel %vm518, %v3261, 0
    %v3850 = vsel %vm518, %v3262, 0
    %v3853 = vsel %vm518, %v3263, 0
    %v3856 = vsel %vm518, %v3264, 0
    %v3859 = vsel %vm518, %v3265, 0
    %v3862 = vsel %vm518, %v3266, 0
    %v3865 = vsel %vm518, %v3267, 0
    %v3868 = vsel %vm518, %v3268, 0
    %v3871 = vsel %vm518, %v3269, 0
    %v3874 = vsel %vm518, %v3270, 0
    %v3877 = vsel %vm518, %v3271, 0
    %v3880 = vsel %vm518, %v3272, 0
    %v3883 = vsel %vm518, %v3273, 0
    %v3886 = vsel %vm518, %v3274, 0
    %v3889 = vsel %vm518, %v3275, 0
    %v3892 = vsel %vm518, %v3276, 0
    %v3895 = vsel %vm518, %v3277, 0
    %v3898 = vsel %vm518, %v3278, 0
    %v3901 = vsel %vm518, %v3279, 0
    %v3904 = vsel %vm518, %v3280, 0
    %v3907 = vsel %vm518, %v3281, 0
    %v3910 = vsel %vm518, %v3282, 0
    %v3913 = vsel %vm518, %v3283, 0
    %v3916 = vsel %vm518, %v3284, 0
    %v3919 = vsel %vm518, %v3285, 0
    %v3922 = vsel %vm518, %v3286, 0
    %3924 = vmatprep.subr.mxu0 0.0
    %3925 = vmatpush1.msra.mxu0 %v3288
    %3926 = vmatprep.subr.mxu0 0.0
    %3927 = vmatpush1.msra.mxu0 %v3289
    %3928 = vmatprep.subr.mxu0 0.0
    %3929 = vmatpush1.msra.mxu0 %v3290
    %3930 = vmatprep.subr.mxu0 0.0
    %3931 = vmatpush1.msra.mxu0 %v3291
    %3932 = vmatprep.subr.mxu0 0.0
    %3933 = vmatpush1.msra.mxu0 0.0
    %3934 = vmatprep.subr.mxu0 0.0
    %3935 = vmatpush1.msra.mxu0 0.0
    %3936 = vmatprep.subr.mxu0 0.0
    %3937 = vmatpush1.msra.mxu0 0.0
    %3938 = vmatprep.subr.mxu0 0.0
    %3939 = vmatpush1.msra.mxu0 0.0
    %3940 = vmatprep.subr.mxu0 0.0
    %3941 = vmatpush1.msra.mxu0 0.0
    %3942 = vmatprep.subr.mxu0 0.0
    %3943 = vmatpush1.msra.mxu0 0.0
    %3944 = vmatprep.subr.mxu0 0.0
    %3945 = vmatpush1.msra.mxu0 0.0
    %3946 = vmatprep.subr.mxu0 0.0
    %3947 = vmatpush1.msra.mxu0 0.0
    %3948 = vmatprep.subr.mxu0 0.0
    %3949 = vmatpush1.msra.mxu0 0.0
    %3950 = vmatprep.subr.mxu0 0.0
    %3951 = vmatpush1.msra.mxu0 0.0
    %3952 = vmatprep.subr.mxu0 0.0
    %3953 = vmatpush1.msra.mxu0 0.0
    %3954 = vmatprep.subr.mxu0 0.0
    %3955 = vmatpush1.msra.mxu0 0.0
    %3956 = vmatprep.subr.mxu0 0.0
    %3957 = vmatpush1.msra.mxu0 0.0
    %3958 = vmatprep.subr.mxu0 0.0
    %3959 = vmatpush1.msra.mxu0 0.0
    %3960 = vmatprep.subr.mxu0 0.0
    %3961 = vmatpush1.msra.mxu0 0.0
    %3962 = vmatprep.subr.mxu0 0.0
    %3963 = vmatpush1.msra.mxu0 0.0
    %3964 = vmatprep.subr.mxu0 0.0
    %3965 = vmatpush1.msra.mxu0 0.0
    %3966 = vmatprep.subr.mxu0 0.0
    %3967 = vmatpush1.msra.mxu0 0.0
    %3968 = vmatprep.subr.mxu0 0.0
    %3969 = vmatpush1.msra.mxu0 0.0
    %3970 = vmatprep.subr.mxu0 0.0
    %3971 = vmatpush1.msra.mxu0 0.0
    %3972 = vmatprep.subr.mxu0 0.0
    %3973 = vmatpush1.msra.mxu0 0.0
    %3974 = vmatprep.subr.mxu0 0.0
    %3975 = vmatpush1.msra.mxu0 0.0
    %3976 = vmatprep.subr.mxu0 0.0
    %3977 = vmatpush1.msra.mxu0 0.0
    %3978 = vmatprep.subr.mxu0 0.0
    %3979 = vmatpush1.msra.mxu0 0.0
    %3980 = vmatprep.subr.mxu0 0.0
    %3981 = vmatpush1.msra.mxu0 0.0
    %3982 = vmatprep.subr.mxu0 0.0
    %3983 = vmatpush1.msra.mxu0 0.0
    %3984 = vmatprep.subr.mxu0 0.0
    %3985 = vmatpush1.msra.mxu0 0.0
    %3986 = vmatprep.subr.mxu0 0.0
    %3987 = vmatpush1.msra.mxu0 0.0
    %3988 = vmatprep.mubr.f32.mxu0 0.0
    %3989 = vmatmul.mubr.f32.gmra.mrb[0].mxu0 %v3829
    %v3990 = vpop.f32.mrb[0].mxu0
    %v3991 = vadd.f32 %v3670, %v3990
    %v3992 = vpop.f32.mrb[0].mxu0
    %3993 = vmatprep.mubr.f32.mxu0 0.0
    %3994 = vmatmul.mubr.f32.gmra.mrb[0].mxu0 %v3832
    %v3995 = vpop.f32.mrb[0].mxu0
    %v3996 = vadd.f32 %v3675, %v3995
    %v3997 = vpop.f32.mrb[0].mxu0
    %3998 = vmatprep.mubr.f32.mxu0 0.0
    %3999 = vmatmul.mubr.f32.gmra.mrb[0].mxu0 %v3835
    %v4000 = vpop.f32.mrb[0].mxu0
    %v4001 = vadd.f32 %v3680, %v4000
    %v4002 = vpop.f32.mrb[0].mxu0
    %4003 = vmatprep.mubr.f32.mxu0 0.0
    %4004 = vmatmul.mubr.f32.gmra.mrb[0].mxu0 %v3838
    %v4005 = vpop.f32.mrb[0].mxu0
    %v4006 = vadd.f32 %v3685, %v4005
    %v4007 = vpop.f32.mrb[0].mxu0
    %4008 = vmatprep.mubr.f32.mxu0 0.0
    %4009 = vmatmul.mubr.f32.gmra.mrb[0].mxu0 %v3841
    %v4010 = vpop.f32.mrb[0].mxu0
    %v4011 = vadd.f32 %v3690, %v4010
    %v4012 = vpop.f32.mrb[0].mxu0
    %4013 = vmatprep.mubr.f32.mxu0 0.0
    %4014 = vmatmul.mubr.f32.gmra.mrb[0].mxu0 %v3844
    %v4015 = vpop.f32.mrb[0].mxu0
    %v4016 = vadd.f32 %v3695, %v4015
    %v4017 = vpop.f32.mrb[0].mxu0
    %4018 = vmatprep.mubr.f32.mxu0 0.0
    %4019 = vmatmul.mubr.f32.gmra.mrb[0].mxu0 %v3847
    %v4020 = vpop.f32.mrb[0].mxu0
    %v4021 = vadd.f32 %v3700, %v4020
    %v4022 = vpop.f32.mrb[0].mxu0
    %4023 = vmatprep.mubr.f32.mxu0 0.0
    %4024 = vmatmul.mubr.f32.gmra.mrb[0].mxu0 %v3850
    %v4025 = vpop.f32.mrb[0].mxu0
    %v4026 = vadd.f32 %v3705, %v4025
    %v4027 = vpop.f32.mrb[0].mxu0
    %4028 = vmatprep.mubr.f32.mxu0 0.0
    %4029 = vmatmul.mubr.f32.gmra.mrb[0].mxu0 %v3853
    %v4030 = vpop.f32.mrb[0].mxu0
    %v4031 = vadd.f32 %v3710, %v4030
    %v4032 = vpop.f32.mrb[0].mxu0
    %4033 = vmatprep.mubr.f32.mxu0 0.0
    %4034 = vmatmul.mubr.f32.gmra.mrb[0].mxu0 %v3856
    %v4035 = vpop.f32.mrb[0].mxu0
    %v4036 = vadd.f32 %v3715, %v4035
    %v4037 = vpop.f32.mrb[0].mxu0
    %4038 = vmatprep.mubr.f32.mxu0 0.0
    %4039 = vmatmul.mubr.f32.gmra.mrb[0].mxu0 %v3859
    %v4040 = vpop.f32.mrb[0].mxu0
    %v4041 = vadd.f32 %v3720, %v4040
    %v4042 = vpop.f32.mrb[0].mxu0
    %4043 = vmatprep.mubr.f32.mxu0 0.0
    %4044 = vmatmul.mubr.f32.gmra.mrb[0].mxu0 %v3862
    %v4045 = vpop.f32.mrb[0].mxu0
    %v4046 = vadd.f32 %v3725, %v4045
    %v4047 = vpop.f32.mrb[0].mxu0
    %4048 = vmatprep.mubr.f32.mxu0 0.0
    %4049 = vmatmul.mubr.f32.gmra.mrb[0].mxu0 %v3865
    %v4050 = vpop.f32.mrb[0].mxu0
    %v4051 = vadd.f32 %v3730, %v4050
    %v4052 = vpop.f32.mrb[0].mxu0
    %4053 = vmatprep.mubr.f32.mxu0 0.0
    %4054 = vmatmul.mubr.f32.gmra.mrb[0].mxu0 %v3868
    %v4055 = vpop.f32.mrb[0].mxu0
    %v4056 = vadd.f32 %v3735, %v4055
    %v4057 = vpop.f32.mrb[0].mxu0
    %4058 = vmatprep.mubr.f32.mxu0 0.0
    %4059 = vmatmul.mubr.f32.gmra.mrb[0].mxu0 %v3871
    %v4060 = vpop.f32.mrb[0].mxu0
    %v4061 = vadd.f32 %v3740, %v4060
    %v4062 = vpop.f32.mrb[0].mxu0
    %4063 = vmatprep.mubr.f32.mxu0 0.0
    %4064 = vmatmul.mubr.f32.gmra.mrb[0].mxu0 %v3874
    %v4065 = vpop.f32.mrb[0].mxu0
    %v4066 = vadd.f32 %v3745, %v4065
    %v4067 = vpop.f32.mrb[0].mxu0
    %4068 = vmatprep.mubr.f32.mxu0 0.0
    %4069 = vmatmul.mubr.f32.gmra.mrb[0].mxu0 %v3877
    %v4070 = vpop.f32.mrb[0].mxu0
    %v4071 = vadd.f32 %v3750, %v4070
    %v4072 = vpop.f32.mrb[0].mxu0
    %4073 = vmatprep.mubr.f32.mxu0 0.0
    %4074 = vmatmul.mubr.f32.gmra.mrb[0].mxu0 %v3880
    %v4075 = vpop.f32.mrb[0].mxu0
    %v4076 = vadd.f32 %v3755, %v4075
    %v4077 = vpop.f32.mrb[0].mxu0
    %4078 = vmatprep.mubr.f32.mxu0 0.0
    %4079 = vmatmul.mubr.f32.gmra.mrb[0].mxu0 %v3883
    %v4080 = vpop.f32.mrb[0].mxu0
    %v4081 = vadd.f32 %v3760, %v4080
    %v4082 = vpop.f32.mrb[0].mxu0
    %4083 = vmatprep.mubr.f32.mxu0 0.0
    %4084 = vmatmul.mubr.f32.gmra.mrb[0].mxu0 %v3886
    %v4085 = vpop.f32.mrb[0].mxu0
    %v4086 = vadd.f32 %v3765, %v4085
    %v4087 = vpop.f32.mrb[0].mxu0
    %4088 = vmatprep.mubr.f32.mxu0 0.0
    %4089 = vmatmul.mubr.f32.gmra.mrb[0].mxu0 %v3889
    %v4090 = vpop.f32.mrb[0].mxu0
    %v4091 = vadd.f32 %v3770, %v4090
    %v4092 = vpop.f32.mrb[0].mxu0
    %4093 = vmatprep.mubr.f32.mxu0 0.0
    %4094 = vmatmul.mubr.f32.gmra.mrb[0].mxu0 %v3892
    %v4095 = vpop.f32.mrb[0].mxu0
    %v4096 = vadd.f32 %v3775, %v4095
    %v4097 = vpop.f32.mrb[0].mxu0
    %4098 = vmatprep.mubr.f32.mxu0 0.0
    %4099 = vmatmul.mubr.f32.gmra.mrb[0].mxu0 %v3895
    %v4100 = vpop.f32.mrb[0].mxu0
    %v4101 = vadd.f32 %v3780, %v4100
    %v4102 = vpop.f32.mrb[0].mxu0
    %4103 = vmatprep.mubr.f32.mxu0 0.0
    %4104 = vmatmul.mubr.f32.gmra.mrb[0].mxu0 %v3898
    %v4105 = vpop.f32.mrb[0].mxu0
    %v4106 = vadd.f32 %v3785, %v4105
    %v4107 = vpop.f32.mrb[0].mxu0
    %4108 = vmatprep.mubr.f32.mxu0 0.0
    %4109 = vmatmul.mubr.f32.gmra.mrb[0].mxu0 %v3901
    %v4110 = vpop.f32.mrb[0].mxu0
    %v4111 = vadd.f32 %v3790, %v4110
    %v4112 = vpop.f32.mrb[0].mxu0
    %4113 = vmatprep.mubr.f32.mxu0 0.0
    %4114 = vmatmul.mubr.f32.gmra.mrb[0].mxu0 %v3904
    %v4115 = vpop.f32.mrb[0].mxu0
    %v4116 = vadd.f32 %v3795, %v4115
    %v4117 = vpop.f32.mrb[0].mxu0
    %4118 = vmatprep.mubr.f32.mxu0 0.0
    %4119 = vmatmul.mubr.f32.gmra.mrb[0].mxu0 %v3907
    %v4120 = vpop.f32.mrb[0].mxu0
    %v4121 = vadd.f32 %v3800, %v4120
    %v4122 = vpop.f32.mrb[0].mxu0
    %4123 = vmatprep.mubr.f32.mxu0 0.0
    %4124 = vmatmul.mubr.f32.gmra.mrb[0].mxu0 %v3910
    %v4125 = vpop.f32.mrb[0].mxu0
    %v4126 = vadd.f32 %v3805, %v4125
    %v4127 = vpop.f32.mrb[0].mxu0
    %4128 = vmatprep.mubr.f32.mxu0 0.0
    %4129 = vmatmul.mubr.f32.gmra.mrb[0].mxu0 %v3913
    %v4130 = vpop.f32.mrb[0].mxu0
    %v4131 = vadd.f32 %v3810, %v4130
    %v4132 = vpop.f32.mrb[0].mxu0
    %4133 = vmatprep.mubr.f32.mxu0 0.0
    %4134 = vmatmul.mubr.f32.gmra.mrb[0].mxu0 %v3916
    %v4135 = vpop.f32.mrb[0].mxu0
    %v4136 = vadd.f32 %v3815, %v4135
    %v4137 = vpop.f32.mrb[0].mxu0
    %4138 = vmatprep.mubr.f32.mxu0 0.0
    %4139 = vmatmul.mubr.f32.gmra.mrb[0].mxu0 %v3919
    %v4140 = vpop.f32.mrb[0].mxu0
    %v4141 = vadd.f32 %v3820, %v4140
    %v4142 = vpop.f32.mrb[0].mxu0
    %4143 = vmatprep.mubr.f32.mxu0 0.0
    %4144 = vmatmul.mubr.f32.gmra.mrb[0].mxu0 %v3922
    %v4145 = vpop.f32.mrb[0].mxu0
    %v4146 = vadd.f32 %v3825, %v4145
    %v4147 = vpop.f32.mrb[0].mxu0
    %4148 = vdwg.mxu0
    %v4150 = vlaneseq
    %v4151 = vshrl.u32 %v4150, 7
    %v4152 = vsub.s32 0, %v4151
    %v4153 = vrot.slane %v3297, %v4152
    %v4155 = vadd.f32 %v3991, %v4153
    %v4156 = vadd.f32 %v3996, %v4153
    %v4157 = vadd.f32 %v4001, %v4153
    %v4158 = vadd.f32 %v4006, %v4153
    %v4159 = vadd.f32 %v4011, %v4153
    %v4160 = vadd.f32 %v4016, %v4153
    %v4161 = vadd.f32 %v4021, %v4153
    %v4162 = vadd.f32 %v4026, %v4153
    %v4163 = vadd.f32 %v4031, %v4153
    %v4164 = vadd.f32 %v4036, %v4153
    %v4165 = vadd.f32 %v4041, %v4153
    %v4166 = vadd.f32 %v4046, %v4153
    %v4167 = vadd.f32 %v4051, %v4153
    %v4168 = vadd.f32 %v4056, %v4153
    %v4169 = vadd.f32 %v4061, %v4153
    %v4170 = vadd.f32 %v4066, %v4153
    %v4171 = vadd.f32 %v4071, %v4153
    %v4172 = vadd.f32 %v4076, %v4153
    %v4173 = vadd.f32 %v4081, %v4153
    %v4174 = vadd.f32 %v4086, %v4153
    %v4175 = vadd.f32 %v4091, %v4153
    %v4176 = vadd.f32 %v4096, %v4153
    %v4177 = vadd.f32 %v4101, %v4153
    %v4178 = vadd.f32 %v4106, %v4153
    %v4179 = vadd.f32 %v4111, %v4153
    %v4180 = vadd.f32 %v4116, %v4153
    %v4181 = vadd.f32 %v4121, %v4153
    %v4182 = vadd.f32 %v4126, %v4153
    %v4183 = vadd.f32 %v4131, %v4153
    %v4184 = vadd.f32 %v4136, %v4153
    %v4185 = vadd.f32 %v4141, %v4153
    %v4186 = vadd.f32 %v4146, %v4153
    %vm4187 = vcmp.ge.f32.partialorder %v4155, 0.0
    %vm4188 = vcmp.ge.f32.partialorder %v4156, 0.0
    %vm4189 = vcmp.ge.f32.partialorder %v4157, 0.0
    %vm4190 = vcmp.ge.f32.partialorder %v4158, 0.0
    %vm4191 = vcmp.ge.f32.partialorder %v4159, 0.0
    %vm4192 = vcmp.ge.f32.partialorder %v4160, 0.0
    %vm4193 = vcmp.ge.f32.partialorder %v4161, 0.0
    %vm4194 = vcmp.ge.f32.partialorder %v4162, 0.0
    %vm4195 = vcmp.ge.f32.partialorder %v4163, 0.0
    %vm4196 = vcmp.ge.f32.partialorder %v4164, 0.0
    %vm4197 = vcmp.ge.f32.partialorder %v4165, 0.0
    %vm4198 = vcmp.ge.f32.partialorder %v4166, 0.0
    %vm4199 = vcmp.ge.f32.partialorder %v4167, 0.0
    %vm4200 = vcmp.ge.f32.partialorder %v4168, 0.0
    %vm4201 = vcmp.ge.f32.partialorder %v4169, 0.0
    %vm4202 = vcmp.ge.f32.partialorder %v4170, 0.0
    %vm4203 = vcmp.ge.f32.partialorder %v4171, 0.0
    %vm4204 = vcmp.ge.f32.partialorder %v4172, 0.0
    %vm4205 = vcmp.ge.f32.partialorder %v4173, 0.0
    %vm4206 = vcmp.ge.f32.partialorder %v4174, 0.0
    %vm4207 = vcmp.ge.f32.partialorder %v4175, 0.0
    %vm4208 = vcmp.ge.f32.partialorder %v4176, 0.0
    %vm4209 = vcmp.ge.f32.partialorder %v4177, 0.0
    %vm4210 = vcmp.ge.f32.partialorder %v4178, 0.0
    %vm4211 = vcmp.ge.f32.partialorder %v4179, 0.0
    %vm4212 = vcmp.ge.f32.partialorder %v4180, 0.0
    %vm4213 = vcmp.ge.f32.partialorder %v4181, 0.0
    %vm4214 = vcmp.ge.f32.partialorder %v4182, 0.0
    %vm4215 = vcmp.ge.f32.partialorder %v4183, 0.0
    %vm4216 = vcmp.ge.f32.partialorder %v4184, 0.0
    %vm4217 = vcmp.ge.f32.partialorder %v4185, 0.0
    %vm4218 = vcmp.ge.f32.partialorder %v4186, 0.0
    %v4219 = vmul.f32 %v4155, 0.01
    %v4220 = vmul.f32 %v4156, 0.01
    %v4221 = vmul.f32 %v4157, 0.01
    %v4222 = vmul.f32 %v4158, 0.01
    %v4223 = vmul.f32 %v4159, 0.01
    %v4224 = vmul.f32 %v4160, 0.01
    %v4225 = vmul.f32 %v4161, 0.01
    %v4226 = vmul.f32 %v4162, 0.01
    %v4227 = vmul.f32 %v4163, 0.01
    %v4228 = vmul.f32 %v4164, 0.01
    %v4229 = vmul.f32 %v4165, 0.01
    %v4230 = vmul.f32 %v4166, 0.01
    %v4231 = vmul.f32 %v4167, 0.01
    %v4232 = vmul.f32 %v4168, 0.01
    %v4233 = vmul.f32 %v4169, 0.01
    %v4234 = vmul.f32 %v4170, 0.01
    %v4235 = vmul.f32 %v4171, 0.01
    %v4236 = vmul.f32 %v4172, 0.01
    %v4237 = vmul.f32 %v4173, 0.01
    %v4238 = vmul.f32 %v4174, 0.01
    %v4239 = vmul.f32 %v4175, 0.01
    %v4240 = vmul.f32 %v4176, 0.01
    %v4241 = vmul.f32 %v4177, 0.01
    %v4242 = vmul.f32 %v4178, 0.01
    %v4243 = vmul.f32 %v4179, 0.01
    %v4244 = vmul.f32 %v4180, 0.01
    %v4245 = vmul.f32 %v4181, 0.01
    %v4246 = vmul.f32 %v4182, 0.01
    %v4247 = vmul.f32 %v4183, 0.01
    %v4248 = vmul.f32 %v4184, 0.01
    %v4249 = vmul.f32 %v4185, 0.01
    %v4250 = vmul.f32 %v4186, 0.01
    %v4251 = vsel %vm4187, %v4155, %v4219
    %v4252 = vsel %vm4188, %v4156, %v4220
    %v4253 = vsel %vm4189, %v4157, %v4221
    %v4254 = vsel %vm4190, %v4158, %v4222
    %v4255 = vsel %vm4191, %v4159, %v4223
    %v4256 = vsel %vm4192, %v4160, %v4224
    %v4257 = vsel %vm4193, %v4161, %v4225
    %v4258 = vsel %vm4194, %v4162, %v4226
    %v4259 = vsel %vm4195, %v4163, %v4227
    %v4260 = vsel %vm4196, %v4164, %v4228
    %v4261 = vsel %vm4197, %v4165, %v4229
    %v4262 = vsel %vm4198, %v4166, %v4230
    %v4263 = vsel %vm4199, %v4167, %v4231
    %v4264 = vsel %vm4200, %v4168, %v4232
    %v4265 = vsel %vm4201, %v4169, %v4233
    %v4266 = vsel %vm4202, %v4170, %v4234
    %v4267 = vsel %vm4203, %v4171, %v4235
    %v4268 = vsel %vm4204, %v4172, %v4236
    %v4269 = vsel %vm4205, %v4173, %v4237
    %v4270 = vsel %vm4206, %v4174, %v4238
    %v4271 = vsel %vm4207, %v4175, %v4239
    %v4272 = vsel %vm4208, %v4176, %v4240
    %v4273 = vsel %vm4209, %v4177, %v4241
    %v4274 = vsel %vm4210, %v4178, %v4242
    %v4275 = vsel %vm4211, %v4179, %v4243
    %v4276 = vsel %vm4212, %v4180, %v4244
    %v4277 = vsel %vm4213, %v4181, %v4245
    %v4278 = vsel %vm4214, %v4182, %v4246
    %v4279 = vsel %vm4215, %v4183, %v4247
    %v4280 = vsel %vm4216, %v4184, %v4248
    %v4281 = vsel %vm4217, %v4185, %v4249
    %v4282 = vsel %vm4218, %v4186, %v4250
    %v4283 = vld [vmem:[%s5] sm:$0xff]
    %v4284 = vld [vmem:[%s5 + $0x8] sm:$0xff]
    %v4285 = vld [vmem:[%s5 + $0x10] sm:$0xff]
    %v4286 = vld [vmem:[%s5 + $0x18] sm:$0xff]
    %v4287 = vld [vmem:[%s5 + $0x20] sm:$0xff]
    %v4288 = vld [vmem:[%s5 + $0x28] sm:$0xff]
    %v4289 = vld [vmem:[%s5 + $0x30] sm:$0xff]
    %v4290 = vld [vmem:[%s5 + $0x38] sm:$0xff]
    %v4291 = vld [vmem:[%s6] sm:$0x1]
    %v4292 = vpack.c.bf16 %v4252, %v4251
    %v4293 = vpack.c.bf16 %v4254, %v4253
    %v4294 = vpack.c.bf16 %v4256, %v4255
    %v4295 = vpack.c.bf16 %v4258, %v4257
    %v4296 = vpack.c.bf16 %v4260, %v4259
    %v4297 = vpack.c.bf16 %v4262, %v4261
    %v4298 = vpack.c.bf16 %v4264, %v4263
    %v4299 = vpack.c.bf16 %v4266, %v4265
    %v4300 = vpack.c.bf16 %v4268, %v4267
    %v4301 = vpack.c.bf16 %v4270, %v4269
    %v4302 = vpack.c.bf16 %v4272, %v4271
    %v4303 = vpack.c.bf16 %v4274, %v4273
    %v4304 = vpack.c.bf16 %v4276, %v4275
    %v4305 = vpack.c.bf16 %v4278, %v4277
    %v4306 = vpack.c.bf16 %v4280, %v4279
    %v4307 = vpack.c.bf16 %v4282, %v4281
    %4308 = vmatprep.subr.bf16.mxu0 0
    %4309 = vmatpush1.bf16.msra.mxu0 %v4292
    %4310 = vmatprep.subr.bf16.mxu0 0
    %4311 = vmatpush1.bf16.msra.mxu0 %v4293
    %4312 = vmatprep.subr.bf16.mxu0 0
    %4313 = vmatpush1.bf16.msra.mxu0 %v4294
    %4314 = vmatprep.subr.bf16.mxu0 0
    %4315 = vmatpush1.bf16.msra.mxu0 %v4295
    %4316 = vmatprep.subr.bf16.mxu0 0
    %4317 = vmatpush1.bf16.msra.mxu0 %v4296
    %4318 = vmatprep.subr.bf16.mxu0 0
    %4319 = vmatpush1.bf16.msra.mxu0 %v4297
    %4320 = vmatprep.subr.bf16.mxu0 0
    %4321 = vmatpush1.bf16.msra.mxu0 %v4298
    %4322 = vmatprep.subr.bf16.mxu0 0
    %4323 = vmatpush1.bf16.msra.mxu0 %v4299
    %4324 = vmatprep.subr.bf16.mxu0 0
    %4325 = vmatpush1.bf16.msra.mxu0 %v4300
    %4326 = vmatprep.subr.bf16.mxu0 0
    %4327 = vmatpush1.bf16.msra.mxu0 %v4301
    %4328 = vmatprep.subr.bf16.mxu0 0
    %4329 = vmatpush1.bf16.msra.mxu0 %v4302
    %4330 = vmatprep.subr.bf16.mxu0 0
    %4331 = vmatpush1.bf16.msra.mxu0 %v4303
    %4332 = vmatprep.subr.bf16.mxu0 0
    %4333 = vmatpush1.bf16.msra.mxu0 %v4304
    %4334 = vmatprep.subr.bf16.mxu0 0
    %4335 = vmatpush1.bf16.msra.mxu0 %v4305
    %4336 = vmatprep.subr.bf16.mxu0 0
    %4337 = vmatpush1.bf16.msra.mxu0 %v4306
    %4338 = vmatprep.subr.bf16.mxu0 0
    %4339 = vmatpush1.bf16.msra.mxu0 %v4307
    %4340 = vmatprep.mubr.bf16.mxu0 %v45
    %4341 = vmatmul.mubr.bf16.gmra.mrb[0].mxu0 %v44
    %v4342 = vpop.f32.mrb[0].mxu0
    %v4343 = vadd.f32 0.0, %v4342
    %v4344 = vpop.f32.mrb[0].mxu0
    %v4345 = vpop.f32.mrb[0].mxu0
    %v4346 = vadd.f32 0.0, %v4345
    %v4347 = vpop.f32.mrb[0].mxu0
    %4348 = vmatprep.mubr.bf16.mxu0 %v47
    %4349 = vmatmul.mubr.bf16.gmra.mrb[0].mxu0 %v46
    %v4350 = vpop.f32.mrb[0].mxu0
    %v4351 = vadd.f32 0.0, %v4350
    %v4352 = vpop.f32.mrb[0].mxu0
    %v4353 = vpop.f32.mrb[0].mxu0
    %v4354 = vadd.f32 0.0, %v4353
    %v4355 = vpop.f32.mrb[0].mxu0
    %4356 = vmatprep.mubr.bf16.mxu0 %v49
    %4357 = vmatmul.mubr.bf16.gmra.mrb[0].mxu0 %v48
    %v4358 = vpop.f32.mrb[0].mxu0
    %v4359 = vadd.f32 0.0, %v4358
    %v4360 = vpop.f32.mrb[0].mxu0
    %v4361 = vpop.f32.mrb[0].mxu0
    %v4362 = vadd.f32 0.0, %v4361
    %v4363 = vpop.f32.mrb[0].mxu0
    %4364 = vmatprep.mubr.bf16.mxu0 %v51
    %4365 = vmatmul.mubr.bf16.gmra.mrb[0].mxu0 %v50
    %v4366 = vpop.f32.mrb[0].mxu0
    %v4367 = vadd.f32 0.0, %v4366
    %v4368 = vpop.f32.mrb[0].mxu0
    %v4369 = vpop.f32.mrb[0].mxu0
    %v4370 = vadd.f32 0.0, %v4369
    %v4371 = vpop.f32.mrb[0].mxu0
    %4372 = vmatprep.mubr.bf16.mxu0 %v53
    %4373 = vmatmul.mubr.bf16.gmra.mrb[0].mxu0 %v52
    %v4374 = vpop.f32.mrb[0].mxu0
    %v4375 = vadd.f32 0.0, %v4374
    %v4376 = vpop.f32.mrb[0].mxu0
    %v4377 = vpop.f32.mrb[0].mxu0
    %v4378 = vadd.f32 0.0, %v4377
    %v4379 = vpop.f32.mrb[0].mxu0
    %4380 = vmatprep.mubr.bf16.mxu0 %v55
    %4381 = vmatmul.mubr.bf16.gmra.mrb[0].mxu0 %v54
    %v4382 = vpop.f32.mrb[0].mxu0
    %v4383 = vadd.f32 0.0, %v4382
    %v4384 = vpop.f32.mrb[0].mxu0
    %v4385 = vpop.f32.mrb[0].mxu0
    %v4386 = vadd.f32 0.0, %v4385
    %v4387 = vpop.f32.mrb[0].mxu0
    %4388 = vmatprep.mubr.bf16.mxu0 %v57
    %4389 = vmatmul.mubr.bf16.gmra.mrb[0].mxu0 %v56
    %v4390 = vpop.f32.mrb[0].mxu0
    %v4391 = vadd.f32 0.0, %v4390
    %v4392 = vpop.f32.mrb[0].mxu0
    %v4393 = vpop.f32.mrb[0].mxu0
    %v4394 = vadd.f32 0.0, %v4393
    %v4395 = vpop.f32.mrb[0].mxu0
    %4396 = vmatprep.mubr.bf16.mxu0 %v59
    %4397 = vmatmul.mubr.bf16.gmra.mrb[0].mxu0 %v58
    %v4398 = vpop.f32.mrb[0].mxu0
    %v4399 = vadd.f32 0.0, %v4398
    %v4400 = vpop.f32.mrb[0].mxu0
    %v4401 = vpop.f32.mrb[0].mxu0
    %v4402 = vadd.f32 0.0, %v4401
    %v4403 = vpop.f32.mrb[0].mxu0
    %4404 = vmatprep.mubr.bf16.mxu0 %v61
    %4405 = vmatmul.mubr.bf16.gmra.mrb[0].mxu0 %v60
    %v4406 = vpop.f32.mrb[0].mxu0
    %v4407 = vadd.f32 0.0, %v4406
    %v4408 = vpop.f32.mrb[0].mxu0
    %v4409 = vpop.f32.mrb[0].mxu0
    %v4410 = vadd.f32 0.0, %v4409
    %v4411 = vpop.f32.mrb[0].mxu0
    %4412 = vmatprep.mubr.bf16.mxu0 %v63
    %4413 = vmatmul.mubr.bf16.gmra.mrb[0].mxu0 %v62
    %v4414 = vpop.f32.mrb[0].mxu0
    %v4415 = vadd.f32 0.0, %v4414
    %v4416 = vpop.f32.mrb[0].mxu0
    %v4417 = vpop.f32.mrb[0].mxu0
    %v4418 = vadd.f32 0.0, %v4417
    %v4419 = vpop.f32.mrb[0].mxu0
    %4420 = vmatprep.mubr.bf16.mxu0 %v65
    %4421 = vmatmul.mubr.bf16.gmra.mrb[0].mxu0 %v64
    %v4422 = vpop.f32.mrb[0].mxu0
    %v4423 = vadd.f32 0.0, %v4422
    %v4424 = vpop.f32.mrb[0].mxu0
    %v4425 = vpop.f32.mrb[0].mxu0
    %v4426 = vadd.f32 0.0, %v4425
    %v4427 = vpop.f32.mrb[0].mxu0
    %4428 = vmatprep.mubr.bf16.mxu0 %v67
    %4429 = vmatmul.mubr.bf16.gmra.mrb[0].mxu0 %v66
    %v4430 = vpop.f32.mrb[0].mxu0
    %v4431 = vadd.f32 0.0, %v4430
    %v4432 = vpop.f32.mrb[0].mxu0
    %v4433 = vpop.f32.mrb[0].mxu0
    %v4434 = vadd.f32 0.0, %v4433
    %v4435 = vpop.f32.mrb[0].mxu0
    %4436 = vmatprep.mubr.bf16.mxu0 %v69
    %4437 = vmatmul.mubr.bf16.gmra.mrb[0].mxu0 %v68
    %v4438 = vpop.f32.mrb[0].mxu0
    %v4439 = vadd.f32 0.0, %v4438
    %v4440 = vpop.f32.mrb[0].mxu0
    %v4441 = vpop.f32.mrb[0].mxu0
    %v4442 = vadd.f32 0.0, %v4441
    %v4443 = vpop.f32.mrb[0].mxu0
    %4444 = vmatprep.mubr.bf16.mxu0 %v71
    %4445 = vmatmul.mubr.bf16.gmra.mrb[0].mxu0 %v70
    %v4446 = vpop.f32.mrb[0].mxu0
    %v4447 = vadd.f32 0.0, %v4446
    %v4448 = vpop.f32.mrb[0].mxu0
    %v4449 = vpop.f32.mrb[0].mxu0
    %v4450 = vadd.f32 0.0, %v4449
    %v4451 = vpop.f32.mrb[0].mxu0
    %4452 = vmatprep.mubr.bf16.mxu0 %v73
    %4453 = vmatmul.mubr.bf16.gmra.mrb[0].mxu0 %v72
    %v4454 = vpop.f32.mrb[0].mxu0
    %v4455 = vadd.f32 0.0, %v4454
    %v4456 = vpop.f32.mrb[0].mxu0
    %v4457 = vpop.f32.mrb[0].mxu0
    %v4458 = vadd.f32 0.0, %v4457
    %v4459 = vpop.f32.mrb[0].mxu0
    %4460 = vmatprep.mubr.bf16.mxu0 %v75
    %4461 = vmatmul.mubr.bf16.gmra.mrb[0].mxu0 %v74
    %v4462 = vpop.f32.mrb[0].mxu0
    %v4463 = vadd.f32 0.0, %v4462
    %v4464 = vpop.f32.mrb[0].mxu0
    %v4465 = vpop.f32.mrb[0].mxu0
    %v4466 = vadd.f32 0.0, %v4465
    %v4467 = vpop.f32.mrb[0].mxu0
    %4468 = vdwg.mxu0
    %v4469 = vmul.f32 %v4343, %v329
    %v4470 = vmul.f32 %v4346, %v334
    %v4471 = vmul.f32 %v4351, %v339
    %v4472 = vmul.f32 %v4354, %v344
    %v4473 = vmul.f32 %v4359, %v349
    %v4474 = vmul.f32 %v4362, %v354
    %v4475 = vmul.f32 %v4367, %v359
    %v4476 = vmul.f32 %v4370, %v364
    %v4477 = vmul.f32 %v4375, %v369
    %v4478 = vmul.f32 %v4378, %v374
    %v4479 = vmul.f32 %v4383, %v379
    %v4480 = vmul.f32 %v4386, %v384
    %v4481 = vmul.f32 %v4391, %v389
    %v4482 = vmul.f32 %v4394, %v394
    %v4483 = vmul.f32 %v4399, %v399
    %v4484 = vmul.f32 %v4402, %v404
    %v4485 = vmul.f32 %v4407, %v409
    %v4486 = vmul.f32 %v4410, %v414
    %v4487 = vmul.f32 %v4415, %v419
    %v4488 = vmul.f32 %v4418, %v424
    %v4489 = vmul.f32 %v4423, %v429
    %v4490 = vmul.f32 %v4426, %v434
    %v4491 = vmul.f32 %v4431, %v439
    %v4492 = vmul.f32 %v4434, %v444
    %v4493 = vmul.f32 %v4439, %v449
    %v4494 = vmul.f32 %v4442, %v454
    %v4495 = vmul.f32 %v4447, %v459
    %v4496 = vmul.f32 %v4450, %v464
    %v4497 = vmul.f32 %v4455, %v469
    %v4498 = vmul.f32 %v4458, %v474
    %v4499 = vmul.f32 %v4463, %v479
    %v4500 = vmul.f32 %v4466, %v484
    %v4502 = vsel %vm518, %v4469, 0
    %v4505 = vsel %vm518, %v4470, 0
    %v4508 = vsel %vm518, %v4471, 0
    %v4511 = vsel %vm518, %v4472, 0
    %v4514 = vsel %vm518, %v4473, 0
    %v4517 = vsel %vm518, %v4474, 0
    %v4520 = vsel %vm518, %v4475, 0
    %v4523 = vsel %vm518, %v4476, 0
    %v4526 = vsel %vm518, %v4477, 0
    %v4529 = vsel %vm518, %v4478, 0
    %v4532 = vsel %vm518, %v4479, 0
    %v4535 = vsel %vm518, %v4480, 0
    %v4538 = vsel %vm518, %v4481, 0
    %v4541 = vsel %vm518, %v4482, 0
    %v4544 = vsel %vm518, %v4483, 0
    %v4547 = vsel %vm518, %v4484, 0
    %v4550 = vsel %vm518, %v4485, 0
    %v4553 = vsel %vm518, %v4486, 0
    %v4556 = vsel %vm518, %v4487, 0
    %v4559 = vsel %vm518, %v4488, 0
    %v4562 = vsel %vm518, %v4489, 0
    %v4565 = vsel %vm518, %v4490, 0
    %v4568 = vsel %vm518, %v4491, 0
    %v4571 = vsel %vm518, %v4492, 0
    %v4574 = vsel %vm518, %v4493, 0
    %v4577 = vsel %vm518, %v4494, 0
    %v4580 = vsel %vm518, %v4495, 0
    %v4583 = vsel %vm518, %v4496, 0
    %v4586 = vsel %vm518, %v4497, 0
    %v4589 = vsel %vm518, %v4498, 0
    %v4592 = vsel %vm518, %v4499, 0
    %v4595 = vsel %vm518, %v4500, 0
    %4597 = vmatprep.subr.mxu0 0.0
    %4598 = vmatpush1.msra.mxu0 %v4287
    %4599 = vmatprep.subr.mxu0 0.0
    %4600 = vmatpush1.msra.mxu0 %v4288
    %4601 = vmatprep.subr.mxu0 0.0
    %4602 = vmatpush1.msra.mxu0 %v4289
    %4603 = vmatprep.subr.mxu0 0.0
    %4604 = vmatpush1.msra.mxu0 %v4290
    %4605 = vmatprep.subr.mxu0 0.0
    %4606 = vmatpush1.msra.mxu0 0.0
    %4607 = vmatprep.subr.mxu0 0.0
    %4608 = vmatpush1.msra.mxu0 0.0
    %4609 = vmatprep.subr.mxu0 0.0
    %4610 = vmatpush1.msra.mxu0 0.0
    %4611 = vmatprep.subr.mxu0 0.0
    %4612 = vmatpush1.msra.mxu0 0.0
    %4613 = vmatprep.subr.mxu0 0.0
    %4614 = vmatpush1.msra.mxu0 0.0
    %4615 = vmatprep.subr.mxu0 0.0
    %4616 = vmatpush1.msra.mxu0 0.0
    %4617 = vmatprep.subr.mxu0 0.0
    %4618 = vmatpush1.msra.mxu0 0.0
    %4619 = vmatprep.subr.mxu0 0.0
    %4620 = vmatpush1.msra.mxu0 0.0
    %4621 = vmatprep.subr.mxu0 0.0
    %4622 = vmatpush1.msra.mxu0 0.0
    %4623 = vmatprep.subr.mxu0 0.0
    %4624 = vmatpush1.msra.mxu0 0.0
    %4625 = vmatprep.subr.mxu0 0.0
    %4626 = vmatpush1.msra.mxu0 0.0
    %4627 = vmatprep.subr.mxu0 0.0
    %4628 = vmatpush1.msra.mxu0 0.0
    %4629 = vmatprep.subr.mxu0 0.0
    %4630 = vmatpush1.msra.mxu0 0.0
    %4631 = vmatprep.subr.mxu0 0.0
    %4632 = vmatpush1.msra.mxu0 0.0
    %4633 = vmatprep.subr.mxu0 0.0
    %4634 = vmatpush1.msra.mxu0 0.0
    %4635 = vmatprep.subr.mxu0 0.0
    %4636 = vmatpush1.msra.mxu0 0.0
    %4637 = vmatprep.subr.mxu0 0.0
    %4638 = vmatpush1.msra.mxu0 0.0
    %4639 = vmatprep.subr.mxu0 0.0
    %4640 = vmatpush1.msra.mxu0 0.0
    %4641 = vmatprep.subr.mxu0 0.0
    %4642 = vmatpush1.msra.mxu0 0.0
    %4643 = vmatprep.subr.mxu0 0.0
    %4644 = vmatpush1.msra.mxu0 0.0
    %4645 = vmatprep.subr.mxu0 0.0
    %4646 = vmatpush1.msra.mxu0 0.0
    %4647 = vmatprep.subr.mxu0 0.0
    %4648 = vmatpush1.msra.mxu0 0.0
    %4649 = vmatprep.subr.mxu0 0.0
    %4650 = vmatpush1.msra.mxu0 0.0
    %4651 = vmatprep.subr.mxu0 0.0
    %4652 = vmatpush1.msra.mxu0 0.0
    %4653 = vmatprep.subr.mxu0 0.0
    %4654 = vmatpush1.msra.mxu0 0.0
    %4655 = vmatprep.subr.mxu0 0.0
    %4656 = vmatpush1.msra.mxu0 0.0
    %4657 = vmatprep.subr.mxu0 0.0
    %4658 = vmatpush1.msra.mxu0 0.0
    %4659 = vmatprep.subr.mxu0 0.0
    %4660 = vmatpush1.msra.mxu0 0.0
    %4661 = vmatprep.mubr.f32.mxu0 0.0
    %4662 = vmatmul.mubr.f32.gmra.mrb[0].mxu0 %v4502
    %v4663 = vpop.f32.mrb[0].mxu0
    %v4664 = vadd.f32 0.0, %v4663
    %v4665 = vpop.f32.mrb[0].mxu0
    %4666 = vmatprep.mubr.f32.mxu0 0.0
    %4667 = vmatmul.mubr.f32.gmra.mrb[0].mxu0 %v4505
    %v4668 = vpop.f32.mrb[0].mxu0
    %v4669 = vadd.f32 0.0, %v4668
    %v4670 = vpop.f32.mrb[0].mxu0
    %4671 = vmatprep.mubr.f32.mxu0 0.0
    %4672 = vmatmul.mubr.f32.gmra.mrb[0].mxu0 %v4508
    %v4673 = vpop.f32.mrb[0].mxu0
    %v4674 = vadd.f32 0.0, %v4673
    %v4675 = vpop.f32.mrb[0].mxu0
    %4676 = vmatprep.mubr.f32.mxu0 0.0
    %4677 = vmatmul.mubr.f32.gmra.mrb[0].mxu0 %v4511
    %v4678 = vpop.f32.mrb[0].mxu0
    %v4679 = vadd.f32 0.0, %v4678
    %v4680 = vpop.f32.mrb[0].mxu0
    %4681 = vmatprep.mubr.f32.mxu0 0.0
    %4682 = vmatmul.mubr.f32.gmra.mrb[0].mxu0 %v4514
    %v4683 = vpop.f32.mrb[0].mxu0
    %v4684 = vadd.f32 0.0, %v4683
    %v4685 = vpop.f32.mrb[0].mxu0
    %4686 = vmatprep.mubr.f32.mxu0 0.0
    %4687 = vmatmul.mubr.f32.gmra.mrb[0].mxu0 %v4517
    %v4688 = vpop.f32.mrb[0].mxu0
    %v4689 = vadd.f32 0.0, %v4688
    %v4690 = vpop.f32.mrb[0].mxu0
    %4691 = vmatprep.mubr.f32.mxu0 0.0
    %4692 = vmatmul.mubr.f32.gmra.mrb[0].mxu0 %v4520
    %v4693 = vpop.f32.mrb[0].mxu0
    %v4694 = vadd.f32 0.0, %v4693
    %v4695 = vpop.f32.mrb[0].mxu0
    %4696 = vmatprep.mubr.f32.mxu0 0.0
    %4697 = vmatmul.mubr.f32.gmra.mrb[0].mxu0 %v4523
    %v4698 = vpop.f32.mrb[0].mxu0
    %v4699 = vadd.f32 0.0, %v4698
    %v4700 = vpop.f32.mrb[0].mxu0
    %4701 = vmatprep.mubr.f32.mxu0 0.0
    %4702 = vmatmul.mubr.f32.gmra.mrb[0].mxu0 %v4526
    %v4703 = vpop.f32.mrb[0].mxu0
    %v4704 = vadd.f32 0.0, %v4703
    %v4705 = vpop.f32.mrb[0].mxu0
    %4706 = vmatprep.mubr.f32.mxu0 0.0
    %4707 = vmatmul.mubr.f32.gmra.mrb[0].mxu0 %v4529
    %v4708 = vpop.f32.mrb[0].mxu0
    %v4709 = vadd.f32 0.0, %v4708
    %v4710 = vpop.f32.mrb[0].mxu0
    %4711 = vmatprep.mubr.f32.mxu0 0.0
    %4712 = vmatmul.mubr.f32.gmra.mrb[0].mxu0 %v4532
    %v4713 = vpop.f32.mrb[0].mxu0
    %v4714 = vadd.f32 0.0, %v4713
    %v4715 = vpop.f32.mrb[0].mxu0
    %4716 = vmatprep.mubr.f32.mxu0 0.0
    %4717 = vmatmul.mubr.f32.gmra.mrb[0].mxu0 %v4535
    %v4718 = vpop.f32.mrb[0].mxu0
    %v4719 = vadd.f32 0.0, %v4718
    %v4720 = vpop.f32.mrb[0].mxu0
    %4721 = vmatprep.mubr.f32.mxu0 0.0
    %4722 = vmatmul.mubr.f32.gmra.mrb[0].mxu0 %v4538
    %v4723 = vpop.f32.mrb[0].mxu0
    %v4724 = vadd.f32 0.0, %v4723
    %v4725 = vpop.f32.mrb[0].mxu0
    %4726 = vmatprep.mubr.f32.mxu0 0.0
    %4727 = vmatmul.mubr.f32.gmra.mrb[0].mxu0 %v4541
    %v4728 = vpop.f32.mrb[0].mxu0
    %v4729 = vadd.f32 0.0, %v4728
    %v4730 = vpop.f32.mrb[0].mxu0
    %4731 = vmatprep.mubr.f32.mxu0 0.0
    %4732 = vmatmul.mubr.f32.gmra.mrb[0].mxu0 %v4544
    %v4733 = vpop.f32.mrb[0].mxu0
    %v4734 = vadd.f32 0.0, %v4733
    %v4735 = vpop.f32.mrb[0].mxu0
    %4736 = vmatprep.mubr.f32.mxu0 0.0
    %4737 = vmatmul.mubr.f32.gmra.mrb[0].mxu0 %v4547
    %v4738 = vpop.f32.mrb[0].mxu0
    %v4739 = vadd.f32 0.0, %v4738
    %v4740 = vpop.f32.mrb[0].mxu0
    %4741 = vmatprep.mubr.f32.mxu0 0.0
    %4742 = vmatmul.mubr.f32.gmra.mrb[0].mxu0 %v4550
    %v4743 = vpop.f32.mrb[0].mxu0
    %v4744 = vadd.f32 0.0, %v4743
    %v4745 = vpop.f32.mrb[0].mxu0
    %4746 = vmatprep.mubr.f32.mxu0 0.0
    %4747 = vmatmul.mubr.f32.gmra.mrb[0].mxu0 %v4553
    %v4748 = vpop.f32.mrb[0].mxu0
    %v4749 = vadd.f32 0.0, %v4748
    %v4750 = vpop.f32.mrb[0].mxu0
    %4751 = vmatprep.mubr.f32.mxu0 0.0
    %4752 = vmatmul.mubr.f32.gmra.mrb[0].mxu0 %v4556
    %v4753 = vpop.f32.mrb[0].mxu0
    %v4754 = vadd.f32 0.0, %v4753
    %v4755 = vpop.f32.mrb[0].mxu0
    %4756 = vmatprep.mubr.f32.mxu0 0.0
    %4757 = vmatmul.mubr.f32.gmra.mrb[0].mxu0 %v4559
    %v4758 = vpop.f32.mrb[0].mxu0
    %v4759 = vadd.f32 0.0, %v4758
    %v4760 = vpop.f32.mrb[0].mxu0
    %4761 = vmatprep.mubr.f32.mxu0 0.0
    %4762 = vmatmul.mubr.f32.gmra.mrb[0].mxu0 %v4562
    %v4763 = vpop.f32.mrb[0].mxu0
    %v4764 = vadd.f32 0.0, %v4763
    %v4765 = vpop.f32.mrb[0].mxu0
    %4766 = vmatprep.mubr.f32.mxu0 0.0
    %4767 = vmatmul.mubr.f32.gmra.mrb[0].mxu0 %v4565
    %v4768 = vpop.f32.mrb[0].mxu0
    %v4769 = vadd.f32 0.0, %v4768
    %v4770 = vpop.f32.mrb[0].mxu0
    %4771 = vmatprep.mubr.f32.mxu0 0.0
    %4772 = vmatmul.mubr.f32.gmra.mrb[0].mxu0 %v4568
    %v4773 = vpop.f32.mrb[0].mxu0
    %v4774 = vadd.f32 0.0, %v4773
    %v4775 = vpop.f32.mrb[0].mxu0
    %4776 = vmatprep.mubr.f32.mxu0 0.0
    %4777 = vmatmul.mubr.f32.gmra.mrb[0].mxu0 %v4571
    %v4778 = vpop.f32.mrb[0].mxu0
    %v4779 = vadd.f32 0.0, %v4778
    %v4780 = vpop.f32.mrb[0].mxu0
    %4781 = vmatprep.mubr.f32.mxu0 0.0
    %4782 = vmatmul.mubr.f32.gmra.mrb[0].mxu0 %v4574
    %v4783 = vpop.f32.mrb[0].mxu0
    %v4784 = vadd.f32 0.0, %v4783
    %v4785 = vpop.f32.mrb[0].mxu0
    %4786 = vmatprep.mubr.f32.mxu0 0.0
    %4787 = vmatmul.mubr.f32.gmra.mrb[0].mxu0 %v4577
    %v4788 = vpop.f32.mrb[0].mxu0
    %v4789 = vadd.f32 0.0, %v4788
    %v4790 = vpop.f32.mrb[0].mxu0
    %4791 = vmatprep.mubr.f32.mxu0 0.0
    %4792 = vmatmul.mubr.f32.gmra.mrb[0].mxu0 %v4580
    %v4793 = vpop.f32.mrb[0].mxu0
    %v4794 = vadd.f32 0.0, %v4793
    %v4795 = vpop.f32.mrb[0].mxu0
    %4796 = vmatprep.mubr.f32.mxu0 0.0
    %4797 = vmatmul.mubr.f32.gmra.mrb[0].mxu0 %v4583
    %v4798 = vpop.f32.mrb[0].mxu0
    %v4799 = vadd.f32 0.0, %v4798
    %v4800 = vpop.f32.mrb[0].mxu0
    %4801 = vmatprep.mubr.f32.mxu0 0.0
    %4802 = vmatmul.mubr.f32.gmra.mrb[0].mxu0 %v4586
    %v4803 = vpop.f32.mrb[0].mxu0
    %v4804 = vadd.f32 0.0, %v4803
    %v4805 = vpop.f32.mrb[0].mxu0
    %4806 = vmatprep.mubr.f32.mxu0 0.0
    %4807 = vmatmul.mubr.f32.gmra.mrb[0].mxu0 %v4589
    %v4808 = vpop.f32.mrb[0].mxu0
    %v4809 = vadd.f32 0.0, %v4808
    %v4810 = vpop.f32.mrb[0].mxu0
    %4811 = vmatprep.mubr.f32.mxu0 0.0
    %4812 = vmatmul.mubr.f32.gmra.mrb[0].mxu0 %v4592
    %v4813 = vpop.f32.mrb[0].mxu0
    %v4814 = vadd.f32 0.0, %v4813
    %v4815 = vpop.f32.mrb[0].mxu0
    %4816 = vmatprep.mubr.f32.mxu0 0.0
    %4817 = vmatmul.mubr.f32.gmra.mrb[0].mxu0 %v4595
    %v4818 = vpop.f32.mrb[0].mxu0
    %v4819 = vadd.f32 0.0, %v4818
    %v4820 = vpop.f32.mrb[0].mxu0
    %4821 = vdwg.mxu0
    %v4823 = vsel %vm518, %v4251, 0
    %v4826 = vsel %vm518, %v4252, 0
    %v4829 = vsel %vm518, %v4253, 0
    %v4832 = vsel %vm518, %v4254, 0
    %v4835 = vsel %vm518, %v4255, 0
    %v4838 = vsel %vm518, %v4256, 0
    %v4841 = vsel %vm518, %v4257, 0
    %v4844 = vsel %vm518, %v4258, 0
    %v4847 = vsel %vm518, %v4259, 0
    %v4850 = vsel %vm518, %v4260, 0
    %v4853 = vsel %vm518, %v4261, 0
    %v4856 = vsel %vm518, %v4262, 0
    %v4859 = vsel %vm518, %v4263, 0
    %v4862 = vsel %vm518, %v4264, 0
    %v4865 = vsel %vm518, %v4265, 0
    %v4868 = vsel %vm518, %v4266, 0
    %v4871 = vsel %vm518, %v4267, 0
    %v4874 = vsel %vm518, %v4268, 0
    %v4877 = vsel %vm518, %v4269, 0
    %v4880 = vsel %vm518, %v4270, 0
    %v4883 = vsel %vm518, %v4271, 0
    %v4886 = vsel %vm518, %v4272, 0
    %v4889 = vsel %vm518, %v4273, 0
    %v4892 = vsel %vm518, %v4274, 0
    %v4895 = vsel %vm518, %v4275, 0
    %v4898 = vsel %vm518, %v4276, 0
    %v4901 = vsel %vm518, %v4277, 0
    %v4904 = vsel %vm518, %v4278, 0
    %v4907 = vsel %vm518, %v4279, 0
    %v4910 = vsel %vm518, %v4280, 0
    %v4913 = vsel %vm518, %v4281, 0
    %v4916 = vsel %vm518, %v4282, 0
    %4918 = vmatprep.subr.mxu0 0.0
    %4919 = vmatpush1.msra.mxu0 %v4283
    %4920 = vmatprep.subr.mxu0 0.0
    %4921 = vmatpush1.msra.mxu0 %v4284
    %4922 = vmatprep.subr.mxu0 0.0
    %4923 = vmatpush1.msra.mxu0 %v4285
    %4924 = vmatprep.subr.mxu0 0.0
    %4925 = vmatpush1.msra.mxu0 %v4286
    %4926 = vmatprep.subr.mxu0 0.0
    %4927 = vmatpush1.msra.mxu0 0.0
    %4928 = vmatprep.subr.mxu0 0.0
    %4929 = vmatpush1.msra.mxu0 0.0
    %4930 = vmatprep.subr.mxu0 0.0
    %4931 = vmatpush1.msra.mxu0 0.0
    %4932 = vmatprep.subr.mxu0 0.0
    %4933 = vmatpush1.msra.mxu0 0.0
    %4934 = vmatprep.subr.mxu0 0.0
    %4935 = vmatpush1.msra.mxu0 0.0
    %4936 = vmatprep.subr.mxu0 0.0
    %4937 = vmatpush1.msra.mxu0 0.0
    %4938 = vmatprep.subr.mxu0 0.0
    %4939 = vmatpush1.msra.mxu0 0.0
    %4940 = vmatprep.subr.mxu0 0.0
    %4941 = vmatpush1.msra.mxu0 0.0
    %4942 = vmatprep.subr.mxu0 0.0
    %4943 = vmatpush1.msra.mxu0 0.0
    %4944 = vmatprep.subr.mxu0 0.0
    %4945 = vmatpush1.msra.mxu0 0.0
    %4946 = vmatprep.subr.mxu0 0.0
    %4947 = vmatpush1.msra.mxu0 0.0
    %4948 = vmatprep.subr.mxu0 0.0
    %4949 = vmatpush1.msra.mxu0 0.0
    %4950 = vmatprep.subr.mxu0 0.0
    %4951 = vmatpush1.msra.mxu0 0.0
    %4952 = vmatprep.subr.mxu0 0.0
    %4953 = vmatpush1.msra.mxu0 0.0
    %4954 = vmatprep.subr.mxu0 0.0
    %4955 = vmatpush1.msra.mxu0 0.0
    %4956 = vmatprep.subr.mxu0 0.0
    %4957 = vmatpush1.msra.mxu0 0.0
    %4958 = vmatprep.subr.mxu0 0.0
    %4959 = vmatpush1.msra.mxu0 0.0
    %4960 = vmatprep.subr.mxu0 0.0
    %4961 = vmatpush1.msra.mxu0 0.0
    %4962 = vmatprep.subr.mxu0 0.0
    %4963 = vmatpush1.msra.mxu0 0.0
    %4964 = vmatprep.subr.mxu0 0.0
    %4965 = vmatpush1.msra.mxu0 0.0
    %4966 = vmatprep.subr.mxu0 0.0
    %4967 = vmatpush1.msra.mxu0 0.0
    %4968 = vmatprep.subr.mxu0 0.0
    %4969 = vmatpush1.msra.mxu0 0.0
    %4970 = vmatprep.subr.mxu0 0.0
    %4971 = vmatpush1.msra.mxu0 0.0
    %4972 = vmatprep.subr.mxu0 0.0
    %4973 = vmatpush1.msra.mxu0 0.0
    %4974 = vmatprep.subr.mxu0 0.0
    %4975 = vmatpush1.msra.mxu0 0.0
    %4976 = vmatprep.subr.mxu0 0.0
    %4977 = vmatpush1.msra.mxu0 0.0
    %4978 = vmatprep.subr.mxu0 0.0
    %4979 = vmatpush1.msra.mxu0 0.0
    %4980 = vmatprep.subr.mxu0 0.0
    %4981 = vmatpush1.msra.mxu0 0.0
    %4982 = vmatprep.mubr.f32.mxu0 0.0
    %4983 = vmatmul.mubr.f32.gmra.mrb[0].mxu0 %v4823
    %v4984 = vpop.f32.mrb[0].mxu0
    %v4985 = vadd.f32 %v4664, %v4984
    %v4986 = vpop.f32.mrb[0].mxu0
    %4987 = vmatprep.mubr.f32.mxu0 0.0
    %4988 = vmatmul.mubr.f32.gmra.mrb[0].mxu0 %v4826
    %v4989 = vpop.f32.mrb[0].mxu0
    %v4990 = vadd.f32 %v4669, %v4989
    %v4991 = vpop.f32.mrb[0].mxu0
    %4992 = vmatprep.mubr.f32.mxu0 0.0
    %4993 = vmatmul.mubr.f32.gmra.mrb[0].mxu0 %v4829
    %v4994 = vpop.f32.mrb[0].mxu0
    %v4995 = vadd.f32 %v4674, %v4994
    %v4996 = vpop.f32.mrb[0].mxu0
    %4997 = vmatprep.mubr.f32.mxu0 0.0
    %4998 = vmatmul.mubr.f32.gmra.mrb[0].mxu0 %v4832
    %v4999 = vpop.f32.mrb[0].mxu0
    %v5000 = vadd.f32 %v4679, %v4999
    %v5001 = vpop.f32.mrb[0].mxu0
    %5002 = vmatprep.mubr.f32.mxu0 0.0
    %5003 = vmatmul.mubr.f32.gmra.mrb[0].mxu0 %v4835
    %v5004 = vpop.f32.mrb[0].mxu0
    %v5005 = vadd.f32 %v4684, %v5004
    %v5006 = vpop.f32.mrb[0].mxu0
    %5007 = vmatprep.mubr.f32.mxu0 0.0
    %5008 = vmatmul.mubr.f32.gmra.mrb[0].mxu0 %v4838
    %v5009 = vpop.f32.mrb[0].mxu0
    %v5010 = vadd.f32 %v4689, %v5009
    %v5011 = vpop.f32.mrb[0].mxu0
    %5012 = vmatprep.mubr.f32.mxu0 0.0
    %5013 = vmatmul.mubr.f32.gmra.mrb[0].mxu0 %v4841
    %v5014 = vpop.f32.mrb[0].mxu0
    %v5015 = vadd.f32 %v4694, %v5014
    %v5016 = vpop.f32.mrb[0].mxu0
    %5017 = vmatprep.mubr.f32.mxu0 0.0
    %5018 = vmatmul.mubr.f32.gmra.mrb[0].mxu0 %v4844
    %v5019 = vpop.f32.mrb[0].mxu0
    %v5020 = vadd.f32 %v4699, %v5019
    %v5021 = vpop.f32.mrb[0].mxu0
    %5022 = vmatprep.mubr.f32.mxu0 0.0
    %5023 = vmatmul.mubr.f32.gmra.mrb[0].mxu0 %v4847
    %v5024 = vpop.f32.mrb[0].mxu0
    %v5025 = vadd.f32 %v4704, %v5024
    %v5026 = vpop.f32.mrb[0].mxu0
    %5027 = vmatprep.mubr.f32.mxu0 0.0
    %5028 = vmatmul.mubr.f32.gmra.mrb[0].mxu0 %v4850
    %v5029 = vpop.f32.mrb[0].mxu0
    %v5030 = vadd.f32 %v4709, %v5029
    %v5031 = vpop.f32.mrb[0].mxu0
    %5032 = vmatprep.mubr.f32.mxu0 0.0
    %5033 = vmatmul.mubr.f32.gmra.mrb[0].mxu0 %v4853
    %v5034 = vpop.f32.mrb[0].mxu0
    %v5035 = vadd.f32 %v4714, %v5034
    %v5036 = vpop.f32.mrb[0].mxu0
    %5037 = vmatprep.mubr.f32.mxu0 0.0
    %5038 = vmatmul.mubr.f32.gmra.mrb[0].mxu0 %v4856
    %v5039 = vpop.f32.mrb[0].mxu0
    %v5040 = vadd.f32 %v4719, %v5039
    %v5041 = vpop.f32.mrb[0].mxu0
    %5042 = vmatprep.mubr.f32.mxu0 0.0
    %5043 = vmatmul.mubr.f32.gmra.mrb[0].mxu0 %v4859
    %v5044 = vpop.f32.mrb[0].mxu0
    %v5045 = vadd.f32 %v4724, %v5044
    %v5046 = vpop.f32.mrb[0].mxu0
    %5047 = vmatprep.mubr.f32.mxu0 0.0
    %5048 = vmatmul.mubr.f32.gmra.mrb[0].mxu0 %v4862
    %v5049 = vpop.f32.mrb[0].mxu0
    %v5050 = vadd.f32 %v4729, %v5049
    %v5051 = vpop.f32.mrb[0].mxu0
    %5052 = vmatprep.mubr.f32.mxu0 0.0
    %5053 = vmatmul.mubr.f32.gmra.mrb[0].mxu0 %v4865
    %v5054 = vpop.f32.mrb[0].mxu0
    %v5055 = vadd.f32 %v4734, %v5054
    %v5056 = vpop.f32.mrb[0].mxu0
    %5057 = vmatprep.mubr.f32.mxu0 0.0
    %5058 = vmatmul.mubr.f32.gmra.mrb[0].mxu0 %v4868
    %v5059 = vpop.f32.mrb[0].mxu0
    %v5060 = vadd.f32 %v4739, %v5059
    %v5061 = vpop.f32.mrb[0].mxu0
    %5062 = vmatprep.mubr.f32.mxu0 0.0
    %5063 = vmatmul.mubr.f32.gmra.mrb[0].mxu0 %v4871
    %v5064 = vpop.f32.mrb[0].mxu0
    %v5065 = vadd.f32 %v4744, %v5064
    %v5066 = vpop.f32.mrb[0].mxu0
    %5067 = vmatprep.mubr.f32.mxu0 0.0
    %5068 = vmatmul.mubr.f32.gmra.mrb[0].mxu0 %v4874
    %v5069 = vpop.f32.mrb[0].mxu0
    %v5070 = vadd.f32 %v4749, %v5069
    %v5071 = vpop.f32.mrb[0].mxu0
    %5072 = vmatprep.mubr.f32.mxu0 0.0
    %5073 = vmatmul.mubr.f32.gmra.mrb[0].mxu0 %v4877
    %v5074 = vpop.f32.mrb[0].mxu0
    %v5075 = vadd.f32 %v4754, %v5074
    %v5076 = vpop.f32.mrb[0].mxu0
    %5077 = vmatprep.mubr.f32.mxu0 0.0
    %5078 = vmatmul.mubr.f32.gmra.mrb[0].mxu0 %v4880
    %v5079 = vpop.f32.mrb[0].mxu0
    %v5080 = vadd.f32 %v4759, %v5079
    %v5081 = vpop.f32.mrb[0].mxu0
    %5082 = vmatprep.mubr.f32.mxu0 0.0
    %5083 = vmatmul.mubr.f32.gmra.mrb[0].mxu0 %v4883
    %v5084 = vpop.f32.mrb[0].mxu0
    %v5085 = vadd.f32 %v4764, %v5084
    %v5086 = vpop.f32.mrb[0].mxu0
    %5087 = vmatprep.mubr.f32.mxu0 0.0
    %5088 = vmatmul.mubr.f32.gmra.mrb[0].mxu0 %v4886
    %v5089 = vpop.f32.mrb[0].mxu0
    %v5090 = vadd.f32 %v4769, %v5089
    %v5091 = vpop.f32.mrb[0].mxu0
    %5092 = vmatprep.mubr.f32.mxu0 0.0
    %5093 = vmatmul.mubr.f32.gmra.mrb[0].mxu0 %v4889
    %v5094 = vpop.f32.mrb[0].mxu0
    %v5095 = vadd.f32 %v4774, %v5094
    %v5096 = vpop.f32.mrb[0].mxu0
    %5097 = vmatprep.mubr.f32.mxu0 0.0
    %5098 = vmatmul.mubr.f32.gmra.mrb[0].mxu0 %v4892
    %v5099 = vpop.f32.mrb[0].mxu0
    %v5100 = vadd.f32 %v4779, %v5099
    %v5101 = vpop.f32.mrb[0].mxu0
    %5102 = vmatprep.mubr.f32.mxu0 0.0
    %5103 = vmatmul.mubr.f32.gmra.mrb[0].mxu0 %v4895
    %v5104 = vpop.f32.mrb[0].mxu0
    %v5105 = vadd.f32 %v4784, %v5104
    %v5106 = vpop.f32.mrb[0].mxu0
    %5107 = vmatprep.mubr.f32.mxu0 0.0
    %5108 = vmatmul.mubr.f32.gmra.mrb[0].mxu0 %v4898
    %v5109 = vpop.f32.mrb[0].mxu0
    %v5110 = vadd.f32 %v4789, %v5109
    %v5111 = vpop.f32.mrb[0].mxu0
    %5112 = vmatprep.mubr.f32.mxu0 0.0
    %5113 = vmatmul.mubr.f32.gmra.mrb[0].mxu0 %v4901
    %v5114 = vpop.f32.mrb[0].mxu0
    %v5115 = vadd.f32 %v4794, %v5114
    %v5116 = vpop.f32.mrb[0].mxu0
    %5117 = vmatprep.mubr.f32.mxu0 0.0
    %5118 = vmatmul.mubr.f32.gmra.mrb[0].mxu0 %v4904
    %v5119 = vpop.f32.mrb[0].mxu0
    %v5120 = vadd.f32 %v4799, %v5119
    %v5121 = vpop.f32.mrb[0].mxu0
    %5122 = vmatprep.mubr.f32.mxu0 0.0
    %5123 = vmatmul.mubr.f32.gmra.mrb[0].mxu0 %v4907
    %v5124 = vpop.f32.mrb[0].mxu0
    %v5125 = vadd.f32 %v4804, %v5124
    %v5126 = vpop.f32.mrb[0].mxu0
    %5127 = vmatprep.mubr.f32.mxu0 0.0
    %5128 = vmatmul.mubr.f32.gmra.mrb[0].mxu0 %v4910
    %v5129 = vpop.f32.mrb[0].mxu0
    %v5130 = vadd.f32 %v4809, %v5129
    %v5131 = vpop.f32.mrb[0].mxu0
    %5132 = vmatprep.mubr.f32.mxu0 0.0
    %5133 = vmatmul.mubr.f32.gmra.mrb[0].mxu0 %v4913
    %v5134 = vpop.f32.mrb[0].mxu0
    %v5135 = vadd.f32 %v4814, %v5134
    %v5136 = vpop.f32.mrb[0].mxu0
    %5137 = vmatprep.mubr.f32.mxu0 0.0
    %5138 = vmatmul.mubr.f32.gmra.mrb[0].mxu0 %v4916
    %v5139 = vpop.f32.mrb[0].mxu0
    %v5140 = vadd.f32 %v4819, %v5139
    %v5141 = vpop.f32.mrb[0].mxu0
    %5142 = vdwg.mxu0
    %v5144 = vlaneseq
    %v5145 = vshrl.u32 %v5144, 7
    %v5146 = vsub.s32 0, %v5145
    %v5147 = vrot.slane %v4291, %v5146
    %v5149 = vadd.f32 %v4985, %v5147
    %v5150 = vadd.f32 %v4990, %v5147
    %v5151 = vadd.f32 %v4995, %v5147
    %v5152 = vadd.f32 %v5000, %v5147
    %v5153 = vadd.f32 %v5005, %v5147
    %v5154 = vadd.f32 %v5010, %v5147
    %v5155 = vadd.f32 %v5015, %v5147
    %v5156 = vadd.f32 %v5020, %v5147
    %v5157 = vadd.f32 %v5025, %v5147
    %v5158 = vadd.f32 %v5030, %v5147
    %v5159 = vadd.f32 %v5035, %v5147
    %v5160 = vadd.f32 %v5040, %v5147
    %v5161 = vadd.f32 %v5045, %v5147
    %v5162 = vadd.f32 %v5050, %v5147
    %v5163 = vadd.f32 %v5055, %v5147
    %v5164 = vadd.f32 %v5060, %v5147
    %v5165 = vadd.f32 %v5065, %v5147
    %v5166 = vadd.f32 %v5070, %v5147
    %v5167 = vadd.f32 %v5075, %v5147
    %v5168 = vadd.f32 %v5080, %v5147
    %v5169 = vadd.f32 %v5085, %v5147
    %v5170 = vadd.f32 %v5090, %v5147
    %v5171 = vadd.f32 %v5095, %v5147
    %v5172 = vadd.f32 %v5100, %v5147
    %v5173 = vadd.f32 %v5105, %v5147
    %v5174 = vadd.f32 %v5110, %v5147
    %v5175 = vadd.f32 %v5115, %v5147
    %v5176 = vadd.f32 %v5120, %v5147
    %v5177 = vadd.f32 %v5125, %v5147
    %v5178 = vadd.f32 %v5130, %v5147
    %v5179 = vadd.f32 %v5135, %v5147
    %v5180 = vadd.f32 %v5140, %v5147
    %5181 = vst [vmem:[#allocation2] sm:$0xff] %v5149
    %5182 = vst [vmem:[#allocation2 + $0x8] sm:$0xff] %v5150
    %5183 = vst [vmem:[#allocation2 + $0x10] sm:$0xff] %v5151
    %5184 = vst [vmem:[#allocation2 + $0x18] sm:$0xff] %v5152
    %5185 = vst [vmem:[#allocation2 + $0x20] sm:$0xff] %v5153
    %5186 = vst [vmem:[#allocation2 + $0x28] sm:$0xff] %v5154
    %5187 = vst [vmem:[#allocation2 + $0x30] sm:$0xff] %v5155
    %5188 = vst [vmem:[#allocation2 + $0x38] sm:$0xff] %v5156
    %5189 = vst [vmem:[#allocation2 + $0x40] sm:$0xff] %v5157
    %5190 = vst [vmem:[#allocation2 + $0x48] sm:$0xff] %v5158
    %5191 = vst [vmem:[#allocation2 + $0x50] sm:$0xff] %v5159
    %5192 = vst [vmem:[#allocation2 + $0x58] sm:$0xff] %v5160
    %5193 = vst [vmem:[#allocation2 + $0x60] sm:$0xff] %v5161
    %5194 = vst [vmem:[#allocation2 + $0x68] sm:$0xff] %v5162
    %5195 = vst [vmem:[#allocation2 + $0x70] sm:$0xff] %v5163
    %5196 = vst [vmem:[#allocation2 + $0x78] sm:$0xff] %v5164
    %5197 = vst [vmem:[#allocation2 + $0x80] sm:$0xff] %v5165
    %5198 = vst [vmem:[#allocation2 + $0x88] sm:$0xff] %v5166
    %5199 = vst [vmem:[#allocation2 + $0x90] sm:$0xff] %v5167
    %5200 = vst [vmem:[#allocation2 + $0x98] sm:$0xff] %v5168
    %5201 = vst [vmem:[#allocation2 + $0xa0] sm:$0xff] %v5169
    %5202 = vst [vmem:[#allocation2 + $0xa8] sm:$0xff] %v5170
    %5203 = vst [vmem:[#allocation2 + $0xb0] sm:$0xff] %v5171
    %5204 = vst [vmem:[#allocation2 + $0xb8] sm:$0xff] %v5172
    %5205 = vst [vmem:[#allocation2 + $0xc0] sm:$0xff] %v5173
    %5206 = vst [vmem:[#allocation2 + $0xc8] sm:$0xff] %v5174
    %5207 = vst [vmem:[#allocation2 + $0xd0] sm:$0xff] %v5175
    %5208 = vst [vmem:[#allocation2 + $0xd8] sm:$0xff] %v5176
    %5209 = vst [vmem:[#allocation2 + $0xe0] sm:$0xff] %v5177
    %5210 = vst [vmem:[#allocation2 + $0xe8] sm:$0xff] %v5178
    %5211 = vst [vmem:[#allocation2 + $0xf0] sm:$0xff] %v5179
    %5212 = vst [vmem:[#allocation2 + $0xf8] sm:$0xff] %v5180
    // Predicated region
    $region30: #{sage_net_fused.1} parent=1 // pred_check
      _
    $region31: #{sage_net_fused.1} parent=1 // pred_check_branch
      %5214 = sbr.rel (0) target = $region33
    $region32: #{sage_net_fused.1} parent=1 // pred_region
      %s5216 = ssub.s32 4096, 4096
      %5217 = vsyncadd [#allocation3], %s5216
      %s5218 = sshll.u32 [#allocation2], 4
      %s5219 = int_to_ptr.vmem [resolvable:$true] %s5218
      %5224 = dma.vmem_to_hbm [thread:$0]  %s5219, 4096, %s7, [#allocation3], 128, 128, 8
    $region33: #{sage_net_fused.1} parent=1 // pred_fallthru
      _
    // Predicated region
    $region34: #{sage_net_fused.1} parent=1 // pred_check
      _
    $region35: #{sage_net_fused.1} parent=1 // pred_check_branch
      %5226 = sbr.rel (0) target = $region37
    $region36: #{sage_net_fused.1} parent=1 // pred_region
      %5227 = dma.done [#allocation3], 4096
    $region37: #{sage_net_fused.1} parent=1 // pred_fallthru
      _
    %5228 = vsyncpa [#allocation3], 1

</llo_original>
